<compile_context>
chip_gen: v7x
topology: tpu7x:2x2x1
jax: 0.10.0
libtpu: 0.0.40
codegen_flags: <defaults>
</compile_context>

<pallas_src>
import numpy as np
import jax
import jax.numpy as jnp
from jax.experimental import pallas as pl
from jax.experimental.pallas import tpu as pltpu

# Make the pure-JAX reference einsums run in true f32 so the accuracy check is
# meaningful (does not affect kernel semantics).
jax.config.update("jax_default_matmul_precision", "highest")


# ----------------------- host-side operator builders -----------------------

def _pool_matrix(size, k):
    """(size, size//k) averaging operator: stride==kernel, remainder cropped."""
    out = size // k
    m = np.zeros((size, out), dtype=np.float32)
    for j in range(out):
        m[j * k:(j + 1) * k, j] = 1.0 / k
    return m


def _interp_matrix(out_size, in_size):
    """1-D linear interpolation matrix, PyTorch align_corners=True semantics."""
    a = np.zeros((out_size, in_size), dtype=np.float32)
    if in_size == 1:
        a[:, 0] = 1.0
        return a
    if out_size == 1:
        a[0, 0] = 1.0
        return a
    for i in range(out_size):
        src = i * (in_size - 1) / (out_size - 1)
        i0 = min(int(np.floor(src)), in_size - 1)
        i1 = min(i0 + 1, in_size - 1)
        w1 = src - i0
        a[i, i0] += 1.0 - w1
        a[i, i1] += w1
    return a


def _pick_col_tile(hw):
    """Largest lane-dense (multiple-of-128) column tile giving >=2 grid steps."""
    if hw % 128 == 0:
        for cand in (512, 384, 256, 128):
            if cand <= hw // 2 and hw % cand == 0:
                return cand
    return hw  # single tile fallback


# ------------------------------ fused forward -------------------------------

def global_context_forward(x, conv_w, gamma, beta, *, div_factor, k_t, eps=1e-5):
    N, C, T, H, W = x.shape
    kt = k_t if T >= k_t else T
    kh = H // div_factor
    kw = W // div_factor
    Tp, Hp, Wp = T // kt, H // kh, W // kw
    HW, HWp = H * W, Hp * Wp
    Cout = conv_w.shape[0]
    NCT = N * C * T            # rows of the input view
    R = N * Cout * Tp          # rows of the pooled/conv activation z
    NCoT = N * Cout * T        # rows of the kernel output

    # ---- small separable operators, built on host (trace-time constants) ----
    b_hw = np.kron(_pool_matrix(H, kh), _pool_matrix(W, kw))          # (HW, HWp)  HW avg-pool
    pool_t_T = _pool_matrix(T, kt).T                                  # (Tp, T)    T avg-pool
    m_chan = np.kron(np.ones((N, N), np.float32),
                     np.kron(np.eye(Cout, dtype=np.float32),
                             np.ones((Tp, Tp), np.float32)))          # (R, R)     same-channel sum
    u_t = np.kron(np.eye(N * Cout, dtype=np.float32),
                  _interp_matrix(T, Tp))                              # (NCoT, R)  T upsample
    a_hw = np.kron(_interp_matrix(H, Hp), _interp_matrix(W, Wp)).T    # (HWp, HW)  HW upsample

    b_hw = jnp.asarray(b_hw)
    u_t = jnp.asarray(u_t)
    a_hw = jnp.asarray(a_hw)

    # ---- tiny traced parameter operators ----
    # 1x1x1 conv (over channels) fused with the T avg-pool:
    # rows (n, o, tp)  <-  cols (n, c, t)
    l_op = jnp.kron(jnp.kron(jnp.eye(N, dtype=jnp.float32),
                             conv_w.astype(jnp.float32)),
                    jnp.asarray(pool_t_T))                            # (R, NCT)
    gamma_r = jnp.tile(jnp.repeat(gamma.astype(jnp.float32), Tp), N).reshape(R, 1)
    beta_r = jnp.tile(jnp.repeat(beta.astype(jnp.float32), Tp), N).reshape(R, 1)
    bn_op = jnp.concatenate([jnp.asarray(m_chan), gamma_r, beta_r], axis=1)  # (R, R+2)

    x_view = x.reshape(NCT, HW).astype(jnp.float32)   # free contiguous view

    inv_cnt = 1.0 / float(N * Tp * Hp * Wp)

    tn = _pick_col_tile(HW)
    grid = (HW // tn,)

    def kernel(x_ref, bhw_ref, l_ref, bn_ref, ut_ref, ahw_ref, o_ref, y_ref):
        @pl.when(pl.program_id(0) == 0)
        def _prologue():
            # (1) HW avg-pool (columns HW -> HWp), one MXU matmul.
            xp = jnp.dot(x_ref[...], bhw_ref[...],
                         preferred_element_type=jnp.float32)          # (NCT, HWp)
            # (2) 1x1x1 conv + T avg-pool, one fused block operator on the rows.
            z = jnp.dot(l_ref[...], xp,
                        preferred_element_type=jnp.float32)           # (R, HWp)
            # (3) BatchNorm3d (training: biased stats over batch + spatial).
            bn = bn_ref[...]
            m_op = bn[:, :R]
            g_r = bn[:, R:R + 1]
            b_r = bn[:, R + 1:R + 2]
            zs = jnp.dot(m_op, z, preferred_element_type=jnp.float32)
            mean_r = jnp.sum(zs, axis=1, keepdims=True) * inv_cnt     # (R, 1)
            d = z - mean_r
            ds = jnp.dot(m_op, d * d, preferred_element_type=jnp.float32)
            var_r = jnp.sum(ds, axis=1, keepdims=True) * inv_cnt      # (R, 1)
            scale_r = g_r * jax.lax.rsqrt(var_r + eps)
            bias_r = b_r - mean_r * scale_r
            # Affine + ReLU.
            y = jnp.maximum(z * scale_r + bias_r, 0.0)                # (R, HWp)
            # (4) T upsample; stash for the column-tiled epilogue.
            y_ref[...] = jnp.dot(ut_ref[...], y,
                                 preferred_element_type=jnp.float32)  # (NCoT, HWp)

        # (5) Trilinear HW upsample: one lane-dense output tile per grid step.
        o_ref[...] = jnp.dot(y_ref[...], ahw_ref[...],
                             preferred_element_type=jnp.float32)      # (NCoT, tn)

    out_flat = pl.pallas_call(
        kernel,
        out_shape=jax.ShapeDtypeStruct((NCoT, HW), jnp.float32),
        grid=grid,
        in_specs=[
            pl.BlockSpec((NCT, HW), lambda j: (0, 0)),      # x, DMA'd once (revisited)
            pl.BlockSpec((HW, HWp), lambda j: (0, 0)),      # HW pool operator
            pl.BlockSpec((R, NCT), lambda j: (0, 0)),       # conv + T-pool operator
            pl.BlockSpec((R, R + 2), lambda j: (0, 0)),     # [channel-sum | gamma | beta]
            pl.BlockSpec((NCoT, R), lambda j: (0, 0)),      # T upsample operator
            pl.BlockSpec((HWp, tn), lambda j: (0, j)),      # HW upsample tile (pipelined)
        ],
        out_specs=pl.BlockSpec((NCoT, tn), lambda j: (0, j)),
        scratch_shapes=[pltpu.VMEM((NCoT, HWp), jnp.float32)],
        compiler_params=pltpu.CompilerParams(dimension_semantics=("arbitrary",)),
    )(x_view, b_hw, l_op, bn_op, u_t, a_hw)

    return out_flat.reshape(N, Cout, T, H, W)


# --------------------- plain-JAX reference (for checking) -------------------

def _reference_forward(x, conv_w, gamma, beta, *, div_factor, k_t, eps=1e-5):
    N, C, T, H, W = x.shape
    kt = k_t if T >= k_t else T
    kh = H // div_factor
    kw = W // div_factor
    Tp, Hp, Wp = T // kt, H // kh, W // kw
    xc = x[:, :, :Tp * kt, :Hp * kh, :Wp * kw].reshape(N, C, Tp, kt, Hp, kh, Wp, kw)
    pooled = xc.mean(axis=(3, 5, 7))                                   # (N,C,Tp,Hp,Wp)
    z = jnp.einsum('oc,nctuv->notuv', conv_w, pooled)
    mean = z.mean(axis=(0, 2, 3, 4), keepdims=True)
    var = ((z - mean) ** 2).mean(axis=(0, 2, 3, 4), keepdims=True)
    g = gamma.reshape(1, -1, 1, 1, 1)
    b = beta.reshape(1, -1, 1, 1, 1)
    y = jnp.maximum((z - mean) / jnp.sqrt(var + eps) * g + b, 0.0)
    At = jnp.asarray(_interp_matrix(T, Tp))
    Ah = jnp.asarray(_interp_matrix(H, Hp))
    Aw = jnp.asarray(_interp_matrix(W, Wp))
    y = jnp.einsum('at,notuv->noauv', At, y)
    y = jnp.einsum('bu,noauv->noabv', Ah, y)
    y = jnp.einsum('cv,noabv->noabc', Aw, y)
    return y


# ---------------------------------- main ------------------------------------

if __name__ == "__main__":
    # module config
    in_channels, div_factor, k_t = 12, 4, 4
    n_inplanes = in_channels // 3                       # = 4 (out channels)

    # small deterministic input, NCTHW
    N, C, T, H, W = 2, in_channels, 8, 16, 16
    key = jax.random.PRNGKey(0)
    kx, kw_, kg, kb = jax.random.split(key, 4)
    x = jax.random.normal(kx, (N, C, T, H, W), dtype=jnp.float32)

    # deterministic parameters (Conv3d weight (Cout, Cin, 1, 1, 1) -> (Cout, Cin))
    conv_w = 0.1 * jax.random.normal(kw_, (n_inplanes, in_channels), dtype=jnp.float32)
    gamma = 1.0 + 0.1 * jax.random.normal(kg, (n_inplanes,), dtype=jnp.float32)
    beta = 0.05 * jax.random.normal(kb, (n_inplanes,), dtype=jnp.float32)

    out = global_context_forward(x, conv_w, gamma, beta,
                                 div_factor=div_factor, k_t=k_t)
    out = jax.block_until_ready(out)

    assert out.shape == (N, n_inplanes, T, H, W), out.shape
    assert bool(jnp.all(jnp.isfinite(out)))

    ref = _reference_forward(x, conv_w, gamma, beta,
                             div_factor=div_factor, k_t=k_t)
    ref = jax.block_until_ready(ref)
    assert bool(jnp.allclose(out, ref, rtol=1e-4, atol=1e-4))

    print("KERNEL_OK")
</pallas_src>

<mosaic_0001>
module attributes {stable_mosaic.version = 11 : i64} {
  func.func @kernel(%arg0: i32, %arg1: memref<192x256xf32, #tpu.memory_space<vmem>>, %arg2: memref<256x16xf32, #tpu.memory_space<vmem>>, %arg3: memref<16x192xf32, #tpu.memory_space<vmem>>, %arg4: memref<16x18xf32, #tpu.memory_space<vmem>>, %arg5: memref<64x16xf32, #tpu.memory_space<vmem>>, %arg6: memref<16x128xf32, #tpu.memory_space<vmem>>, %arg7: memref<64x128xf32, #tpu.memory_space<vmem>>, %arg8: memref<64x16xf32, #tpu.memory_space<vmem>>) attributes {dimension_semantics = [#tpu.dimension_semantics<arbitrary>], iteration_bounds = array<i64: 2>, scalar_prefetch = 0 : i64, scratch_operands = 1 : i64, tpu.core_type = #tpu.core_type<tc>, window_params = [{pipeline_mode = #tpu.pipeline_mode<synchronous>, transform_indices = @transform_0, window_bounds = array<i64: 192, 256>}, {pipeline_mode = #tpu.pipeline_mode<synchronous>, transform_indices = @transform_1, window_bounds = array<i64: 256, 16>}, {pipeline_mode = #tpu.pipeline_mode<synchronous>, transform_indices = @transform_2, window_bounds = array<i64: 16, 192>}, {pipeline_mode = #tpu.pipeline_mode<synchronous>, transform_indices = @transform_3, window_bounds = array<i64: 16, 18>}, {pipeline_mode = #tpu.pipeline_mode<synchronous>, transform_indices = @transform_4, window_bounds = array<i64: 64, 16>}, {transform_indices = @transform_5, window_bounds = array<i64: 16, 128>}, {transform_indices = @transform_6, window_bounds = array<i64: 64, 128>}]} {
    %c0_i32 = arith.constant 0 : i32
    %0 = arith.cmpi eq, %arg0, %c0_i32 : i32
    %1 = arith.extui %0 : i1 to i32
    %c0_i32_0 = arith.constant 0 : i32
    %2 = arith.cmpi ne, %1, %c0_i32_0 : i32
    scf.if %2 {
      %c0_6 = arith.constant 0 : index
      %c0_7 = arith.constant 0 : index
      %7 = vector.load %arg1[%c0_6, %c0_7] : memref<192x256xf32, #tpu.memory_space<vmem>>, vector<192x256xf32>
      %c0_8 = arith.constant 0 : index
      %c0_9 = arith.constant 0 : index
      %8 = vector.load %arg2[%c0_8, %c0_9] : memref<256x16xf32, #tpu.memory_space<vmem>>, vector<256x16xf32>
      %cst_10 = arith.constant dense<0.000000e+00> : vector<192x16xf32>
      %9 = tpu.matmul %7, %8, %cst_10 {dimension_numbers = #tpu.dot_dimension_numbers<[1], [0], [0], [1], [0, 0, 1, 1], [], []>, precision = #tpu.contract_precision<fp32>} : vector<192x256xf32>, vector<256x16xf32>, vector<192x16xf32> -> vector<192x16xf32>
      %c0_11 = arith.constant 0 : index
      %c0_12 = arith.constant 0 : index
      %10 = vector.load %arg3[%c0_11, %c0_12] : memref<16x192xf32, #tpu.memory_space<vmem>>, vector<16x192xf32>
      %cst_13 = arith.constant dense<0.000000e+00> : vector<16x16xf32>
      %11 = tpu.matmul %10, %9, %cst_13 {dimension_numbers = #tpu.dot_dimension_numbers<[1], [0], [0], [1], [0, 0, 1, 1], [], []>, precision = #tpu.contract_precision<fp32>} : vector<16x192xf32>, vector<192x16xf32>, vector<16x16xf32> -> vector<16x16xf32>
      %c0_14 = arith.constant 0 : index
      %c0_15 = arith.constant 0 : index
      %12 = vector.load %arg4[%c0_14, %c0_15] : memref<16x18xf32, #tpu.memory_space<vmem>>, vector<16x18xf32>
      %13 = vector.extract_strided_slice %12 {offsets = [0, 0], sizes = [16, 16], strides = [1, 1]} : vector<16x18xf32> to vector<16x16xf32>
      %14 = vector.extract_strided_slice %12 {offsets = [0, 16], sizes = [16, 1], strides = [1, 1]} : vector<16x18xf32> to vector<16x1xf32>
      %15 = vector.extract_strided_slice %12 {offsets = [0, 17], sizes = [16, 1], strides = [1, 1]} : vector<16x18xf32> to vector<16x1xf32>
      %cst_16 = arith.constant dense<0.000000e+00> : vector<16x16xf32>
      %16 = tpu.matmul %13, %11, %cst_16 {dimension_numbers = #tpu.dot_dimension_numbers<[1], [0], [0], [1], [0, 0, 1, 1], [], []>, precision = #tpu.contract_precision<fp32>} : vector<16x16xf32>, vector<16x16xf32>, vector<16x16xf32> -> vector<16x16xf32>
      %cst_17 = arith.constant dense<0.000000e+00> : vector<16xf32>
      %17 = vector.multi_reduction <add>, %16, %cst_17 [1] : vector<16x16xf32> to vector<16xf32>
      %18 = vector.shape_cast %17 : vector<16xf32> to vector<16x1xf32>
      %cst_18 = arith.constant 1.562500e-02 : f32
      %19 = vector.broadcast %cst_18 : f32 to vector<16x1xf32>
      %20 = arith.mulf %18, %19 : vector<16x1xf32>
      %21 = vector.broadcast %20 : vector<16x1xf32> to vector<16x16xf32>
      %22 = arith.subf %11, %21 : vector<16x16xf32>
      %23 = arith.mulf %22, %22 : vector<16x16xf32>
      %cst_19 = arith.constant dense<0.000000e+00> : vector<16x16xf32>
      %24 = tpu.matmul %13, %23, %cst_19 {dimension_numbers = #tpu.dot_dimension_numbers<[1], [0], [0], [1], [0, 0, 1, 1], [], []>, precision = #tpu.contract_precision<fp32>} : vector<16x16xf32>, vector<16x16xf32>, vector<16x16xf32> -> vector<16x16xf32>
      %cst_20 = arith.constant dense<0.000000e+00> : vector<16xf32>
      %25 = vector.multi_reduction <add>, %24, %cst_20 [1] : vector<16x16xf32> to vector<16xf32>
      %26 = vector.shape_cast %25 : vector<16xf32> to vector<16x1xf32>
      %cst_21 = arith.constant 1.562500e-02 : f32
      %27 = vector.broadcast %cst_21 : f32 to vector<16x1xf32>
      %28 = arith.mulf %26, %27 : vector<16x1xf32>
      %cst_22 = arith.constant 9.99999974E-6 : f32
      %29 = vector.broadcast %cst_22 : f32 to vector<16x1xf32>
      %30 = arith.addf %28, %29 : vector<16x1xf32>
      %31 = math.rsqrt %30 : vector<16x1xf32>
      %32 = arith.mulf %14, %31 : vector<16x1xf32>
      %33 = arith.mulf %20, %32 : vector<16x1xf32>
      %34 = arith.subf %15, %33 : vector<16x1xf32>
      %35 = vector.broadcast %32 : vector<16x1xf32> to vector<16x16xf32>
      %36 = arith.mulf %11, %35 : vector<16x16xf32>
      %37 = vector.broadcast %34 : vector<16x1xf32> to vector<16x16xf32>
      %38 = arith.addf %36, %37 : vector<16x16xf32>
      %cst_23 = arith.constant 0.000000e+00 : f32
      %39 = vector.broadcast %cst_23 : f32 to vector<16x16xf32>
      %40 = arith.maximumf %38, %39 : vector<16x16xf32>
      %c0_24 = arith.constant 0 : index
      %c0_25 = arith.constant 0 : index
      %41 = vector.load %arg5[%c0_24, %c0_25] : memref<64x16xf32, #tpu.memory_space<vmem>>, vector<64x16xf32>
      %cst_26 = arith.constant dense<0.000000e+00> : vector<64x16xf32>
      %42 = tpu.matmul %41, %40, %cst_26 {dimension_numbers = #tpu.dot_dimension_numbers<[1], [0], [0], [1], [0, 0, 1, 1], [], []>, precision = #tpu.contract_precision<fp32>} : vector<64x16xf32>, vector<16x16xf32>, vector<64x16xf32> -> vector<64x16xf32>
      %c0_27 = arith.constant 0 : index
      %c0_28 = arith.constant 0 : index
      %43 = vector.load %arg8[%c0_27, %c0_28] : memref<64x16xf32, #tpu.memory_space<vmem>>, vector<64x16xf32>
      tpu.vector_store %arg8[%c0_27, %c0_28], %42 {strides = array<i32>} : memref<64x16xf32, #tpu.memory_space<vmem>>, vector<64x16xf32>,
    } else {
    }
    %c0 = arith.constant 0 : index
    %c0_1 = arith.constant 0 : index
    %3 = vector.load %arg8[%c0, %c0_1] : memref<64x16xf32, #tpu.memory_space<vmem>>, vector<64x16xf32>
    %c0_2 = arith.constant 0 : index
    %c0_3 = arith.constant 0 : index
    %4 = vector.load %arg6[%c0_2, %c0_3] : memref<16x128xf32, #tpu.memory_space<vmem>>, vector<16x128xf32>
    %cst = arith.constant dense<0.000000e+00> : vector<64x128xf32>
    %5 = tpu.matmul %3, %4, %cst {dimension_numbers = #tpu.dot_dimension_numbers<[1], [0], [0], [1], [0, 0, 1, 1], [], []>, precision = #tpu.contract_precision<fp32>} : vector<64x16xf32>, vector<16x128xf32>, vector<64x128xf32> -> vector<64x128xf32>
    %c0_4 = arith.constant 0 : index
    %c0_5 = arith.constant 0 : index
    %6 = vector.load %arg7[%c0_4, %c0_5] : memref<64x128xf32, #tpu.memory_space<vmem>>, vector<64x128xf32>
    tpu.vector_store %arg7[%c0_4, %c0_5], %5 {strides = array<i32>} : memref<64x128xf32, #tpu.memory_space<vmem>>, vector<64x128xf32>,
    return
  }
  func.func @transform_0(%arg0: i32) -> (i32, i32) {
    %c0_i32 = arith.constant 0 : i32
    %c0_i32_0 = arith.constant 0 : i32
    %c0_i32_1 = arith.constant 0 : i32
    return %c0_i32, %c0_i32_0 : i32, i32
  }
  func.func @transform_1(%arg0: i32) -> (i32, i32) {
    %c0_i32 = arith.constant 0 : i32
    %c0_i32_0 = arith.constant 0 : i32
    %c0_i32_1 = arith.constant 0 : i32
    return %c0_i32, %c0_i32_0 : i32, i32
  }
  func.func @transform_2(%arg0: i32) -> (i32, i32) {
    %c0_i32 = arith.constant 0 : i32
    %c0_i32_0 = arith.constant 0 : i32
    %c0_i32_1 = arith.constant 0 : i32
    return %c0_i32, %c0_i32_0 : i32, i32
  }
  func.func @transform_3(%arg0: i32) -> (i32, i32) {
    %c0_i32 = arith.constant 0 : i32
    %c0_i32_0 = arith.constant 0 : i32
    %c0_i32_1 = arith.constant 0 : i32
    return %c0_i32, %c0_i32_0 : i32, i32
  }
  func.func @transform_4(%arg0: i32) -> (i32, i32) {
    %c0_i32 = arith.constant 0 : i32
    %c0_i32_0 = arith.constant 0 : i32
    %c0_i32_1 = arith.constant 0 : i32
    return %c0_i32, %c0_i32_0 : i32, i32
  }
  func.func @transform_5(%arg0: i32) -> (i32, i32) {
    %c0_i32 = arith.constant 0 : i32
    %c0_i32_0 = arith.constant 0 : i32
    return %c0_i32, %arg0 : i32, i32
  }
  func.func @transform_6(%arg0: i32) -> (i32, i32) {
    %c0_i32 = arith.constant 0 : i32
    %c0_i32_0 = arith.constant 0 : i32
    return %c0_i32, %arg0 : i32, i32
  }
}

</mosaic_0001>

<llo_original>
// kernel: tpu_custom_call.1
$region0: #{tpu_custom_call.1}
  #allocation0 [shape = 'u32[]', space=smem, size = 0x4, offset = 0x4, fixed_abs, tag = 'smem constant byte address 0x4 - core index']
  #allocation1 [shape = 'u32[144,128]{1,0:T(1,128)}', space=vmem, size = 0x12000, scoped, tag = 'internal scratch']
  #allocation2 [shape = 'f32[64,16]{1,0:T(8,128)}', space=vmem, size = 0x8000, scoped, tag = 'scratch operand']
  %s0 = inlined_call_operand.hbm [shape: f32[192,256], index: 0, kind: input, shape index: {}]
  %s1 = inlined_call_operand.vmem [shape: f32[256,16], index: 1, kind: input, shape index: {}]
  %s2 = inlined_call_operand.vmem [shape: f32[16,192], index: 2, kind: input, shape index: {}]
  %s3 = inlined_call_operand.vmem [shape: f32[16,18], index: 3, kind: input, shape index: {}]
  %s4 = inlined_call_operand.vmem [shape: f32[64,16], index: 4, kind: input, shape index: {}]
  %s5 = inlined_call_operand.vmem [shape: f32[16,256], index: 5, kind: input, shape index: {}]
  %s6 = inlined_call_operand.hbm [shape: f32[64,256], index: 6, kind: output, shape index: {}]
  %s7 = sld [smem:[#allocation0]]
  $region103: #{tpu_custom_call.1} parent=0
    _
  %s9 = ssub.s32 1, %s7
  %s10 = scalar_select 0, %s9, %s7
  $region1: #{tpu_custom_call.1} parent=0
    #allocation3 [shape = 'u8[196608]{0}', space=vmem, size = 0x30000, scoped, tag = 'input window, operand 0, single buffered']
    #allocation4 [shape = 's32[2]{0}', space=sflag, size = 0x8, scoped, tag = 'scoped memory for tpu_custom_call.1']
    #allocation5 [shape = 's32[2]{0}', space=sflag, size = 0x8, scoped, tag = 'scoped memory for tpu_custom_call.1']
    #allocation6 [shape = 'u8[16384]{0}', space=vmem, size = 0x4000, scoped, tag = 'input window, operand 5']
    #allocation7 [shape = 'u8[65536]{0}', space=vmem, size = 0x10000, scoped, tag = 'output window, operand 0']
    %11 = vsyncpa [#allocation4], 0
    %12 = vsyncpa [#allocation5], 0
    %s13 = scalar_lea.sflag [#allocation5], 1
    %14 = vsyncpa %s13, 0
    loop: start=0, step=1, limit=4
    $region2: #{tpu_custom_call.1} parent=1 // loop_pre_header
      _
    $region3: #{tpu_custom_call.1} parent=1 // loop_header
      %s16 = sphi 0, %s20
      %p17 = scmp.ge.s32.totalorder %s16, 4
      %s24 = sphi 0, %s24
      %s26 = sphi 0, %s24
      %s27 = sphi 0, %s26
      %s41 = sphi 0, %s27
      %s45 = sphi 0, %s45
      %s47 = sphi 0, %s45
      %s48 = sphi 0, %s47
      %s62 = sphi 0, %s48
      %s66 = sphi 0, %s66
      %s68 = sphi 0, %s66
      %s69 = sphi 0, %s68
      %s83 = sphi 0, %s69
      %s87 = sphi 0, %s87
      %s89 = sphi 0, %s87
      %s90 = sphi 0, %s89
      %s104 = sphi 0, %s90
      %s108 = sphi 0, %s108
      %s110 = sphi 0, %s108
      %s111 = sphi 0, %s110
      %s125 = sphi 0, %s111
      %s131 = sphi 0, %s133
      %s134 = sphi 0, %s131
      %s135 = sphi 0, %s134
      %s151 = sphi 0, %s135
      %s157 = sphi 0, %s159
      %s160 = sphi 0, %s157
      %s161 = sphi 0, %s160
      %s177 = sphi 0, %s161
    $region4: #{tpu_custom_call.1} parent=1 // loop_header_branch
      %19 = sbr.rel (%p17) target = $region8
    $region5: #{tpu_custom_call.1} parent=1 // loop_body
      %s21 = ssub.s32 %s16, 1
      %s22 = ssub.s32 %s16, 2
      %s23 = sadd.s32 %s16, 1
      %s25 = sadd.s32 %s24, 1
      %p28 = scmp.eq.s32.totalorder %s16, 1
      %p29 = scmp.ne.s32.totalorder %s24, %s26
      %p30 = scmp.eq.s32.totalorder %s16, 0
      %p31 = por %p29, %p30
      %p32 = scmp.ne.s32.totalorder %s24, %s26
      %p33 = scmp.eq.s32.totalorder %s21, 1
      %p34 = por %p32, %p33
      %p35 = scmp.ne.s32.totalorder %s26, %s27
      %p36 = scmp.eq.s32.totalorder %s21, 0
      %p37 = por %p35, %p36
      %p38 = scmp.ne.s32.totalorder %s26, %s27
      %p39 = scmp.eq.s32.totalorder %s22, 1
      %p40 = por %p38, %p39
      %p42 = scmp.ne.s32.totalorder %s27, %s41
      %p43 = scmp.eq.s32.totalorder %s22, 0
      %p44 = por %p42, %p43
      %s46 = sadd.s32 %s45, 1
      %p49 = scmp.eq.s32.totalorder %s16, 1
      %p50 = scmp.ne.s32.totalorder %s45, %s47
      %p51 = scmp.eq.s32.totalorder %s16, 0
      %p52 = por %p50, %p51
      %p53 = scmp.ne.s32.totalorder %s45, %s47
      %p54 = scmp.eq.s32.totalorder %s21, 1
      %p55 = por %p53, %p54
      %p56 = scmp.ne.s32.totalorder %s47, %s48
      %p57 = scmp.eq.s32.totalorder %s21, 0
      %p58 = por %p56, %p57
      %p59 = scmp.ne.s32.totalorder %s47, %s48
      %p60 = scmp.eq.s32.totalorder %s22, 1
      %p61 = por %p59, %p60
      %p63 = scmp.ne.s32.totalorder %s48, %s62
      %p64 = scmp.eq.s32.totalorder %s22, 0
      %p65 = por %p63, %p64
      %s67 = sadd.s32 %s66, 1
      %p70 = scmp.eq.s32.totalorder %s16, 1
      %p71 = scmp.ne.s32.totalorder %s66, %s68
      %p72 = scmp.eq.s32.totalorder %s16, 0
      %p73 = por %p71, %p72
      %p74 = scmp.ne.s32.totalorder %s66, %s68
      %p75 = scmp.eq.s32.totalorder %s21, 1
      %p76 = por %p74, %p75
      %p77 = scmp.ne.s32.totalorder %s68, %s69
      %p78 = scmp.eq.s32.totalorder %s21, 0
      %p79 = por %p77, %p78
      %p80 = scmp.ne.s32.totalorder %s68, %s69
      %p81 = scmp.eq.s32.totalorder %s22, 1
      %p82 = por %p80, %p81
      %p84 = scmp.ne.s32.totalorder %s69, %s83
      %p85 = scmp.eq.s32.totalorder %s22, 0
      %p86 = por %p84, %p85
      %s88 = sadd.s32 %s87, 1
      %p91 = scmp.eq.s32.totalorder %s16, 1
      %p92 = scmp.ne.s32.totalorder %s87, %s89
      %p93 = scmp.eq.s32.totalorder %s16, 0
      %p94 = por %p92, %p93
      %p95 = scmp.ne.s32.totalorder %s87, %s89
      %p96 = scmp.eq.s32.totalorder %s21, 1
      %p97 = por %p95, %p96
      %p98 = scmp.ne.s32.totalorder %s89, %s90
      %p99 = scmp.eq.s32.totalorder %s21, 0
      %p100 = por %p98, %p99
      %p101 = scmp.ne.s32.totalorder %s89, %s90
      %p102 = scmp.eq.s32.totalorder %s22, 1
      %p103 = por %p101, %p102
      %p105 = scmp.ne.s32.totalorder %s90, %s104
      %p106 = scmp.eq.s32.totalorder %s22, 0
      %p107 = por %p105, %p106
      %s109 = sadd.s32 %s108, 1
      %p112 = scmp.eq.s32.totalorder %s16, 1
      %p113 = scmp.ne.s32.totalorder %s108, %s110
      %p114 = scmp.eq.s32.totalorder %s16, 0
      %p115 = por %p113, %p114
      %p116 = scmp.ne.s32.totalorder %s108, %s110
      %p117 = scmp.eq.s32.totalorder %s21, 1
      %p118 = por %p116, %p117
      %p119 = scmp.ne.s32.totalorder %s110, %s111
      %p120 = scmp.eq.s32.totalorder %s21, 0
      %p121 = por %p119, %p120
      %p122 = scmp.ne.s32.totalorder %s110, %s111
      %p123 = scmp.eq.s32.totalorder %s22, 1
      %p124 = por %p122, %p123
      %p126 = scmp.ne.s32.totalorder %s111, %s125
      %p127 = scmp.eq.s32.totalorder %s22, 0
      %p128 = por %p126, %p127
      %s129 = ssub.s32 %s16, %s23
      %p130 = scmp.eq.s32.totalorder %s129, 0
      %s132 = sadd.s32 %s131, 1
      %s133 = scalar_select %p130, %s131, %s132
      %p136 = pneg %p130
      %p137 = scmp.eq.s32.totalorder %s16, 1
      %p138 = por %p136, %p137
      %p139 = scmp.ne.s32.totalorder %s131, %s134
      %p140 = scmp.eq.s32.totalorder %s16, 0
      %p141 = por %p139, %p140
      %p142 = scmp.ne.s32.totalorder %s131, %s134
      %p143 = scmp.eq.s32.totalorder %s21, 1
      %p144 = por %p142, %p143
      %p145 = scmp.ne.s32.totalorder %s134, %s135
      %p146 = scmp.eq.s32.totalorder %s21, 0
      %p147 = por %p145, %p146
      %p148 = scmp.ne.s32.totalorder %s134, %s135
      %p149 = scmp.eq.s32.totalorder %s22, 1
      %p150 = por %p148, %p149
      %p152 = scmp.ne.s32.totalorder %s135, %s151
      %p153 = scmp.eq.s32.totalorder %s22, 0
      %p154 = por %p152, %p153
      %s155 = ssub.s32 %s16, %s23
      %p156 = scmp.eq.s32.totalorder %s155, 0
      %s158 = sadd.s32 %s157, 1
      %s159 = scalar_select %p156, %s157, %s158
      %p162 = pneg %p156
      %p163 = scmp.eq.s32.totalorder %s16, 1
      %p164 = por %p162, %p163
      %p165 = scmp.ne.s32.totalorder %s157, %s160
      %p166 = scmp.eq.s32.totalorder %s16, 0
      %p167 = por %p165, %p166
      %p168 = scmp.ne.s32.totalorder %s157, %s160
      %p169 = scmp.eq.s32.totalorder %s21, 1
      %p170 = por %p168, %p169
      %p171 = scmp.ne.s32.totalorder %s160, %s161
      %p172 = scmp.eq.s32.totalorder %s21, 0
      %p173 = por %p171, %p172
      %p174 = scmp.ne.s32.totalorder %s160, %s161
      %p175 = scmp.eq.s32.totalorder %s22, 1
      %p176 = por %p174, %p175
      %p178 = scmp.ne.s32.totalorder %s161, %s177
      %p179 = scmp.eq.s32.totalorder %s22, 0
      %p180 = por %p178, %p179
      %p181 = scmp.le.s32.totalorder 1, %s16
      %p182 = scmp.lt.s32.totalorder %s16, 3
      %p183 = pnand %p181, %p182
      %p184 = pneg %p183
      // Predicated region
      $region9: #{tpu_custom_call.1} parent=5 // pred_check
        _
      $region10: #{tpu_custom_call.1} parent=5 // pred_check_branch
        %186 = sbr.rel (%p183) target = $region12
      $region11: #{tpu_custom_call.1} parent=5 // pred_region
        %s187 = ssub.s32 %s16, 1
        // Predicated region
        $region13: #{tpu_custom_call.1} parent=11 // pred_check
          %p188 = pneg %p37
        $region14: #{tpu_custom_call.1} parent=11 // pred_check_branch
          %190 = sbr.rel (%p188) target = $region16
        $region15: #{tpu_custom_call.1} parent=11 // pred_region
          %s192 = ssub.s32 6144, 6144
          %193 = vsyncadd [#allocation4], %s192
          %s194 = sshll.u32 [#allocation3], 4
          %s195 = int_to_ptr.vmem [resolvable:$true] %s194
          %200 = dma.hbm_to_vmem [thread:$0]  %s0, 6144, %s195, [#allocation4], 256, 256, 16
        $region16: #{tpu_custom_call.1} parent=11 // pred_fallthru
          _
        // Predicated region
        $region17: #{tpu_custom_call.1} parent=11 // pred_check
          %p201 = pneg %p58
        $region18: #{tpu_custom_call.1} parent=11 // pred_check_branch
          %203 = sbr.rel (%p201) target = $region20
        $region19: #{tpu_custom_call.1} parent=11 // pred_region
          _
        $region20: #{tpu_custom_call.1} parent=11 // pred_fallthru
          _
        // Predicated region
        $region21: #{tpu_custom_call.1} parent=11 // pred_check
          %p204 = pneg %p79
        $region22: #{tpu_custom_call.1} parent=11 // pred_check_branch
          %206 = sbr.rel (%p204) target = $region24
        $region23: #{tpu_custom_call.1} parent=11 // pred_region
          _
        $region24: #{tpu_custom_call.1} parent=11 // pred_fallthru
          _
        // Predicated region
        $region25: #{tpu_custom_call.1} parent=11 // pred_check
          %p207 = pneg %p100
        $region26: #{tpu_custom_call.1} parent=11 // pred_check_branch
          %209 = sbr.rel (%p207) target = $region28
        $region27: #{tpu_custom_call.1} parent=11 // pred_region
          _
        $region28: #{tpu_custom_call.1} parent=11 // pred_fallthru
          _
        // Predicated region
        $region29: #{tpu_custom_call.1} parent=11 // pred_check
          %p210 = pneg %p121
        $region30: #{tpu_custom_call.1} parent=11 // pred_check_branch
          %212 = sbr.rel (%p210) target = $region32
        $region31: #{tpu_custom_call.1} parent=11 // pred_region
          _
        $region32: #{tpu_custom_call.1} parent=11 // pred_fallthru
          _
      $region12: #{tpu_custom_call.1} parent=5 // pred_fallthru
        _
      %p213 = scmp.lt.s32.totalorder %s16, 2
      // Predicated region
      $region33: #{tpu_custom_call.1} parent=5 // pred_check
        %p214 = pneg %p213
      $region34: #{tpu_custom_call.1} parent=5 // pred_check_branch
        %216 = sbr.rel (%p214) target = $region36
      $region35: #{tpu_custom_call.1} parent=5 // pred_region
        // Predicated region
        $region37: #{tpu_custom_call.1} parent=35 // pred_check
          %p217 = pneg %p141
        $region38: #{tpu_custom_call.1} parent=35 // pred_check_branch
          %219 = sbr.rel (%p217) target = $region40
        $region39: #{tpu_custom_call.1} parent=35 // pred_region
          %s220 = sand.u32 %s131, 1
          %s221 = sand.u32 %s131, 1
          %s222 = smul.addr %s221, 16
          %s223 = scalar_lea.vmem [#allocation6], %s222
          %s224 = smul.addr %s16, 8
          %s225 = scalar_lea.vmem %s5, %s224
          // Predicated region
          $region41: #{tpu_custom_call.1} parent=39 // pred_check
            _
          $region42: #{tpu_custom_call.1} parent=39 // pred_check_branch
            %227 = sbr.rel (0) target = $region44
          $region43: #{tpu_custom_call.1} parent=39 // pred_region
            // Predicated region
            $region45: #{tpu_custom_call.1} parent=43 // pred_check
              _
            $region46: #{tpu_custom_call.1} parent=43 // pred_check_branch
              %229 = sbr.rel (0) target = $region48
            $region47: #{tpu_custom_call.1} parent=43 // pred_region
              // Predicated region
              $region60: #{tpu_custom_call.1} parent=47 // pred_check
                _
              $region61: #{tpu_custom_call.1} parent=47 // pred_check_branch
                %246 = sbr.rel (0) target = $region63
              $region62: #{tpu_custom_call.1} parent=47 // pred_region
                loop: start=0, step=1, limit=1
                $region64: #{tpu_custom_call.1} parent=62 // loop_pre_header
                  _
                $region65: #{tpu_custom_call.1} parent=62 // loop_header
                  %s248 = sphi 0, %s252
                  %p249 = scmp.ge.s32.totalorder %s248, 1
                  %s253 = sphi %s225, %s225
                  %s254 = sphi %s223, %s223
                $region66: #{tpu_custom_call.1} parent=62 // loop_header_branch
                  %251 = sbr.rel (%p249) target = $region70
                $region67: #{tpu_custom_call.1} parent=62 // loop_body
                  %v255 = vld [vmem:[%s253] sm:$0xff]
                  %256 = vst [vmem:[%s254] sm:$0xff] %v255
                  %v257 = vld [vmem:[%s253 + $0x10] sm:$0xff]
                  %258 = vst [vmem:[%s254 + $0x8] sm:$0xff] %v257
                $region68: #{tpu_custom_call.1} parent=62 // loop_footer
                  %s252 = sadd.s32 1, %s248
                $region69: #{tpu_custom_call.1} parent=62 // loop_footer_branch
                  %247 = sbr.rel target = $region65
                $region70: #{tpu_custom_call.1} parent=62 // loop_exit
                  _
              $region63: #{tpu_custom_call.1} parent=47 // pred_fallthru
                _
              // Predicated region
              $region71: #{tpu_custom_call.1} parent=47 // pred_check
                _
              $region72: #{tpu_custom_call.1} parent=47 // pred_check_branch
                %260 = sbr.rel target = $region74
              $region73: #{tpu_custom_call.1} parent=47 // pred_region
                _
              $region74: #{tpu_custom_call.1} parent=47 // pred_fallthru
                _
            $region48: #{tpu_custom_call.1} parent=43 // pred_fallthru
              _
            // Predicated region
            $region49: #{tpu_custom_call.1} parent=43 // pred_check
              _
            $region50: #{tpu_custom_call.1} parent=43 // pred_check_branch
              %231 = sbr.rel target = $region52
            $region51: #{tpu_custom_call.1} parent=43 // pred_region
              loop: start=0, step=1, limit=1
              $region53: #{tpu_custom_call.1} parent=51 // loop_pre_header
                _
              $region54: #{tpu_custom_call.1} parent=51 // loop_header
                %s234 = sphi 0, %s238
                %p235 = scmp.ge.s32.totalorder %s234, 1
                %s239 = sphi %s225, %s225
                %s240 = sphi %s223, %s223
              $region55: #{tpu_custom_call.1} parent=51 // loop_header_branch
                %237 = sbr.rel (%p235) target = $region59
              $region56: #{tpu_custom_call.1} parent=51 // loop_body
                %v241 = vld [vmem:[%s239] sm:$0xff]
                %242 = vst [vmem:[%s240] sm:$0xff] %v241
                %v243 = vld [vmem:[%s239 + $0x10] sm:$0xff]
                %244 = vst [vmem:[%s240 + $0x8] sm:$0xff] %v243
              $region57: #{tpu_custom_call.1} parent=51 // loop_footer
                %s238 = sadd.s32 1, %s234
              $region58: #{tpu_custom_call.1} parent=51 // loop_footer_branch
                %233 = sbr.rel target = $region54
              $region59: #{tpu_custom_call.1} parent=51 // loop_exit
                _
            $region52: #{tpu_custom_call.1} parent=43 // pred_fallthru
              _
          $region44: #{tpu_custom_call.1} parent=39 // pred_fallthru
            _
          %261 = vnop
        $region40: #{tpu_custom_call.1} parent=35 // pred_fallthru
          _
      $region36: #{tpu_custom_call.1} parent=5 // pred_fallthru
        _
      %p262 = scmp.le.s32.totalorder 1, %s16
      %p263 = scmp.lt.s32.totalorder %s16, 3
      %p264 = pnand %p262, %p263
      %p265 = pneg %p264
      // Predicated region
      $region75: #{tpu_custom_call.1} parent=5 // pred_check
        _
      $region76: #{tpu_custom_call.1} parent=5 // pred_check_branch
        %267 = sbr.rel (%p264) target = $region78
      $region77: #{tpu_custom_call.1} parent=5 // pred_region
        %s268 = ssub.s32 %s16, 1
        // Predicated region
        $region79: #{tpu_custom_call.1} parent=77 // pred_check
          %p269 = pneg %p37
        $region80: #{tpu_custom_call.1} parent=77 // pred_check_branch
          %271 = sbr.rel (%p269) target = $region82
        $region81: #{tpu_custom_call.1} parent=77 // pred_region
          %272 = dma.done [#allocation4], 6144
        $region82: #{tpu_custom_call.1} parent=77 // pred_fallthru
          _
        %s273 = sand.u32 %s134, 1
        %s274 = sand.u32 %s134, 1
        %s275 = smul.addr %s274, 16
        %s276 = scalar_lea.vmem [#allocation6], %s275
        // Predicated region
        $region83: #{tpu_custom_call.1} parent=77 // pred_check
          %p277 = pneg %p147
        $region84: #{tpu_custom_call.1} parent=77 // pred_check_branch
          %279 = sbr.rel (%p277) target = $region86
        $region85: #{tpu_custom_call.1} parent=77 // pred_region
          _
        $region86: #{tpu_custom_call.1} parent=77 // pred_fallthru
          _
        %p280 = pneg %p37
        %p281 = pneg %p34
        %p282 = pneg %p58
        %p283 = pneg %p55
        %p284 = pneg %p79
        %p285 = pneg %p76
        %p286 = pneg %p100
        %p287 = pneg %p97
        %p288 = pneg %p121
        %p289 = pneg %p118
        %s290 = sand.u32 %s134, 1
        %s291 = sand.u32 %s134, 1
        %s292 = smul.addr %s291, 16
        %s293 = scalar_lea.vmem [#allocation6], %s292
        %p294 = pneg %p147
        %p295 = pneg %p144
        %p296 = pneg %p173
        %p297 = pneg %p170
        %s298 = sand.u32 %s160, 1
        %s299 = scalar_lea.sflag [#allocation5], %s298
        %s300 = sand.u32 %s160, 1
        %s301 = smul.addr %s300, 64
        %s302 = scalar_lea.vmem [#allocation7], %s301
        %p303 = scmp.eq.s32.totalorder %s21, 0
        // Predicated region
        $region87: #{tpu_custom_call.1} parent=77 // pred_check
          %p304 = pneg %p303
        $region88: #{tpu_custom_call.1} parent=77 // pred_check_branch
          %306 = sbr.rel (%p304) target = $region90
        $region89: #{tpu_custom_call.1} parent=77 // pred_region
          %v307 = vld [vmem:[#allocation3] sm:$0xff]
          %v308 = vld [vmem:[#allocation3 + $0x8] sm:$0xff]
          %v309 = vld [vmem:[#allocation3 + $0x10] sm:$0xff]
          %v310 = vld [vmem:[#allocation3 + $0x18] sm:$0xff]
          %v311 = vld [vmem:[#allocation3 + $0x20] sm:$0xff]
          %v312 = vld [vmem:[#allocation3 + $0x28] sm:$0xff]
          %v313 = vld [vmem:[#allocation3 + $0x30] sm:$0xff]
          %v314 = vld [vmem:[#allocation3 + $0x38] sm:$0xff]
          %v315 = vld [vmem:[#allocation3 + $0x40] sm:$0xff]
          %v316 = vld [vmem:[#allocation3 + $0x48] sm:$0xff]
          %v317 = vld [vmem:[#allocation3 + $0x50] sm:$0xff]
          %v318 = vld [vmem:[#allocation3 + $0x58] sm:$0xff]
          %v319 = vld [vmem:[#allocation3 + $0x60] sm:$0xff]
          %v320 = vld [vmem:[#allocation3 + $0x68] sm:$0xff]
          %v321 = vld [vmem:[#allocation3 + $0x70] sm:$0xff]
          %v322 = vld [vmem:[#allocation3 + $0x78] sm:$0xff]
          %v323 = vld [vmem:[#allocation3 + $0x80] sm:$0xff]
          %v324 = vld [vmem:[#allocation3 + $0x88] sm:$0xff]
          %v325 = vld [vmem:[#allocation3 + $0x90] sm:$0xff]
          %v326 = vld [vmem:[#allocation3 + $0x98] sm:$0xff]
          %v327 = vld [vmem:[#allocation3 + $0xa0] sm:$0xff]
          %v328 = vld [vmem:[#allocation3 + $0xa8] sm:$0xff]
          %v329 = vld [vmem:[#allocation3 + $0xb0] sm:$0xff]
          %v330 = vld [vmem:[#allocation3 + $0xb8] sm:$0xff]
          %v331 = vld [vmem:[#allocation3 + $0xc0] sm:$0xff]
          %v332 = vld [vmem:[#allocation3 + $0xc8] sm:$0xff]
          %v333 = vld [vmem:[#allocation3 + $0xd0] sm:$0xff]
          %v334 = vld [vmem:[#allocation3 + $0xd8] sm:$0xff]
          %v335 = vld [vmem:[#allocation3 + $0xe0] sm:$0xff]
          %v336 = vld [vmem:[#allocation3 + $0xe8] sm:$0xff]
          %v337 = vld [vmem:[#allocation3 + $0xf0] sm:$0xff]
          %v338 = vld [vmem:[#allocation3 + $0xf8] sm:$0xff]
          %v339 = vld [vmem:[#allocation3 + $0x100] sm:$0xff]
          %v340 = vld [vmem:[#allocation3 + $0x108] sm:$0xff]
          %v341 = vld [vmem:[#allocation3 + $0x110] sm:$0xff]
          %v342 = vld [vmem:[#allocation3 + $0x118] sm:$0xff]
          %v343 = vld [vmem:[#allocation3 + $0x120] sm:$0xff]
          %v344 = vld [vmem:[#allocation3 + $0x128] sm:$0xff]
          %v345 = vld [vmem:[#allocation3 + $0x130] sm:$0xff]
          %v346 = vld [vmem:[#allocation3 + $0x138] sm:$0xff]
          %v347 = vld [vmem:[#allocation3 + $0x140] sm:$0xff]
          %v348 = vld [vmem:[#allocation3 + $0x148] sm:$0xff]
          %v349 = vld [vmem:[#allocation3 + $0x150] sm:$0xff]
          %v350 = vld [vmem:[#allocation3 + $0x158] sm:$0xff]
          %v351 = vld [vmem:[#allocation3 + $0x160] sm:$0xff]
          %v352 = vld [vmem:[#allocation3 + $0x168] sm:$0xff]
          %v353 = vld [vmem:[#allocation3 + $0x170] sm:$0xff]
          %v354 = vld [vmem:[#allocation3 + $0x178] sm:$0xff]
          %v355 = vld [vmem:[%s1] sm:$0xff]
          %v356 = vld [vmem:[%s1 + $0x8] sm:$0xff]
          %v357 = vld [vmem:[%s1 + $0x10] sm:$0xff]
          %v358 = vld [vmem:[%s1 + $0x18] sm:$0xff]
          %v359 = vld [vmem:[%s1 + $0x20] sm:$0xff]
          %v360 = vld [vmem:[%s1 + $0x28] sm:$0xff]
          %v361 = vld [vmem:[%s1 + $0x30] sm:$0xff]
          %v362 = vld [vmem:[%s1 + $0x38] sm:$0xff]
          %v363 = vld [vmem:[%s1 + $0x40] sm:$0xff]
          %v364 = vld [vmem:[%s1 + $0x48] sm:$0xff]
          %v365 = vld [vmem:[%s1 + $0x50] sm:$0xff]
          %v366 = vld [vmem:[%s1 + $0x58] sm:$0xff]
          %v367 = vld [vmem:[%s1 + $0x60] sm:$0xff]
          %v368 = vld [vmem:[%s1 + $0x68] sm:$0xff]
          %v369 = vld [vmem:[%s1 + $0x70] sm:$0xff]
          %v370 = vld [vmem:[%s1 + $0x78] sm:$0xff]
          %v371 = vld [vmem:[%s1 + $0x80] sm:$0xff]
          %v372 = vld [vmem:[%s1 + $0x88] sm:$0xff]
          %v373 = vld [vmem:[%s1 + $0x90] sm:$0xff]
          %v374 = vld [vmem:[%s1 + $0x98] sm:$0xff]
          %v375 = vld [vmem:[%s1 + $0xa0] sm:$0xff]
          %v376 = vld [vmem:[%s1 + $0xa8] sm:$0xff]
          %v377 = vld [vmem:[%s1 + $0xb0] sm:$0xff]
          %v378 = vld [vmem:[%s1 + $0xb8] sm:$0xff]
          %v379 = vld [vmem:[%s1 + $0xc0] sm:$0xff]
          %v380 = vld [vmem:[%s1 + $0xc8] sm:$0xff]
          %v381 = vld [vmem:[%s1 + $0xd0] sm:$0xff]
          %v382 = vld [vmem:[%s1 + $0xd8] sm:$0xff]
          %v383 = vld [vmem:[%s1 + $0xe0] sm:$0xff]
          %v384 = vld [vmem:[%s1 + $0xe8] sm:$0xff]
          %v385 = vld [vmem:[%s1 + $0xf0] sm:$0xff]
          %v386 = vld [vmem:[%s1 + $0xf8] sm:$0xff]
          %387 = vmatprep.subr.mxu0 0.0
          %v388 = vand.u32 %v355, 4294901760
          %389 = vmatpush1.msra.mxu0 %v388
          %390 = vmatprep.subr.mxu0 0.0
          %v391 = vand.u32 %v356, 4294901760
          %392 = vmatpush1.msra.mxu0 %v391
          %393 = vmatprep.subr.mxu0 0.0
          %v394 = vand.u32 %v357, 4294901760
          %395 = vmatpush1.msra.mxu0 %v394
          %396 = vmatprep.subr.mxu0 0.0
          %v397 = vand.u32 %v358, 4294901760
          %398 = vmatpush1.msra.mxu0 %v397
          %399 = vmatprep.subr.mxu0 0.0
          %v400 = vand.u32 %v359, 4294901760
          %401 = vmatpush1.msra.mxu0 %v400
          %402 = vmatprep.subr.mxu0 0.0
          %v403 = vand.u32 %v360, 4294901760
          %404 = vmatpush1.msra.mxu0 %v403
          %405 = vmatprep.subr.mxu0 0.0
          %v406 = vand.u32 %v361, 4294901760
          %407 = vmatpush1.msra.mxu0 %v406
          %408 = vmatprep.subr.mxu0 0.0
          %v409 = vand.u32 %v362, 4294901760
          %410 = vmatpush1.msra.mxu0 %v409
          %411 = vmatprep.subr.mxu0 0.0
          %v412 = vand.u32 %v363, 4294901760
          %413 = vmatpush1.msra.mxu0 %v412
          %414 = vmatprep.subr.mxu0 0.0
          %v415 = vand.u32 %v364, 4294901760
          %416 = vmatpush1.msra.mxu0 %v415
          %417 = vmatprep.subr.mxu0 0.0
          %v418 = vand.u32 %v365, 4294901760
          %419 = vmatpush1.msra.mxu0 %v418
          %420 = vmatprep.subr.mxu0 0.0
          %v421 = vand.u32 %v366, 4294901760
          %422 = vmatpush1.msra.mxu0 %v421
          %423 = vmatprep.subr.mxu0 0.0
          %v424 = vand.u32 %v367, 4294901760
          %425 = vmatpush1.msra.mxu0 %v424
          %426 = vmatprep.subr.mxu0 0.0
          %v427 = vand.u32 %v368, 4294901760
          %428 = vmatpush1.msra.mxu0 %v427
          %429 = vmatprep.subr.mxu0 0.0
          %v430 = vand.u32 %v369, 4294901760
          %431 = vmatpush1.msra.mxu0 %v430
          %432 = vmatprep.subr.mxu0 0.0
          %v433 = vand.u32 %v370, 4294901760
          %434 = vmatpush1.msra.mxu0 %v433
          %435 = vmatprep.subr.mxu0 0.0
          %v436 = vand.u32 %v371, 4294901760
          %437 = vmatpush1.msra.mxu0 %v436
          %438 = vmatprep.subr.mxu0 0.0
          %v439 = vand.u32 %v372, 4294901760
          %440 = vmatpush1.msra.mxu0 %v439
          %441 = vmatprep.subr.mxu0 0.0
          %v442 = vand.u32 %v373, 4294901760
          %443 = vmatpush1.msra.mxu0 %v442
          %444 = vmatprep.subr.mxu0 0.0
          %v445 = vand.u32 %v374, 4294901760
          %446 = vmatpush1.msra.mxu0 %v445
          %447 = vmatprep.subr.mxu0 0.0
          %v448 = vand.u32 %v375, 4294901760
          %449 = vmatpush1.msra.mxu0 %v448
          %450 = vmatprep.subr.mxu0 0.0
          %v451 = vand.u32 %v376, 4294901760
          %452 = vmatpush1.msra.mxu0 %v451
          %453 = vmatprep.subr.mxu0 0.0
          %v454 = vand.u32 %v377, 4294901760
          %455 = vmatpush1.msra.mxu0 %v454
          %456 = vmatprep.subr.mxu0 0.0
          %v457 = vand.u32 %v378, 4294901760
          %458 = vmatpush1.msra.mxu0 %v457
          %459 = vmatprep.subr.mxu0 0.0
          %v460 = vand.u32 %v379, 4294901760
          %461 = vmatpush1.msra.mxu0 %v460
          %462 = vmatprep.subr.mxu0 0.0
          %v463 = vand.u32 %v380, 4294901760
          %464 = vmatpush1.msra.mxu0 %v463
          %465 = vmatprep.subr.mxu0 0.0
          %v466 = vand.u32 %v381, 4294901760
          %467 = vmatpush1.msra.mxu0 %v466
          %468 = vmatprep.subr.mxu0 0.0
          %v469 = vand.u32 %v382, 4294901760
          %470 = vmatpush1.msra.mxu0 %v469
          %471 = vmatprep.subr.mxu0 0.0
          %v472 = vand.u32 %v383, 4294901760
          %473 = vmatpush1.msra.mxu0 %v472
          %474 = vmatprep.subr.mxu0 0.0
          %v475 = vand.u32 %v384, 4294901760
          %476 = vmatpush1.msra.mxu0 %v475
          %477 = vmatprep.subr.mxu0 0.0
          %v478 = vand.u32 %v385, 4294901760
          %479 = vmatpush1.msra.mxu0 %v478
          %480 = vmatprep.subr.mxu0 0.0
          %v481 = vand.u32 %v386, 4294901760
          %482 = vmatpush1.msra.mxu0 %v481
          %v483 = vand.u32 %v308, 4294901760
          %v484 = vsub.f32 %v308, %v483
          %v485 = vand.u32 %v484, 4294901760
          %v486 = vsub.f32 %v484, %v485
          %v487 = vand.u32 %v486, 4294901760
          %488 = vmatprep.mubr.f32.mxu0 %v487
          %v489 = vand.u32 %v307, 4294901760
          %v490 = vsub.f32 %v307, %v489
          %v491 = vand.u32 %v490, 4294901760
          %v492 = vsub.f32 %v490, %v491
          %v493 = vand.u32 %v492, 4294901760
          %494 = vmatmul.mubr.f32.gmra.mrb[0].mxu0 %v493
          %v495 = vpop.f32.mrb[0].mxu0
          %v496 = vadd.f32 0.0, %v495
          %v497 = vpop.f32.mrb[0].mxu0
          %v498 = vand.u32 %v310, 4294901760
          %v499 = vsub.f32 %v310, %v498
          %v500 = vand.u32 %v499, 4294901760
          %v501 = vsub.f32 %v499, %v500
          %v502 = vand.u32 %v501, 4294901760
          %503 = vmatprep.mubr.f32.mxu0 %v502
          %v504 = vand.u32 %v309, 4294901760
          %v505 = vsub.f32 %v309, %v504
          %v506 = vand.u32 %v505, 4294901760
          %v507 = vsub.f32 %v505, %v506
          %v508 = vand.u32 %v507, 4294901760
          %509 = vmatmul.mubr.f32.gmra.mrb[0].mxu0 %v508
          %v510 = vpop.f32.mrb[0].mxu0
          %v511 = vadd.f32 0.0, %v510
          %v512 = vpop.f32.mrb[0].mxu0
          %v513 = vand.u32 %v312, 4294901760
          %v514 = vsub.f32 %v312, %v513
          %v515 = vand.u32 %v514, 4294901760
          %v516 = vsub.f32 %v514, %v515
          %v517 = vand.u32 %v516, 4294901760
          %518 = vmatprep.mubr.f32.mxu0 %v517
          %v519 = vand.u32 %v311, 4294901760
          %v520 = vsub.f32 %v311, %v519
          %v521 = vand.u32 %v520, 4294901760
          %v522 = vsub.f32 %v520, %v521
          %v523 = vand.u32 %v522, 4294901760
          %524 = vmatmul.mubr.f32.gmra.mrb[0].mxu0 %v523
          %v525 = vpop.f32.mrb[0].mxu0
          %v526 = vadd.f32 0.0, %v525
          %v527 = vpop.f32.mrb[0].mxu0
          %v528 = vand.u32 %v314, 4294901760
          %v529 = vsub.f32 %v314, %v528
          %v530 = vand.u32 %v529, 4294901760
          %v531 = vsub.f32 %v529, %v530
          %v532 = vand.u32 %v531, 4294901760
          %533 = vmatprep.mubr.f32.mxu0 %v532
          %v534 = vand.u32 %v313, 4294901760
          %v535 = vsub.f32 %v313, %v534
          %v536 = vand.u32 %v535, 4294901760
          %v537 = vsub.f32 %v535, %v536
          %v538 = vand.u32 %v537, 4294901760
          %539 = vmatmul.mubr.f32.gmra.mrb[0].mxu0 %v538
          %v540 = vpop.f32.mrb[0].mxu0
          %v541 = vadd.f32 0.0, %v540
          %v542 = vpop.f32.mrb[0].mxu0
          %v543 = vand.u32 %v316, 4294901760
          %v544 = vsub.f32 %v316, %v543
          %v545 = vand.u32 %v544, 4294901760
          %v546 = vsub.f32 %v544, %v545
          %v547 = vand.u32 %v546, 4294901760
          %548 = vmatprep.mubr.f32.mxu0 %v547
          %v549 = vand.u32 %v315, 4294901760
          %v550 = vsub.f32 %v315, %v549
          %v551 = vand.u32 %v550, 4294901760
          %v552 = vsub.f32 %v550, %v551
          %v553 = vand.u32 %v552, 4294901760
          %554 = vmatmul.mubr.f32.gmra.mrb[0].mxu0 %v553
          %v555 = vpop.f32.mrb[0].mxu0
          %v556 = vadd.f32 0.0, %v555
          %v557 = vpop.f32.mrb[0].mxu0
          %v558 = vand.u32 %v318, 4294901760
          %v559 = vsub.f32 %v318, %v558
          %v560 = vand.u32 %v559, 4294901760
          %v561 = vsub.f32 %v559, %v560
          %v562 = vand.u32 %v561, 4294901760
          %563 = vmatprep.mubr.f32.mxu0 %v562
          %v564 = vand.u32 %v317, 4294901760
          %v565 = vsub.f32 %v317, %v564
          %v566 = vand.u32 %v565, 4294901760
          %v567 = vsub.f32 %v565, %v566
          %v568 = vand.u32 %v567, 4294901760
          %569 = vmatmul.mubr.f32.gmra.mrb[0].mxu0 %v568
          %v570 = vpop.f32.mrb[0].mxu0
          %v571 = vadd.f32 0.0, %v570
          %v572 = vpop.f32.mrb[0].mxu0
          %v573 = vand.u32 %v320, 4294901760
          %v574 = vsub.f32 %v320, %v573
          %v575 = vand.u32 %v574, 4294901760
          %v576 = vsub.f32 %v574, %v575
          %v577 = vand.u32 %v576, 4294901760
          %578 = vmatprep.mubr.f32.mxu0 %v577
          %v579 = vand.u32 %v319, 4294901760
          %v580 = vsub.f32 %v319, %v579
          %v581 = vand.u32 %v580, 4294901760
          %v582 = vsub.f32 %v580, %v581
          %v583 = vand.u32 %v582, 4294901760
          %584 = vmatmul.mubr.f32.gmra.mrb[0].mxu0 %v583
          %v585 = vpop.f32.mrb[0].mxu0
          %v586 = vadd.f32 0.0, %v585
          %v587 = vpop.f32.mrb[0].mxu0
          %v588 = vand.u32 %v322, 4294901760
          %v589 = vsub.f32 %v322, %v588
          %v590 = vand.u32 %v589, 4294901760
          %v591 = vsub.f32 %v589, %v590
          %v592 = vand.u32 %v591, 4294901760
          %593 = vmatprep.mubr.f32.mxu0 %v592
          %v594 = vand.u32 %v321, 4294901760
          %v595 = vsub.f32 %v321, %v594
          %v596 = vand.u32 %v595, 4294901760
          %v597 = vsub.f32 %v595, %v596
          %v598 = vand.u32 %v597, 4294901760
          %599 = vmatmul.mubr.f32.gmra.mrb[0].mxu0 %v598
          %v600 = vpop.f32.mrb[0].mxu0
          %v601 = vadd.f32 0.0, %v600
          %v602 = vpop.f32.mrb[0].mxu0
          %v603 = vand.u32 %v324, 4294901760
          %v604 = vsub.f32 %v324, %v603
          %v605 = vand.u32 %v604, 4294901760
          %v606 = vsub.f32 %v604, %v605
          %v607 = vand.u32 %v606, 4294901760
          %608 = vmatprep.mubr.f32.mxu0 %v607
          %v609 = vand.u32 %v323, 4294901760
          %v610 = vsub.f32 %v323, %v609
          %v611 = vand.u32 %v610, 4294901760
          %v612 = vsub.f32 %v610, %v611
          %v613 = vand.u32 %v612, 4294901760
          %614 = vmatmul.mubr.f32.gmra.mrb[0].mxu0 %v613
          %v615 = vpop.f32.mrb[0].mxu0
          %v616 = vadd.f32 0.0, %v615
          %v617 = vpop.f32.mrb[0].mxu0
          %v618 = vand.u32 %v326, 4294901760
          %v619 = vsub.f32 %v326, %v618
          %v620 = vand.u32 %v619, 4294901760
          %v621 = vsub.f32 %v619, %v620
          %v622 = vand.u32 %v621, 4294901760
          %623 = vmatprep.mubr.f32.mxu0 %v622
          %v624 = vand.u32 %v325, 4294901760
          %v625 = vsub.f32 %v325, %v624
          %v626 = vand.u32 %v625, 4294901760
          %v627 = vsub.f32 %v625, %v626
          %v628 = vand.u32 %v627, 4294901760
          %629 = vmatmul.mubr.f32.gmra.mrb[0].mxu0 %v628
          %v630 = vpop.f32.mrb[0].mxu0
          %v631 = vadd.f32 0.0, %v630
          %v632 = vpop.f32.mrb[0].mxu0
          %v633 = vand.u32 %v328, 4294901760
          %v634 = vsub.f32 %v328, %v633
          %v635 = vand.u32 %v634, 4294901760
          %v636 = vsub.f32 %v634, %v635
          %v637 = vand.u32 %v636, 4294901760
          %638 = vmatprep.mubr.f32.mxu0 %v637
          %v639 = vand.u32 %v327, 4294901760
          %v640 = vsub.f32 %v327, %v639
          %v641 = vand.u32 %v640, 4294901760
          %v642 = vsub.f32 %v640, %v641
          %v643 = vand.u32 %v642, 4294901760
          %644 = vmatmul.mubr.f32.gmra.mrb[0].mxu0 %v643
          %v645 = vpop.f32.mrb[0].mxu0
          %v646 = vadd.f32 0.0, %v645
          %v647 = vpop.f32.mrb[0].mxu0
          %v648 = vand.u32 %v330, 4294901760
          %v649 = vsub.f32 %v330, %v648
          %v650 = vand.u32 %v649, 4294901760
          %v651 = vsub.f32 %v649, %v650
          %v652 = vand.u32 %v651, 4294901760
          %653 = vmatprep.mubr.f32.mxu0 %v652
          %v654 = vand.u32 %v329, 4294901760
          %v655 = vsub.f32 %v329, %v654
          %v656 = vand.u32 %v655, 4294901760
          %v657 = vsub.f32 %v655, %v656
          %v658 = vand.u32 %v657, 4294901760
          %659 = vmatmul.mubr.f32.gmra.mrb[0].mxu0 %v658
          %v660 = vpop.f32.mrb[0].mxu0
          %v661 = vadd.f32 0.0, %v660
          %v662 = vpop.f32.mrb[0].mxu0
          %v663 = vand.u32 %v332, 4294901760
          %v664 = vsub.f32 %v332, %v663
          %v665 = vand.u32 %v664, 4294901760
          %v666 = vsub.f32 %v664, %v665
          %v667 = vand.u32 %v666, 4294901760
          %668 = vmatprep.mubr.f32.mxu0 %v667
          %v669 = vand.u32 %v331, 4294901760
          %v670 = vsub.f32 %v331, %v669
          %v671 = vand.u32 %v670, 4294901760
          %v672 = vsub.f32 %v670, %v671
          %v673 = vand.u32 %v672, 4294901760
          %674 = vmatmul.mubr.f32.gmra.mrb[0].mxu0 %v673
          %v675 = vpop.f32.mrb[0].mxu0
          %v676 = vadd.f32 0.0, %v675
          %v677 = vpop.f32.mrb[0].mxu0
          %v678 = vand.u32 %v334, 4294901760
          %v679 = vsub.f32 %v334, %v678
          %v680 = vand.u32 %v679, 4294901760
          %v681 = vsub.f32 %v679, %v680
          %v682 = vand.u32 %v681, 4294901760
          %683 = vmatprep.mubr.f32.mxu0 %v682
          %v684 = vand.u32 %v333, 4294901760
          %v685 = vsub.f32 %v333, %v684
          %v686 = vand.u32 %v685, 4294901760
          %v687 = vsub.f32 %v685, %v686
          %v688 = vand.u32 %v687, 4294901760
          %689 = vmatmul.mubr.f32.gmra.mrb[0].mxu0 %v688
          %v690 = vpop.f32.mrb[0].mxu0
          %v691 = vadd.f32 0.0, %v690
          %v692 = vpop.f32.mrb[0].mxu0
          %v693 = vand.u32 %v336, 4294901760
          %v694 = vsub.f32 %v336, %v693
          %v695 = vand.u32 %v694, 4294901760
          %v696 = vsub.f32 %v694, %v695
          %v697 = vand.u32 %v696, 4294901760
          %698 = vmatprep.mubr.f32.mxu0 %v697
          %v699 = vand.u32 %v335, 4294901760
          %v700 = vsub.f32 %v335, %v699
          %v701 = vand.u32 %v700, 4294901760
          %v702 = vsub.f32 %v700, %v701
          %v703 = vand.u32 %v702, 4294901760
          %704 = vmatmul.mubr.f32.gmra.mrb[0].mxu0 %v703
          %v705 = vpop.f32.mrb[0].mxu0
          %v706 = vadd.f32 0.0, %v705
          %v707 = vpop.f32.mrb[0].mxu0
          %v708 = vand.u32 %v338, 4294901760
          %v709 = vsub.f32 %v338, %v708
          %v710 = vand.u32 %v709, 4294901760
          %v711 = vsub.f32 %v709, %v710
          %v712 = vand.u32 %v711, 4294901760
          %713 = vmatprep.mubr.f32.mxu0 %v712
          %v714 = vand.u32 %v337, 4294901760
          %v715 = vsub.f32 %v337, %v714
          %v716 = vand.u32 %v715, 4294901760
          %v717 = vsub.f32 %v715, %v716
          %v718 = vand.u32 %v717, 4294901760
          %719 = vmatmul.mubr.f32.gmra.mrb[0].mxu0 %v718
          %v720 = vpop.f32.mrb[0].mxu0
          %v721 = vadd.f32 0.0, %v720
          %v722 = vpop.f32.mrb[0].mxu0
          %v723 = vand.u32 %v340, 4294901760
          %v724 = vsub.f32 %v340, %v723
          %v725 = vand.u32 %v724, 4294901760
          %v726 = vsub.f32 %v724, %v725
          %v727 = vand.u32 %v726, 4294901760
          %728 = vmatprep.mubr.f32.mxu0 %v727
          %v729 = vand.u32 %v339, 4294901760
          %v730 = vsub.f32 %v339, %v729
          %v731 = vand.u32 %v730, 4294901760
          %v732 = vsub.f32 %v730, %v731
          %v733 = vand.u32 %v732, 4294901760
          %734 = vmatmul.mubr.f32.gmra.mrb[0].mxu0 %v733
          %v735 = vpop.f32.mrb[0].mxu0
          %v736 = vadd.f32 0.0, %v735
          %v737 = vpop.f32.mrb[0].mxu0
          %v738 = vand.u32 %v342, 4294901760
          %v739 = vsub.f32 %v342, %v738
          %v740 = vand.u32 %v739, 4294901760
          %v741 = vsub.f32 %v739, %v740
          %v742 = vand.u32 %v741, 4294901760
          %743 = vmatprep.mubr.f32.mxu0 %v742
          %v744 = vand.u32 %v341, 4294901760
          %v745 = vsub.f32 %v341, %v744
          %v746 = vand.u32 %v745, 4294901760
          %v747 = vsub.f32 %v745, %v746
          %v748 = vand.u32 %v747, 4294901760
          %749 = vmatmul.mubr.f32.gmra.mrb[0].mxu0 %v748
          %v750 = vpop.f32.mrb[0].mxu0
          %v751 = vadd.f32 0.0, %v750
          %v752 = vpop.f32.mrb[0].mxu0
          %v753 = vand.u32 %v344, 4294901760
          %v754 = vsub.f32 %v344, %v753
          %v755 = vand.u32 %v754, 4294901760
          %v756 = vsub.f32 %v754, %v755
          %v757 = vand.u32 %v756, 4294901760
          %758 = vmatprep.mubr.f32.mxu0 %v757
          %v759 = vand.u32 %v343, 4294901760
          %v760 = vsub.f32 %v343, %v759
          %v761 = vand.u32 %v760, 4294901760
          %v762 = vsub.f32 %v760, %v761
          %v763 = vand.u32 %v762, 4294901760
          %764 = vmatmul.mubr.f32.gmra.mrb[0].mxu0 %v763
          %v765 = vpop.f32.mrb[0].mxu0
          %v766 = vadd.f32 0.0, %v765
          %v767 = vpop.f32.mrb[0].mxu0
          %v768 = vand.u32 %v346, 4294901760
          %v769 = vsub.f32 %v346, %v768
          %v770 = vand.u32 %v769, 4294901760
          %v771 = vsub.f32 %v769, %v770
          %v772 = vand.u32 %v771, 4294901760
          %773 = vmatprep.mubr.f32.mxu0 %v772
          %v774 = vand.u32 %v345, 4294901760
          %v775 = vsub.f32 %v345, %v774
          %v776 = vand.u32 %v775, 4294901760
          %v777 = vsub.f32 %v775, %v776
          %v778 = vand.u32 %v777, 4294901760
          %779 = vmatmul.mubr.f32.gmra.mrb[0].mxu0 %v778
          %v780 = vpop.f32.mrb[0].mxu0
          %v781 = vadd.f32 0.0, %v780
          %v782 = vpop.f32.mrb[0].mxu0
          %v783 = vand.u32 %v348, 4294901760
          %v784 = vsub.f32 %v348, %v783
          %v785 = vand.u32 %v784, 4294901760
          %v786 = vsub.f32 %v784, %v785
          %v787 = vand.u32 %v786, 4294901760
          %788 = vmatprep.mubr.f32.mxu0 %v787
          %v789 = vand.u32 %v347, 4294901760
          %v790 = vsub.f32 %v347, %v789
          %v791 = vand.u32 %v790, 4294901760
          %v792 = vsub.f32 %v790, %v791
          %v793 = vand.u32 %v792, 4294901760
          %794 = vmatmul.mubr.f32.gmra.mrb[0].mxu0 %v793
          %v795 = vpop.f32.mrb[0].mxu0
          %v796 = vadd.f32 0.0, %v795
          %v797 = vpop.f32.mrb[0].mxu0
          %v798 = vand.u32 %v350, 4294901760
          %v799 = vsub.f32 %v350, %v798
          %v800 = vand.u32 %v799, 4294901760
          %v801 = vsub.f32 %v799, %v800
          %v802 = vand.u32 %v801, 4294901760
          %803 = vmatprep.mubr.f32.mxu0 %v802
          %v804 = vand.u32 %v349, 4294901760
          %v805 = vsub.f32 %v349, %v804
          %v806 = vand.u32 %v805, 4294901760
          %v807 = vsub.f32 %v805, %v806
          %v808 = vand.u32 %v807, 4294901760
          %809 = vmatmul.mubr.f32.gmra.mrb[0].mxu0 %v808
          %v810 = vpop.f32.mrb[0].mxu0
          %v811 = vadd.f32 0.0, %v810
          %v812 = vpop.f32.mrb[0].mxu0
          %v813 = vand.u32 %v352, 4294901760
          %v814 = vsub.f32 %v352, %v813
          %v815 = vand.u32 %v814, 4294901760
          %v816 = vsub.f32 %v814, %v815
          %v817 = vand.u32 %v816, 4294901760
          %818 = vmatprep.mubr.f32.mxu0 %v817
          %v819 = vand.u32 %v351, 4294901760
          %v820 = vsub.f32 %v351, %v819
          %v821 = vand.u32 %v820, 4294901760
          %v822 = vsub.f32 %v820, %v821
          %v823 = vand.u32 %v822, 4294901760
          %824 = vmatmul.mubr.f32.gmra.mrb[0].mxu0 %v823
          %v825 = vpop.f32.mrb[0].mxu0
          %v826 = vadd.f32 0.0, %v825
          %v827 = vpop.f32.mrb[0].mxu0
          %v828 = vand.u32 %v354, 4294901760
          %v829 = vsub.f32 %v354, %v828
          %v830 = vand.u32 %v829, 4294901760
          %v831 = vsub.f32 %v829, %v830
          %v832 = vand.u32 %v831, 4294901760
          %833 = vmatprep.mubr.f32.mxu0 %v832
          %v834 = vand.u32 %v353, 4294901760
          %v835 = vsub.f32 %v353, %v834
          %v836 = vand.u32 %v835, 4294901760
          %v837 = vsub.f32 %v835, %v836
          %v838 = vand.u32 %v837, 4294901760
          %839 = vmatmul.mubr.f32.gmra.mrb[0].mxu0 %v838
          %v840 = vpop.f32.mrb[0].mxu0
          %v841 = vadd.f32 0.0, %v840
          %v842 = vpop.f32.mrb[0].mxu0
          %843 = vdwg.mxu0
          %844 = vmatprep.subr.mxu0 0.0
          %v845 = vand.u32 %v355, 4294901760
          %v846 = vsub.f32 %v355, %v845
          %v847 = vand.u32 %v846, 4294901760
          %v848 = vsub.f32 %v846, %v847
          %v849 = vand.u32 %v848, 4294901760
          %850 = vmatpush1.msra.mxu0 %v849
          %851 = vmatprep.subr.mxu0 0.0
          %v852 = vand.u32 %v356, 4294901760
          %v853 = vsub.f32 %v356, %v852
          %v854 = vand.u32 %v853, 4294901760
          %v855 = vsub.f32 %v853, %v854
          %v856 = vand.u32 %v855, 4294901760
          %857 = vmatpush1.msra.mxu0 %v856
          %858 = vmatprep.subr.mxu0 0.0
          %v859 = vand.u32 %v357, 4294901760
          %v860 = vsub.f32 %v357, %v859
          %v861 = vand.u32 %v860, 4294901760
          %v862 = vsub.f32 %v860, %v861
          %v863 = vand.u32 %v862, 4294901760
          %864 = vmatpush1.msra.mxu0 %v863
          %865 = vmatprep.subr.mxu0 0.0
          %v866 = vand.u32 %v358, 4294901760
          %v867 = vsub.f32 %v358, %v866
          %v868 = vand.u32 %v867, 4294901760
          %v869 = vsub.f32 %v867, %v868
          %v870 = vand.u32 %v869, 4294901760
          %871 = vmatpush1.msra.mxu0 %v870
          %872 = vmatprep.subr.mxu0 0.0
          %v873 = vand.u32 %v359, 4294901760
          %v874 = vsub.f32 %v359, %v873
          %v875 = vand.u32 %v874, 4294901760
          %v876 = vsub.f32 %v874, %v875
          %v877 = vand.u32 %v876, 4294901760
          %878 = vmatpush1.msra.mxu0 %v877
          %879 = vmatprep.subr.mxu0 0.0
          %v880 = vand.u32 %v360, 4294901760
          %v881 = vsub.f32 %v360, %v880
          %v882 = vand.u32 %v881, 4294901760
          %v883 = vsub.f32 %v881, %v882
          %v884 = vand.u32 %v883, 4294901760
          %885 = vmatpush1.msra.mxu0 %v884
          %886 = vmatprep.subr.mxu0 0.0
          %v887 = vand.u32 %v361, 4294901760
          %v888 = vsub.f32 %v361, %v887
          %v889 = vand.u32 %v888, 4294901760
          %v890 = vsub.f32 %v888, %v889
          %v891 = vand.u32 %v890, 4294901760
          %892 = vmatpush1.msra.mxu0 %v891
          %893 = vmatprep.subr.mxu0 0.0
          %v894 = vand.u32 %v362, 4294901760
          %v895 = vsub.f32 %v362, %v894
          %v896 = vand.u32 %v895, 4294901760
          %v897 = vsub.f32 %v895, %v896
          %v898 = vand.u32 %v897, 4294901760
          %899 = vmatpush1.msra.mxu0 %v898
          %900 = vmatprep.subr.mxu0 0.0
          %v901 = vand.u32 %v363, 4294901760
          %v902 = vsub.f32 %v363, %v901
          %v903 = vand.u32 %v902, 4294901760
          %v904 = vsub.f32 %v902, %v903
          %v905 = vand.u32 %v904, 4294901760
          %906 = vmatpush1.msra.mxu0 %v905
          %907 = vmatprep.subr.mxu0 0.0
          %v908 = vand.u32 %v364, 4294901760
          %v909 = vsub.f32 %v364, %v908
          %v910 = vand.u32 %v909, 4294901760
          %v911 = vsub.f32 %v909, %v910
          %v912 = vand.u32 %v911, 4294901760
          %913 = vmatpush1.msra.mxu0 %v912
          %914 = vmatprep.subr.mxu0 0.0
          %v915 = vand.u32 %v365, 4294901760
          %v916 = vsub.f32 %v365, %v915
          %v917 = vand.u32 %v916, 4294901760
          %v918 = vsub.f32 %v916, %v917
          %v919 = vand.u32 %v918, 4294901760
          %920 = vmatpush1.msra.mxu0 %v919
          %921 = vmatprep.subr.mxu0 0.0
          %v922 = vand.u32 %v366, 4294901760
          %v923 = vsub.f32 %v366, %v922
          %v924 = vand.u32 %v923, 4294901760
          %v925 = vsub.f32 %v923, %v924
          %v926 = vand.u32 %v925, 4294901760
          %927 = vmatpush1.msra.mxu0 %v926
          %928 = vmatprep.subr.mxu0 0.0
          %v929 = vand.u32 %v367, 4294901760
          %v930 = vsub.f32 %v367, %v929
          %v931 = vand.u32 %v930, 4294901760
          %v932 = vsub.f32 %v930, %v931
          %v933 = vand.u32 %v932, 4294901760
          %934 = vmatpush1.msra.mxu0 %v933
          %935 = vmatprep.subr.mxu0 0.0
          %v936 = vand.u32 %v368, 4294901760
          %v937 = vsub.f32 %v368, %v936
          %v938 = vand.u32 %v937, 4294901760
          %v939 = vsub.f32 %v937, %v938
          %v940 = vand.u32 %v939, 4294901760
          %941 = vmatpush1.msra.mxu0 %v940
          %942 = vmatprep.subr.mxu0 0.0
          %v943 = vand.u32 %v369, 4294901760
          %v944 = vsub.f32 %v369, %v943
          %v945 = vand.u32 %v944, 4294901760
          %v946 = vsub.f32 %v944, %v945
          %v947 = vand.u32 %v946, 4294901760
          %948 = vmatpush1.msra.mxu0 %v947
          %949 = vmatprep.subr.mxu0 0.0
          %v950 = vand.u32 %v370, 4294901760
          %v951 = vsub.f32 %v370, %v950
          %v952 = vand.u32 %v951, 4294901760
          %v953 = vsub.f32 %v951, %v952
          %v954 = vand.u32 %v953, 4294901760
          %955 = vmatpush1.msra.mxu0 %v954
          %956 = vmatprep.subr.mxu0 0.0
          %v957 = vand.u32 %v371, 4294901760
          %v958 = vsub.f32 %v371, %v957
          %v959 = vand.u32 %v958, 4294901760
          %v960 = vsub.f32 %v958, %v959
          %v961 = vand.u32 %v960, 4294901760
          %962 = vmatpush1.msra.mxu0 %v961
          %963 = vmatprep.subr.mxu0 0.0
          %v964 = vand.u32 %v372, 4294901760
          %v965 = vsub.f32 %v372, %v964
          %v966 = vand.u32 %v965, 4294901760
          %v967 = vsub.f32 %v965, %v966
          %v968 = vand.u32 %v967, 4294901760
          %969 = vmatpush1.msra.mxu0 %v968
          %970 = vmatprep.subr.mxu0 0.0
          %v971 = vand.u32 %v373, 4294901760
          %v972 = vsub.f32 %v373, %v971
          %v973 = vand.u32 %v972, 4294901760
          %v974 = vsub.f32 %v972, %v973
          %v975 = vand.u32 %v974, 4294901760
          %976 = vmatpush1.msra.mxu0 %v975
          %977 = vmatprep.subr.mxu0 0.0
          %v978 = vand.u32 %v374, 4294901760
          %v979 = vsub.f32 %v374, %v978
          %v980 = vand.u32 %v979, 4294901760
          %v981 = vsub.f32 %v979, %v980
          %v982 = vand.u32 %v981, 4294901760
          %983 = vmatpush1.msra.mxu0 %v982
          %984 = vmatprep.subr.mxu0 0.0
          %v985 = vand.u32 %v375, 4294901760
          %v986 = vsub.f32 %v375, %v985
          %v987 = vand.u32 %v986, 4294901760
          %v988 = vsub.f32 %v986, %v987
          %v989 = vand.u32 %v988, 4294901760
          %990 = vmatpush1.msra.mxu0 %v989
          %991 = vmatprep.subr.mxu0 0.0
          %v992 = vand.u32 %v376, 4294901760
          %v993 = vsub.f32 %v376, %v992
          %v994 = vand.u32 %v993, 4294901760
          %v995 = vsub.f32 %v993, %v994
          %v996 = vand.u32 %v995, 4294901760
          %997 = vmatpush1.msra.mxu0 %v996
          %998 = vmatprep.subr.mxu0 0.0
          %v999 = vand.u32 %v377, 4294901760
          %v1000 = vsub.f32 %v377, %v999
          %v1001 = vand.u32 %v1000, 4294901760
          %v1002 = vsub.f32 %v1000, %v1001
          %v1003 = vand.u32 %v1002, 4294901760
          %1004 = vmatpush1.msra.mxu0 %v1003
          %1005 = vmatprep.subr.mxu0 0.0
          %v1006 = vand.u32 %v378, 4294901760
          %v1007 = vsub.f32 %v378, %v1006
          %v1008 = vand.u32 %v1007, 4294901760
          %v1009 = vsub.f32 %v1007, %v1008
          %v1010 = vand.u32 %v1009, 4294901760
          %1011 = vmatpush1.msra.mxu0 %v1010
          %1012 = vmatprep.subr.mxu0 0.0
          %v1013 = vand.u32 %v379, 4294901760
          %v1014 = vsub.f32 %v379, %v1013
          %v1015 = vand.u32 %v1014, 4294901760
          %v1016 = vsub.f32 %v1014, %v1015
          %v1017 = vand.u32 %v1016, 4294901760
          %1018 = vmatpush1.msra.mxu0 %v1017
          %1019 = vmatprep.subr.mxu0 0.0
          %v1020 = vand.u32 %v380, 4294901760
          %v1021 = vsub.f32 %v380, %v1020
          %v1022 = vand.u32 %v1021, 4294901760
          %v1023 = vsub.f32 %v1021, %v1022
          %v1024 = vand.u32 %v1023, 4294901760
          %1025 = vmatpush1.msra.mxu0 %v1024
          %1026 = vmatprep.subr.mxu0 0.0
          %v1027 = vand.u32 %v381, 4294901760
          %v1028 = vsub.f32 %v381, %v1027
          %v1029 = vand.u32 %v1028, 4294901760
          %v1030 = vsub.f32 %v1028, %v1029
          %v1031 = vand.u32 %v1030, 4294901760
          %1032 = vmatpush1.msra.mxu0 %v1031
          %1033 = vmatprep.subr.mxu0 0.0
          %v1034 = vand.u32 %v382, 4294901760
          %v1035 = vsub.f32 %v382, %v1034
          %v1036 = vand.u32 %v1035, 4294901760
          %v1037 = vsub.f32 %v1035, %v1036
          %v1038 = vand.u32 %v1037, 4294901760
          %1039 = vmatpush1.msra.mxu0 %v1038
          %1040 = vmatprep.subr.mxu0 0.0
          %v1041 = vand.u32 %v383, 4294901760
          %v1042 = vsub.f32 %v383, %v1041
          %v1043 = vand.u32 %v1042, 4294901760
          %v1044 = vsub.f32 %v1042, %v1043
          %v1045 = vand.u32 %v1044, 4294901760
          %1046 = vmatpush1.msra.mxu0 %v1045
          %1047 = vmatprep.subr.mxu0 0.0
          %v1048 = vand.u32 %v384, 4294901760
          %v1049 = vsub.f32 %v384, %v1048
          %v1050 = vand.u32 %v1049, 4294901760
          %v1051 = vsub.f32 %v1049, %v1050
          %v1052 = vand.u32 %v1051, 4294901760
          %1053 = vmatpush1.msra.mxu0 %v1052
          %1054 = vmatprep.subr.mxu0 0.0
          %v1055 = vand.u32 %v385, 4294901760
          %v1056 = vsub.f32 %v385, %v1055
          %v1057 = vand.u32 %v1056, 4294901760
          %v1058 = vsub.f32 %v1056, %v1057
          %v1059 = vand.u32 %v1058, 4294901760
          %1060 = vmatpush1.msra.mxu0 %v1059
          %1061 = vmatprep.subr.mxu0 0.0
          %v1062 = vand.u32 %v386, 4294901760
          %v1063 = vsub.f32 %v386, %v1062
          %v1064 = vand.u32 %v1063, 4294901760
          %v1065 = vsub.f32 %v1063, %v1064
          %v1066 = vand.u32 %v1065, 4294901760
          %1067 = vmatpush1.msra.mxu0 %v1066
          %v1068 = vand.u32 %v308, 4294901760
          %1069 = vmatprep.mubr.f32.mxu0 %v1068
          %v1070 = vand.u32 %v307, 4294901760
          %1071 = vmatmul.mubr.f32.gmra.mrb[0].mxu0 %v1070
          %v1072 = vpop.f32.mrb[0].mxu0
          %v1073 = vadd.f32 %v496, %v1072
          %v1074 = vpop.f32.mrb[0].mxu0
          %v1075 = vand.u32 %v310, 4294901760
          %1076 = vmatprep.mubr.f32.mxu0 %v1075
          %v1077 = vand.u32 %v309, 4294901760
          %1078 = vmatmul.mubr.f32.gmra.mrb[0].mxu0 %v1077
          %v1079 = vpop.f32.mrb[0].mxu0
          %v1080 = vadd.f32 %v511, %v1079
          %v1081 = vpop.f32.mrb[0].mxu0
          %v1082 = vand.u32 %v312, 4294901760
          %1083 = vmatprep.mubr.f32.mxu0 %v1082
          %v1084 = vand.u32 %v311, 4294901760
          %1085 = vmatmul.mubr.f32.gmra.mrb[0].mxu0 %v1084
          %v1086 = vpop.f32.mrb[0].mxu0
          %v1087 = vadd.f32 %v526, %v1086
          %v1088 = vpop.f32.mrb[0].mxu0
          %v1089 = vand.u32 %v314, 4294901760
          %1090 = vmatprep.mubr.f32.mxu0 %v1089
          %v1091 = vand.u32 %v313, 4294901760
          %1092 = vmatmul.mubr.f32.gmra.mrb[0].mxu0 %v1091
          %v1093 = vpop.f32.mrb[0].mxu0
          %v1094 = vadd.f32 %v541, %v1093
          %v1095 = vpop.f32.mrb[0].mxu0
          %v1096 = vand.u32 %v316, 4294901760
          %1097 = vmatprep.mubr.f32.mxu0 %v1096
          %v1098 = vand.u32 %v315, 4294901760
          %1099 = vmatmul.mubr.f32.gmra.mrb[0].mxu0 %v1098
          %v1100 = vpop.f32.mrb[0].mxu0
          %v1101 = vadd.f32 %v556, %v1100
          %v1102 = vpop.f32.mrb[0].mxu0
          %v1103 = vand.u32 %v318, 4294901760
          %1104 = vmatprep.mubr.f32.mxu0 %v1103
          %v1105 = vand.u32 %v317, 4294901760
          %1106 = vmatmul.mubr.f32.gmra.mrb[0].mxu0 %v1105
          %v1107 = vpop.f32.mrb[0].mxu0
          %v1108 = vadd.f32 %v571, %v1107
          %v1109 = vpop.f32.mrb[0].mxu0
          %v1110 = vand.u32 %v320, 4294901760
          %1111 = vmatprep.mubr.f32.mxu0 %v1110
          %v1112 = vand.u32 %v319, 4294901760
          %1113 = vmatmul.mubr.f32.gmra.mrb[0].mxu0 %v1112
          %v1114 = vpop.f32.mrb[0].mxu0
          %v1115 = vadd.f32 %v586, %v1114
          %v1116 = vpop.f32.mrb[0].mxu0
          %v1117 = vand.u32 %v322, 4294901760
          %1118 = vmatprep.mubr.f32.mxu0 %v1117
          %v1119 = vand.u32 %v321, 4294901760
          %1120 = vmatmul.mubr.f32.gmra.mrb[0].mxu0 %v1119
          %v1121 = vpop.f32.mrb[0].mxu0
          %v1122 = vadd.f32 %v601, %v1121
          %v1123 = vpop.f32.mrb[0].mxu0
          %v1124 = vand.u32 %v324, 4294901760
          %1125 = vmatprep.mubr.f32.mxu0 %v1124
          %v1126 = vand.u32 %v323, 4294901760
          %1127 = vmatmul.mubr.f32.gmra.mrb[0].mxu0 %v1126
          %v1128 = vpop.f32.mrb[0].mxu0
          %v1129 = vadd.f32 %v616, %v1128
          %v1130 = vpop.f32.mrb[0].mxu0
          %v1131 = vand.u32 %v326, 4294901760
          %1132 = vmatprep.mubr.f32.mxu0 %v1131
          %v1133 = vand.u32 %v325, 4294901760
          %1134 = vmatmul.mubr.f32.gmra.mrb[0].mxu0 %v1133
          %v1135 = vpop.f32.mrb[0].mxu0
          %v1136 = vadd.f32 %v631, %v1135
          %v1137 = vpop.f32.mrb[0].mxu0
          %v1138 = vand.u32 %v328, 4294901760
          %1139 = vmatprep.mubr.f32.mxu0 %v1138
          %v1140 = vand.u32 %v327, 4294901760
          %1141 = vmatmul.mubr.f32.gmra.mrb[0].mxu0 %v1140
          %v1142 = vpop.f32.mrb[0].mxu0
          %v1143 = vadd.f32 %v646, %v1142
          %v1144 = vpop.f32.mrb[0].mxu0
          %v1145 = vand.u32 %v330, 4294901760
          %1146 = vmatprep.mubr.f32.mxu0 %v1145
          %v1147 = vand.u32 %v329, 4294901760
          %1148 = vmatmul.mubr.f32.gmra.mrb[0].mxu0 %v1147
          %v1149 = vpop.f32.mrb[0].mxu0
          %v1150 = vadd.f32 %v661, %v1149
          %v1151 = vpop.f32.mrb[0].mxu0
          %v1152 = vand.u32 %v332, 4294901760
          %1153 = vmatprep.mubr.f32.mxu0 %v1152
          %v1154 = vand.u32 %v331, 4294901760
          %1155 = vmatmul.mubr.f32.gmra.mrb[0].mxu0 %v1154
          %v1156 = vpop.f32.mrb[0].mxu0
          %v1157 = vadd.f32 %v676, %v1156
          %v1158 = vpop.f32.mrb[0].mxu0
          %v1159 = vand.u32 %v334, 4294901760
          %1160 = vmatprep.mubr.f32.mxu0 %v1159
          %v1161 = vand.u32 %v333, 4294901760
          %1162 = vmatmul.mubr.f32.gmra.mrb[0].mxu0 %v1161
          %v1163 = vpop.f32.mrb[0].mxu0
          %v1164 = vadd.f32 %v691, %v1163
          %v1165 = vpop.f32.mrb[0].mxu0
          %v1166 = vand.u32 %v336, 4294901760
          %1167 = vmatprep.mubr.f32.mxu0 %v1166
          %v1168 = vand.u32 %v335, 4294901760
          %1169 = vmatmul.mubr.f32.gmra.mrb[0].mxu0 %v1168
          %v1170 = vpop.f32.mrb[0].mxu0
          %v1171 = vadd.f32 %v706, %v1170
          %v1172 = vpop.f32.mrb[0].mxu0
          %v1173 = vand.u32 %v338, 4294901760
          %1174 = vmatprep.mubr.f32.mxu0 %v1173
          %v1175 = vand.u32 %v337, 4294901760
          %1176 = vmatmul.mubr.f32.gmra.mrb[0].mxu0 %v1175
          %v1177 = vpop.f32.mrb[0].mxu0
          %v1178 = vadd.f32 %v721, %v1177
          %v1179 = vpop.f32.mrb[0].mxu0
          %v1180 = vand.u32 %v340, 4294901760
          %1181 = vmatprep.mubr.f32.mxu0 %v1180
          %v1182 = vand.u32 %v339, 4294901760
          %1183 = vmatmul.mubr.f32.gmra.mrb[0].mxu0 %v1182
          %v1184 = vpop.f32.mrb[0].mxu0
          %v1185 = vadd.f32 %v736, %v1184
          %v1186 = vpop.f32.mrb[0].mxu0
          %v1187 = vand.u32 %v342, 4294901760
          %1188 = vmatprep.mubr.f32.mxu0 %v1187
          %v1189 = vand.u32 %v341, 4294901760
          %1190 = vmatmul.mubr.f32.gmra.mrb[0].mxu0 %v1189
          %v1191 = vpop.f32.mrb[0].mxu0
          %v1192 = vadd.f32 %v751, %v1191
          %v1193 = vpop.f32.mrb[0].mxu0
          %v1194 = vand.u32 %v344, 4294901760
          %1195 = vmatprep.mubr.f32.mxu0 %v1194
          %v1196 = vand.u32 %v343, 4294901760
          %1197 = vmatmul.mubr.f32.gmra.mrb[0].mxu0 %v1196
          %v1198 = vpop.f32.mrb[0].mxu0
          %v1199 = vadd.f32 %v766, %v1198
          %v1200 = vpop.f32.mrb[0].mxu0
          %v1201 = vand.u32 %v346, 4294901760
          %1202 = vmatprep.mubr.f32.mxu0 %v1201
          %v1203 = vand.u32 %v345, 4294901760
          %1204 = vmatmul.mubr.f32.gmra.mrb[0].mxu0 %v1203
          %v1205 = vpop.f32.mrb[0].mxu0
          %v1206 = vadd.f32 %v781, %v1205
          %v1207 = vpop.f32.mrb[0].mxu0
          %v1208 = vand.u32 %v348, 4294901760
          %1209 = vmatprep.mubr.f32.mxu0 %v1208
          %v1210 = vand.u32 %v347, 4294901760
          %1211 = vmatmul.mubr.f32.gmra.mrb[0].mxu0 %v1210
          %v1212 = vpop.f32.mrb[0].mxu0
          %v1213 = vadd.f32 %v796, %v1212
          %v1214 = vpop.f32.mrb[0].mxu0
          %v1215 = vand.u32 %v350, 4294901760
          %1216 = vmatprep.mubr.f32.mxu0 %v1215
          %v1217 = vand.u32 %v349, 4294901760
          %1218 = vmatmul.mubr.f32.gmra.mrb[0].mxu0 %v1217
          %v1219 = vpop.f32.mrb[0].mxu0
          %v1220 = vadd.f32 %v811, %v1219
          %v1221 = vpop.f32.mrb[0].mxu0
          %v1222 = vand.u32 %v352, 4294901760
          %1223 = vmatprep.mubr.f32.mxu0 %v1222
          %v1224 = vand.u32 %v351, 4294901760
          %1225 = vmatmul.mubr.f32.gmra.mrb[0].mxu0 %v1224
          %v1226 = vpop.f32.mrb[0].mxu0
          %v1227 = vadd.f32 %v826, %v1226
          %v1228 = vpop.f32.mrb[0].mxu0
          %v1229 = vand.u32 %v354, 4294901760
          %1230 = vmatprep.mubr.f32.mxu0 %v1229
          %v1231 = vand.u32 %v353, 4294901760
          %1232 = vmatmul.mubr.f32.gmra.mrb[0].mxu0 %v1231
          %v1233 = vpop.f32.mrb[0].mxu0
          %v1234 = vadd.f32 %v841, %v1233
          %v1235 = vpop.f32.mrb[0].mxu0
          %1236 = vdwg.mxu0
          %1237 = vmatprep.subr.mxu0 0.0
          %v1238 = vand.u32 %v355, 4294901760
          %v1239 = vsub.f32 %v355, %v1238
          %1240 = vmatpush1.msra.mxu0 %v1239
          %1241 = vmatprep.subr.mxu0 0.0
          %v1242 = vand.u32 %v356, 4294901760
          %v1243 = vsub.f32 %v356, %v1242
          %1244 = vmatpush1.msra.mxu0 %v1243
          %1245 = vmatprep.subr.mxu0 0.0
          %v1246 = vand.u32 %v357, 4294901760
          %v1247 = vsub.f32 %v357, %v1246
          %1248 = vmatpush1.msra.mxu0 %v1247
          %1249 = vmatprep.subr.mxu0 0.0
          %v1250 = vand.u32 %v358, 4294901760
          %v1251 = vsub.f32 %v358, %v1250
          %1252 = vmatpush1.msra.mxu0 %v1251
          %1253 = vmatprep.subr.mxu0 0.0
          %v1254 = vand.u32 %v359, 4294901760
          %v1255 = vsub.f32 %v359, %v1254
          %1256 = vmatpush1.msra.mxu0 %v1255
          %1257 = vmatprep.subr.mxu0 0.0
          %v1258 = vand.u32 %v360, 4294901760
          %v1259 = vsub.f32 %v360, %v1258
          %1260 = vmatpush1.msra.mxu0 %v1259
          %1261 = vmatprep.subr.mxu0 0.0
          %v1262 = vand.u32 %v361, 4294901760
          %v1263 = vsub.f32 %v361, %v1262
          %1264 = vmatpush1.msra.mxu0 %v1263
          %1265 = vmatprep.subr.mxu0 0.0
          %v1266 = vand.u32 %v362, 4294901760
          %v1267 = vsub.f32 %v362, %v1266
          %1268 = vmatpush1.msra.mxu0 %v1267
          %1269 = vmatprep.subr.mxu0 0.0
          %v1270 = vand.u32 %v363, 4294901760
          %v1271 = vsub.f32 %v363, %v1270
          %1272 = vmatpush1.msra.mxu0 %v1271
          %1273 = vmatprep.subr.mxu0 0.0
          %v1274 = vand.u32 %v364, 4294901760
          %v1275 = vsub.f32 %v364, %v1274
          %1276 = vmatpush1.msra.mxu0 %v1275
          %1277 = vmatprep.subr.mxu0 0.0
          %v1278 = vand.u32 %v365, 4294901760
          %v1279 = vsub.f32 %v365, %v1278
          %1280 = vmatpush1.msra.mxu0 %v1279
          %1281 = vmatprep.subr.mxu0 0.0
          %v1282 = vand.u32 %v366, 4294901760
          %v1283 = vsub.f32 %v366, %v1282
          %1284 = vmatpush1.msra.mxu0 %v1283
          %1285 = vmatprep.subr.mxu0 0.0
          %v1286 = vand.u32 %v367, 4294901760
          %v1287 = vsub.f32 %v367, %v1286
          %1288 = vmatpush1.msra.mxu0 %v1287
          %1289 = vmatprep.subr.mxu0 0.0
          %v1290 = vand.u32 %v368, 4294901760
          %v1291 = vsub.f32 %v368, %v1290
          %1292 = vmatpush1.msra.mxu0 %v1291
          %1293 = vmatprep.subr.mxu0 0.0
          %v1294 = vand.u32 %v369, 4294901760
          %v1295 = vsub.f32 %v369, %v1294
          %1296 = vmatpush1.msra.mxu0 %v1295
          %1297 = vmatprep.subr.mxu0 0.0
          %v1298 = vand.u32 %v370, 4294901760
          %v1299 = vsub.f32 %v370, %v1298
          %1300 = vmatpush1.msra.mxu0 %v1299
          %1301 = vmatprep.subr.mxu0 0.0
          %v1302 = vand.u32 %v371, 4294901760
          %v1303 = vsub.f32 %v371, %v1302
          %1304 = vmatpush1.msra.mxu0 %v1303
          %1305 = vmatprep.subr.mxu0 0.0
          %v1306 = vand.u32 %v372, 4294901760
          %v1307 = vsub.f32 %v372, %v1306
          %1308 = vmatpush1.msra.mxu0 %v1307
          %1309 = vmatprep.subr.mxu0 0.0
          %v1310 = vand.u32 %v373, 4294901760
          %v1311 = vsub.f32 %v373, %v1310
          %1312 = vmatpush1.msra.mxu0 %v1311
          %1313 = vmatprep.subr.mxu0 0.0
          %v1314 = vand.u32 %v374, 4294901760
          %v1315 = vsub.f32 %v374, %v1314
          %1316 = vmatpush1.msra.mxu0 %v1315
          %1317 = vmatprep.subr.mxu0 0.0
          %v1318 = vand.u32 %v375, 4294901760
          %v1319 = vsub.f32 %v375, %v1318
          %1320 = vmatpush1.msra.mxu0 %v1319
          %1321 = vmatprep.subr.mxu0 0.0
          %v1322 = vand.u32 %v376, 4294901760
          %v1323 = vsub.f32 %v376, %v1322
          %1324 = vmatpush1.msra.mxu0 %v1323
          %1325 = vmatprep.subr.mxu0 0.0
          %v1326 = vand.u32 %v377, 4294901760
          %v1327 = vsub.f32 %v377, %v1326
          %1328 = vmatpush1.msra.mxu0 %v1327
          %1329 = vmatprep.subr.mxu0 0.0
          %v1330 = vand.u32 %v378, 4294901760
          %v1331 = vsub.f32 %v378, %v1330
          %1332 = vmatpush1.msra.mxu0 %v1331
          %1333 = vmatprep.subr.mxu0 0.0
          %v1334 = vand.u32 %v379, 4294901760
          %v1335 = vsub.f32 %v379, %v1334
          %1336 = vmatpush1.msra.mxu0 %v1335
          %1337 = vmatprep.subr.mxu0 0.0
          %v1338 = vand.u32 %v380, 4294901760
          %v1339 = vsub.f32 %v380, %v1338
          %1340 = vmatpush1.msra.mxu0 %v1339
          %1341 = vmatprep.subr.mxu0 0.0
          %v1342 = vand.u32 %v381, 4294901760
          %v1343 = vsub.f32 %v381, %v1342
          %1344 = vmatpush1.msra.mxu0 %v1343
          %1345 = vmatprep.subr.mxu0 0.0
          %v1346 = vand.u32 %v382, 4294901760
          %v1347 = vsub.f32 %v382, %v1346
          %1348 = vmatpush1.msra.mxu0 %v1347
          %1349 = vmatprep.subr.mxu0 0.0
          %v1350 = vand.u32 %v383, 4294901760
          %v1351 = vsub.f32 %v383, %v1350
          %1352 = vmatpush1.msra.mxu0 %v1351
          %1353 = vmatprep.subr.mxu0 0.0
          %v1354 = vand.u32 %v384, 4294901760
          %v1355 = vsub.f32 %v384, %v1354
          %1356 = vmatpush1.msra.mxu0 %v1355
          %1357 = vmatprep.subr.mxu0 0.0
          %v1358 = vand.u32 %v385, 4294901760
          %v1359 = vsub.f32 %v385, %v1358
          %1360 = vmatpush1.msra.mxu0 %v1359
          %1361 = vmatprep.subr.mxu0 0.0
          %v1362 = vand.u32 %v386, 4294901760
          %v1363 = vsub.f32 %v386, %v1362
          %1364 = vmatpush1.msra.mxu0 %v1363
          %v1365 = vand.u32 %v308, 4294901760
          %v1366 = vsub.f32 %v308, %v1365
          %1367 = vmatprep.mubr.f32.mxu0 %v1366
          %v1368 = vand.u32 %v307, 4294901760
          %v1369 = vsub.f32 %v307, %v1368
          %1370 = vmatmul.mubr.f32.gmra.mrb[0].mxu0 %v1369
          %v1371 = vpop.f32.mrb[0].mxu0
          %v1372 = vadd.f32 %v1073, %v1371
          %v1373 = vpop.f32.mrb[0].mxu0
          %v1374 = vand.u32 %v310, 4294901760
          %v1375 = vsub.f32 %v310, %v1374
          %1376 = vmatprep.mubr.f32.mxu0 %v1375
          %v1377 = vand.u32 %v309, 4294901760
          %v1378 = vsub.f32 %v309, %v1377
          %1379 = vmatmul.mubr.f32.gmra.mrb[0].mxu0 %v1378
          %v1380 = vpop.f32.mrb[0].mxu0
          %v1381 = vadd.f32 %v1080, %v1380
          %v1382 = vpop.f32.mrb[0].mxu0
          %v1383 = vand.u32 %v312, 4294901760
          %v1384 = vsub.f32 %v312, %v1383
          %1385 = vmatprep.mubr.f32.mxu0 %v1384
          %v1386 = vand.u32 %v311, 4294901760
          %v1387 = vsub.f32 %v311, %v1386
          %1388 = vmatmul.mubr.f32.gmra.mrb[0].mxu0 %v1387
          %v1389 = vpop.f32.mrb[0].mxu0
          %v1390 = vadd.f32 %v1087, %v1389
          %v1391 = vpop.f32.mrb[0].mxu0
          %v1392 = vand.u32 %v314, 4294901760
          %v1393 = vsub.f32 %v314, %v1392
          %1394 = vmatprep.mubr.f32.mxu0 %v1393
          %v1395 = vand.u32 %v313, 4294901760
          %v1396 = vsub.f32 %v313, %v1395
          %1397 = vmatmul.mubr.f32.gmra.mrb[0].mxu0 %v1396
          %v1398 = vpop.f32.mrb[0].mxu0
          %v1399 = vadd.f32 %v1094, %v1398
          %v1400 = vpop.f32.mrb[0].mxu0
          %v1401 = vand.u32 %v316, 4294901760
          %v1402 = vsub.f32 %v316, %v1401
          %1403 = vmatprep.mubr.f32.mxu0 %v1402
          %v1404 = vand.u32 %v315, 4294901760
          %v1405 = vsub.f32 %v315, %v1404
          %1406 = vmatmul.mubr.f32.gmra.mrb[0].mxu0 %v1405
          %v1407 = vpop.f32.mrb[0].mxu0
          %v1408 = vadd.f32 %v1101, %v1407
          %v1409 = vpop.f32.mrb[0].mxu0
          %v1410 = vand.u32 %v318, 4294901760
          %v1411 = vsub.f32 %v318, %v1410
          %1412 = vmatprep.mubr.f32.mxu0 %v1411
          %v1413 = vand.u32 %v317, 4294901760
          %v1414 = vsub.f32 %v317, %v1413
          %1415 = vmatmul.mubr.f32.gmra.mrb[0].mxu0 %v1414
          %v1416 = vpop.f32.mrb[0].mxu0
          %v1417 = vadd.f32 %v1108, %v1416
          %v1418 = vpop.f32.mrb[0].mxu0
          %v1419 = vand.u32 %v320, 4294901760
          %v1420 = vsub.f32 %v320, %v1419
          %1421 = vmatprep.mubr.f32.mxu0 %v1420
          %v1422 = vand.u32 %v319, 4294901760
          %v1423 = vsub.f32 %v319, %v1422
          %1424 = vmatmul.mubr.f32.gmra.mrb[0].mxu0 %v1423
          %v1425 = vpop.f32.mrb[0].mxu0
          %v1426 = vadd.f32 %v1115, %v1425
          %v1427 = vpop.f32.mrb[0].mxu0
          %v1428 = vand.u32 %v322, 4294901760
          %v1429 = vsub.f32 %v322, %v1428
          %1430 = vmatprep.mubr.f32.mxu0 %v1429
          %v1431 = vand.u32 %v321, 4294901760
          %v1432 = vsub.f32 %v321, %v1431
          %1433 = vmatmul.mubr.f32.gmra.mrb[0].mxu0 %v1432
          %v1434 = vpop.f32.mrb[0].mxu0
          %v1435 = vadd.f32 %v1122, %v1434
          %v1436 = vpop.f32.mrb[0].mxu0
          %v1437 = vand.u32 %v324, 4294901760
          %v1438 = vsub.f32 %v324, %v1437
          %1439 = vmatprep.mubr.f32.mxu0 %v1438
          %v1440 = vand.u32 %v323, 4294901760
          %v1441 = vsub.f32 %v323, %v1440
          %1442 = vmatmul.mubr.f32.gmra.mrb[0].mxu0 %v1441
          %v1443 = vpop.f32.mrb[0].mxu0
          %v1444 = vadd.f32 %v1129, %v1443
          %v1445 = vpop.f32.mrb[0].mxu0
          %v1446 = vand.u32 %v326, 4294901760
          %v1447 = vsub.f32 %v326, %v1446
          %1448 = vmatprep.mubr.f32.mxu0 %v1447
          %v1449 = vand.u32 %v325, 4294901760
          %v1450 = vsub.f32 %v325, %v1449
          %1451 = vmatmul.mubr.f32.gmra.mrb[0].mxu0 %v1450
          %v1452 = vpop.f32.mrb[0].mxu0
          %v1453 = vadd.f32 %v1136, %v1452
          %v1454 = vpop.f32.mrb[0].mxu0
          %v1455 = vand.u32 %v328, 4294901760
          %v1456 = vsub.f32 %v328, %v1455
          %1457 = vmatprep.mubr.f32.mxu0 %v1456
          %v1458 = vand.u32 %v327, 4294901760
          %v1459 = vsub.f32 %v327, %v1458
          %1460 = vmatmul.mubr.f32.gmra.mrb[0].mxu0 %v1459
          %v1461 = vpop.f32.mrb[0].mxu0
          %v1462 = vadd.f32 %v1143, %v1461
          %v1463 = vpop.f32.mrb[0].mxu0
          %v1464 = vand.u32 %v330, 4294901760
          %v1465 = vsub.f32 %v330, %v1464
          %1466 = vmatprep.mubr.f32.mxu0 %v1465
          %v1467 = vand.u32 %v329, 4294901760
          %v1468 = vsub.f32 %v329, %v1467
          %1469 = vmatmul.mubr.f32.gmra.mrb[0].mxu0 %v1468
          %v1470 = vpop.f32.mrb[0].mxu0
          %v1471 = vadd.f32 %v1150, %v1470
          %v1472 = vpop.f32.mrb[0].mxu0
          %v1473 = vand.u32 %v332, 4294901760
          %v1474 = vsub.f32 %v332, %v1473
          %1475 = vmatprep.mubr.f32.mxu0 %v1474
          %v1476 = vand.u32 %v331, 4294901760
          %v1477 = vsub.f32 %v331, %v1476
          %1478 = vmatmul.mubr.f32.gmra.mrb[0].mxu0 %v1477
          %v1479 = vpop.f32.mrb[0].mxu0
          %v1480 = vadd.f32 %v1157, %v1479
          %v1481 = vpop.f32.mrb[0].mxu0
          %v1482 = vand.u32 %v334, 4294901760
          %v1483 = vsub.f32 %v334, %v1482
          %1484 = vmatprep.mubr.f32.mxu0 %v1483
          %v1485 = vand.u32 %v333, 4294901760
          %v1486 = vsub.f32 %v333, %v1485
          %1487 = vmatmul.mubr.f32.gmra.mrb[0].mxu0 %v1486
          %v1488 = vpop.f32.mrb[0].mxu0
          %v1489 = vadd.f32 %v1164, %v1488
          %v1490 = vpop.f32.mrb[0].mxu0
          %v1491 = vand.u32 %v336, 4294901760
          %v1492 = vsub.f32 %v336, %v1491
          %1493 = vmatprep.mubr.f32.mxu0 %v1492
          %v1494 = vand.u32 %v335, 4294901760
          %v1495 = vsub.f32 %v335, %v1494
          %1496 = vmatmul.mubr.f32.gmra.mrb[0].mxu0 %v1495
          %v1497 = vpop.f32.mrb[0].mxu0
          %v1498 = vadd.f32 %v1171, %v1497
          %v1499 = vpop.f32.mrb[0].mxu0
          %v1500 = vand.u32 %v338, 4294901760
          %v1501 = vsub.f32 %v338, %v1500
          %1502 = vmatprep.mubr.f32.mxu0 %v1501
          %v1503 = vand.u32 %v337, 4294901760
          %v1504 = vsub.f32 %v337, %v1503
          %1505 = vmatmul.mubr.f32.gmra.mrb[0].mxu0 %v1504
          %v1506 = vpop.f32.mrb[0].mxu0
          %v1507 = vadd.f32 %v1178, %v1506
          %v1508 = vpop.f32.mrb[0].mxu0
          %v1509 = vand.u32 %v340, 4294901760
          %v1510 = vsub.f32 %v340, %v1509
          %1511 = vmatprep.mubr.f32.mxu0 %v1510
          %v1512 = vand.u32 %v339, 4294901760
          %v1513 = vsub.f32 %v339, %v1512
          %1514 = vmatmul.mubr.f32.gmra.mrb[0].mxu0 %v1513
          %v1515 = vpop.f32.mrb[0].mxu0
          %v1516 = vadd.f32 %v1185, %v1515
          %v1517 = vpop.f32.mrb[0].mxu0
          %v1518 = vand.u32 %v342, 4294901760
          %v1519 = vsub.f32 %v342, %v1518
          %1520 = vmatprep.mubr.f32.mxu0 %v1519
          %v1521 = vand.u32 %v341, 4294901760
          %v1522 = vsub.f32 %v341, %v1521
          %1523 = vmatmul.mubr.f32.gmra.mrb[0].mxu0 %v1522
          %v1524 = vpop.f32.mrb[0].mxu0
          %v1525 = vadd.f32 %v1192, %v1524
          %v1526 = vpop.f32.mrb[0].mxu0
          %v1527 = vand.u32 %v344, 4294901760
          %v1528 = vsub.f32 %v344, %v1527
          %1529 = vmatprep.mubr.f32.mxu0 %v1528
          %v1530 = vand.u32 %v343, 4294901760
          %v1531 = vsub.f32 %v343, %v1530
          %1532 = vmatmul.mubr.f32.gmra.mrb[0].mxu0 %v1531
          %v1533 = vpop.f32.mrb[0].mxu0
          %v1534 = vadd.f32 %v1199, %v1533
          %v1535 = vpop.f32.mrb[0].mxu0
          %v1536 = vand.u32 %v346, 4294901760
          %v1537 = vsub.f32 %v346, %v1536
          %1538 = vmatprep.mubr.f32.mxu0 %v1537
          %v1539 = vand.u32 %v345, 4294901760
          %v1540 = vsub.f32 %v345, %v1539
          %1541 = vmatmul.mubr.f32.gmra.mrb[0].mxu0 %v1540
          %v1542 = vpop.f32.mrb[0].mxu0
          %v1543 = vadd.f32 %v1206, %v1542
          %v1544 = vpop.f32.mrb[0].mxu0
          %v1545 = vand.u32 %v348, 4294901760
          %v1546 = vsub.f32 %v348, %v1545
          %1547 = vmatprep.mubr.f32.mxu0 %v1546
          %v1548 = vand.u32 %v347, 4294901760
          %v1549 = vsub.f32 %v347, %v1548
          %1550 = vmatmul.mubr.f32.gmra.mrb[0].mxu0 %v1549
          %v1551 = vpop.f32.mrb[0].mxu0
          %v1552 = vadd.f32 %v1213, %v1551
          %v1553 = vpop.f32.mrb[0].mxu0
          %v1554 = vand.u32 %v350, 4294901760
          %v1555 = vsub.f32 %v350, %v1554
          %1556 = vmatprep.mubr.f32.mxu0 %v1555
          %v1557 = vand.u32 %v349, 4294901760
          %v1558 = vsub.f32 %v349, %v1557
          %1559 = vmatmul.mubr.f32.gmra.mrb[0].mxu0 %v1558
          %v1560 = vpop.f32.mrb[0].mxu0
          %v1561 = vadd.f32 %v1220, %v1560
          %v1562 = vpop.f32.mrb[0].mxu0
          %v1563 = vand.u32 %v352, 4294901760
          %v1564 = vsub.f32 %v352, %v1563
          %1565 = vmatprep.mubr.f32.mxu0 %v1564
          %v1566 = vand.u32 %v351, 4294901760
          %v1567 = vsub.f32 %v351, %v1566
          %1568 = vmatmul.mubr.f32.gmra.mrb[0].mxu0 %v1567
          %v1569 = vpop.f32.mrb[0].mxu0
          %v1570 = vadd.f32 %v1227, %v1569
          %v1571 = vpop.f32.mrb[0].mxu0
          %v1572 = vand.u32 %v354, 4294901760
          %v1573 = vsub.f32 %v354, %v1572
          %1574 = vmatprep.mubr.f32.mxu0 %v1573
          %v1575 = vand.u32 %v353, 4294901760
          %v1576 = vsub.f32 %v353, %v1575
          %1577 = vmatmul.mubr.f32.gmra.mrb[0].mxu0 %v1576
          %v1578 = vpop.f32.mrb[0].mxu0
          %v1579 = vadd.f32 %v1234, %v1578
          %v1580 = vpop.f32.mrb[0].mxu0
          %1581 = vdwg.mxu0
          %1582 = vmatprep.subr.mxu0 0.0
          %v1583 = vand.u32 %v355, 4294901760
          %1584 = vmatpush1.msra.mxu0 %v1583
          %1585 = vmatprep.subr.mxu0 0.0
          %v1586 = vand.u32 %v356, 4294901760
          %1587 = vmatpush1.msra.mxu0 %v1586
          %1588 = vmatprep.subr.mxu0 0.0
          %v1589 = vand.u32 %v357, 4294901760
          %1590 = vmatpush1.msra.mxu0 %v1589
          %1591 = vmatprep.subr.mxu0 0.0
          %v1592 = vand.u32 %v358, 4294901760
          %1593 = vmatpush1.msra.mxu0 %v1592
          %1594 = vmatprep.subr.mxu0 0.0
          %v1595 = vand.u32 %v359, 4294901760
          %1596 = vmatpush1.msra.mxu0 %v1595
          %1597 = vmatprep.subr.mxu0 0.0
          %v1598 = vand.u32 %v360, 4294901760
          %1599 = vmatpush1.msra.mxu0 %v1598
          %1600 = vmatprep.subr.mxu0 0.0
          %v1601 = vand.u32 %v361, 4294901760
          %1602 = vmatpush1.msra.mxu0 %v1601
          %1603 = vmatprep.subr.mxu0 0.0
          %v1604 = vand.u32 %v362, 4294901760
          %1605 = vmatpush1.msra.mxu0 %v1604
          %1606 = vmatprep.subr.mxu0 0.0
          %v1607 = vand.u32 %v363, 4294901760
          %1608 = vmatpush1.msra.mxu0 %v1607
          %1609 = vmatprep.subr.mxu0 0.0
          %v1610 = vand.u32 %v364, 4294901760
          %1611 = vmatpush1.msra.mxu0 %v1610
          %1612 = vmatprep.subr.mxu0 0.0
          %v1613 = vand.u32 %v365, 4294901760
          %1614 = vmatpush1.msra.mxu0 %v1613
          %1615 = vmatprep.subr.mxu0 0.0
          %v1616 = vand.u32 %v366, 4294901760
          %1617 = vmatpush1.msra.mxu0 %v1616
          %1618 = vmatprep.subr.mxu0 0.0
          %v1619 = vand.u32 %v367, 4294901760
          %1620 = vmatpush1.msra.mxu0 %v1619
          %1621 = vmatprep.subr.mxu0 0.0
          %v1622 = vand.u32 %v368, 4294901760
          %1623 = vmatpush1.msra.mxu0 %v1622
          %1624 = vmatprep.subr.mxu0 0.0
          %v1625 = vand.u32 %v369, 4294901760
          %1626 = vmatpush1.msra.mxu0 %v1625
          %1627 = vmatprep.subr.mxu0 0.0
          %v1628 = vand.u32 %v370, 4294901760
          %1629 = vmatpush1.msra.mxu0 %v1628
          %1630 = vmatprep.subr.mxu0 0.0
          %v1631 = vand.u32 %v371, 4294901760
          %1632 = vmatpush1.msra.mxu0 %v1631
          %1633 = vmatprep.subr.mxu0 0.0
          %v1634 = vand.u32 %v372, 4294901760
          %1635 = vmatpush1.msra.mxu0 %v1634
          %1636 = vmatprep.subr.mxu0 0.0
          %v1637 = vand.u32 %v373, 4294901760
          %1638 = vmatpush1.msra.mxu0 %v1637
          %1639 = vmatprep.subr.mxu0 0.0
          %v1640 = vand.u32 %v374, 4294901760
          %1641 = vmatpush1.msra.mxu0 %v1640
          %1642 = vmatprep.subr.mxu0 0.0
          %v1643 = vand.u32 %v375, 4294901760
          %1644 = vmatpush1.msra.mxu0 %v1643
          %1645 = vmatprep.subr.mxu0 0.0
          %v1646 = vand.u32 %v376, 4294901760
          %1647 = vmatpush1.msra.mxu0 %v1646
          %1648 = vmatprep.subr.mxu0 0.0
          %v1649 = vand.u32 %v377, 4294901760
          %1650 = vmatpush1.msra.mxu0 %v1649
          %1651 = vmatprep.subr.mxu0 0.0
          %v1652 = vand.u32 %v378, 4294901760
          %1653 = vmatpush1.msra.mxu0 %v1652
          %1654 = vmatprep.subr.mxu0 0.0
          %v1655 = vand.u32 %v379, 4294901760
          %1656 = vmatpush1.msra.mxu0 %v1655
          %1657 = vmatprep.subr.mxu0 0.0
          %v1658 = vand.u32 %v380, 4294901760
          %1659 = vmatpush1.msra.mxu0 %v1658
          %1660 = vmatprep.subr.mxu0 0.0
          %v1661 = vand.u32 %v381, 4294901760
          %1662 = vmatpush1.msra.mxu0 %v1661
          %1663 = vmatprep.subr.mxu0 0.0
          %v1664 = vand.u32 %v382, 4294901760
          %1665 = vmatpush1.msra.mxu0 %v1664
          %1666 = vmatprep.subr.mxu0 0.0
          %v1667 = vand.u32 %v383, 4294901760
          %1668 = vmatpush1.msra.mxu0 %v1667
          %1669 = vmatprep.subr.mxu0 0.0
          %v1670 = vand.u32 %v384, 4294901760
          %1671 = vmatpush1.msra.mxu0 %v1670
          %1672 = vmatprep.subr.mxu0 0.0
          %v1673 = vand.u32 %v385, 4294901760
          %1674 = vmatpush1.msra.mxu0 %v1673
          %1675 = vmatprep.subr.mxu0 0.0
          %v1676 = vand.u32 %v386, 4294901760
          %1677 = vmatpush1.msra.mxu0 %v1676
          %v1678 = vand.u32 %v308, 4294901760
          %v1679 = vsub.f32 %v308, %v1678
          %v1680 = vand.u32 %v1679, 4294901760
          %1681 = vmatprep.mubr.f32.mxu0 %v1680
          %v1682 = vand.u32 %v307, 4294901760
          %v1683 = vsub.f32 %v307, %v1682
          %v1684 = vand.u32 %v1683, 4294901760
          %1685 = vmatmul.mubr.f32.gmra.mrb[0].mxu0 %v1684
          %v1686 = vpop.f32.mrb[0].mxu0
          %v1687 = vadd.f32 %v1372, %v1686
          %v1688 = vpop.f32.mrb[0].mxu0
          %v1689 = vand.u32 %v310, 4294901760
          %v1690 = vsub.f32 %v310, %v1689
          %v1691 = vand.u32 %v1690, 4294901760
          %1692 = vmatprep.mubr.f32.mxu0 %v1691
          %v1693 = vand.u32 %v309, 4294901760
          %v1694 = vsub.f32 %v309, %v1693
          %v1695 = vand.u32 %v1694, 4294901760
          %1696 = vmatmul.mubr.f32.gmra.mrb[0].mxu0 %v1695
          %v1697 = vpop.f32.mrb[0].mxu0
          %v1698 = vadd.f32 %v1381, %v1697
          %v1699 = vpop.f32.mrb[0].mxu0
          %v1700 = vand.u32 %v312, 4294901760
          %v1701 = vsub.f32 %v312, %v1700
          %v1702 = vand.u32 %v1701, 4294901760
          %1703 = vmatprep.mubr.f32.mxu0 %v1702
          %v1704 = vand.u32 %v311, 4294901760
          %v1705 = vsub.f32 %v311, %v1704
          %v1706 = vand.u32 %v1705, 4294901760
          %1707 = vmatmul.mubr.f32.gmra.mrb[0].mxu0 %v1706
          %v1708 = vpop.f32.mrb[0].mxu0
          %v1709 = vadd.f32 %v1390, %v1708
          %v1710 = vpop.f32.mrb[0].mxu0
          %v1711 = vand.u32 %v314, 4294901760
          %v1712 = vsub.f32 %v314, %v1711
          %v1713 = vand.u32 %v1712, 4294901760
          %1714 = vmatprep.mubr.f32.mxu0 %v1713
          %v1715 = vand.u32 %v313, 4294901760
          %v1716 = vsub.f32 %v313, %v1715
          %v1717 = vand.u32 %v1716, 4294901760
          %1718 = vmatmul.mubr.f32.gmra.mrb[0].mxu0 %v1717
          %v1719 = vpop.f32.mrb[0].mxu0
          %v1720 = vadd.f32 %v1399, %v1719
          %v1721 = vpop.f32.mrb[0].mxu0
          %v1722 = vand.u32 %v316, 4294901760
          %v1723 = vsub.f32 %v316, %v1722
          %v1724 = vand.u32 %v1723, 4294901760
          %1725 = vmatprep.mubr.f32.mxu0 %v1724
          %v1726 = vand.u32 %v315, 4294901760
          %v1727 = vsub.f32 %v315, %v1726
          %v1728 = vand.u32 %v1727, 4294901760
          %1729 = vmatmul.mubr.f32.gmra.mrb[0].mxu0 %v1728
          %v1730 = vpop.f32.mrb[0].mxu0
          %v1731 = vadd.f32 %v1408, %v1730
          %v1732 = vpop.f32.mrb[0].mxu0
          %v1733 = vand.u32 %v318, 4294901760
          %v1734 = vsub.f32 %v318, %v1733
          %v1735 = vand.u32 %v1734, 4294901760
          %1736 = vmatprep.mubr.f32.mxu0 %v1735
          %v1737 = vand.u32 %v317, 4294901760
          %v1738 = vsub.f32 %v317, %v1737
          %v1739 = vand.u32 %v1738, 4294901760
          %1740 = vmatmul.mubr.f32.gmra.mrb[0].mxu0 %v1739
          %v1741 = vpop.f32.mrb[0].mxu0
          %v1742 = vadd.f32 %v1417, %v1741
          %v1743 = vpop.f32.mrb[0].mxu0
          %v1744 = vand.u32 %v320, 4294901760
          %v1745 = vsub.f32 %v320, %v1744
          %v1746 = vand.u32 %v1745, 4294901760
          %1747 = vmatprep.mubr.f32.mxu0 %v1746
          %v1748 = vand.u32 %v319, 4294901760
          %v1749 = vsub.f32 %v319, %v1748
          %v1750 = vand.u32 %v1749, 4294901760
          %1751 = vmatmul.mubr.f32.gmra.mrb[0].mxu0 %v1750
          %v1752 = vpop.f32.mrb[0].mxu0
          %v1753 = vadd.f32 %v1426, %v1752
          %v1754 = vpop.f32.mrb[0].mxu0
          %v1755 = vand.u32 %v322, 4294901760
          %v1756 = vsub.f32 %v322, %v1755
          %v1757 = vand.u32 %v1756, 4294901760
          %1758 = vmatprep.mubr.f32.mxu0 %v1757
          %v1759 = vand.u32 %v321, 4294901760
          %v1760 = vsub.f32 %v321, %v1759
          %v1761 = vand.u32 %v1760, 4294901760
          %1762 = vmatmul.mubr.f32.gmra.mrb[0].mxu0 %v1761
          %v1763 = vpop.f32.mrb[0].mxu0
          %v1764 = vadd.f32 %v1435, %v1763
          %v1765 = vpop.f32.mrb[0].mxu0
          %v1766 = vand.u32 %v324, 4294901760
          %v1767 = vsub.f32 %v324, %v1766
          %v1768 = vand.u32 %v1767, 4294901760
          %1769 = vmatprep.mubr.f32.mxu0 %v1768
          %v1770 = vand.u32 %v323, 4294901760
          %v1771 = vsub.f32 %v323, %v1770
          %v1772 = vand.u32 %v1771, 4294901760
          %1773 = vmatmul.mubr.f32.gmra.mrb[0].mxu0 %v1772
          %v1774 = vpop.f32.mrb[0].mxu0
          %v1775 = vadd.f32 %v1444, %v1774
          %v1776 = vpop.f32.mrb[0].mxu0
          %v1777 = vand.u32 %v326, 4294901760
          %v1778 = vsub.f32 %v326, %v1777
          %v1779 = vand.u32 %v1778, 4294901760
          %1780 = vmatprep.mubr.f32.mxu0 %v1779
          %v1781 = vand.u32 %v325, 4294901760
          %v1782 = vsub.f32 %v325, %v1781
          %v1783 = vand.u32 %v1782, 4294901760
          %1784 = vmatmul.mubr.f32.gmra.mrb[0].mxu0 %v1783
          %v1785 = vpop.f32.mrb[0].mxu0
          %v1786 = vadd.f32 %v1453, %v1785
          %v1787 = vpop.f32.mrb[0].mxu0
          %v1788 = vand.u32 %v328, 4294901760
          %v1789 = vsub.f32 %v328, %v1788
          %v1790 = vand.u32 %v1789, 4294901760
          %1791 = vmatprep.mubr.f32.mxu0 %v1790
          %v1792 = vand.u32 %v327, 4294901760
          %v1793 = vsub.f32 %v327, %v1792
          %v1794 = vand.u32 %v1793, 4294901760
          %1795 = vmatmul.mubr.f32.gmra.mrb[0].mxu0 %v1794
          %v1796 = vpop.f32.mrb[0].mxu0
          %v1797 = vadd.f32 %v1462, %v1796
          %v1798 = vpop.f32.mrb[0].mxu0
          %v1799 = vand.u32 %v330, 4294901760
          %v1800 = vsub.f32 %v330, %v1799
          %v1801 = vand.u32 %v1800, 4294901760
          %1802 = vmatprep.mubr.f32.mxu0 %v1801
          %v1803 = vand.u32 %v329, 4294901760
          %v1804 = vsub.f32 %v329, %v1803
          %v1805 = vand.u32 %v1804, 4294901760
          %1806 = vmatmul.mubr.f32.gmra.mrb[0].mxu0 %v1805
          %v1807 = vpop.f32.mrb[0].mxu0
          %v1808 = vadd.f32 %v1471, %v1807
          %v1809 = vpop.f32.mrb[0].mxu0
          %v1810 = vand.u32 %v332, 4294901760
          %v1811 = vsub.f32 %v332, %v1810
          %v1812 = vand.u32 %v1811, 4294901760
          %1813 = vmatprep.mubr.f32.mxu0 %v1812
          %v1814 = vand.u32 %v331, 4294901760
          %v1815 = vsub.f32 %v331, %v1814
          %v1816 = vand.u32 %v1815, 4294901760
          %1817 = vmatmul.mubr.f32.gmra.mrb[0].mxu0 %v1816
          %v1818 = vpop.f32.mrb[0].mxu0
          %v1819 = vadd.f32 %v1480, %v1818
          %v1820 = vpop.f32.mrb[0].mxu0
          %v1821 = vand.u32 %v334, 4294901760
          %v1822 = vsub.f32 %v334, %v1821
          %v1823 = vand.u32 %v1822, 4294901760
          %1824 = vmatprep.mubr.f32.mxu0 %v1823
          %v1825 = vand.u32 %v333, 4294901760
          %v1826 = vsub.f32 %v333, %v1825
          %v1827 = vand.u32 %v1826, 4294901760
          %1828 = vmatmul.mubr.f32.gmra.mrb[0].mxu0 %v1827
          %v1829 = vpop.f32.mrb[0].mxu0
          %v1830 = vadd.f32 %v1489, %v1829
          %v1831 = vpop.f32.mrb[0].mxu0
          %v1832 = vand.u32 %v336, 4294901760
          %v1833 = vsub.f32 %v336, %v1832
          %v1834 = vand.u32 %v1833, 4294901760
          %1835 = vmatprep.mubr.f32.mxu0 %v1834
          %v1836 = vand.u32 %v335, 4294901760
          %v1837 = vsub.f32 %v335, %v1836
          %v1838 = vand.u32 %v1837, 4294901760
          %1839 = vmatmul.mubr.f32.gmra.mrb[0].mxu0 %v1838
          %v1840 = vpop.f32.mrb[0].mxu0
          %v1841 = vadd.f32 %v1498, %v1840
          %v1842 = vpop.f32.mrb[0].mxu0
          %v1843 = vand.u32 %v338, 4294901760
          %v1844 = vsub.f32 %v338, %v1843
          %v1845 = vand.u32 %v1844, 4294901760
          %1846 = vmatprep.mubr.f32.mxu0 %v1845
          %v1847 = vand.u32 %v337, 4294901760
          %v1848 = vsub.f32 %v337, %v1847
          %v1849 = vand.u32 %v1848, 4294901760
          %1850 = vmatmul.mubr.f32.gmra.mrb[0].mxu0 %v1849
          %v1851 = vpop.f32.mrb[0].mxu0
          %v1852 = vadd.f32 %v1507, %v1851
          %v1853 = vpop.f32.mrb[0].mxu0
          %v1854 = vand.u32 %v340, 4294901760
          %v1855 = vsub.f32 %v340, %v1854
          %v1856 = vand.u32 %v1855, 4294901760
          %1857 = vmatprep.mubr.f32.mxu0 %v1856
          %v1858 = vand.u32 %v339, 4294901760
          %v1859 = vsub.f32 %v339, %v1858
          %v1860 = vand.u32 %v1859, 4294901760
          %1861 = vmatmul.mubr.f32.gmra.mrb[0].mxu0 %v1860
          %v1862 = vpop.f32.mrb[0].mxu0
          %v1863 = vadd.f32 %v1516, %v1862
          %v1864 = vpop.f32.mrb[0].mxu0
          %v1865 = vand.u32 %v342, 4294901760
          %v1866 = vsub.f32 %v342, %v1865
          %v1867 = vand.u32 %v1866, 4294901760
          %1868 = vmatprep.mubr.f32.mxu0 %v1867
          %v1869 = vand.u32 %v341, 4294901760
          %v1870 = vsub.f32 %v341, %v1869
          %v1871 = vand.u32 %v1870, 4294901760
          %1872 = vmatmul.mubr.f32.gmra.mrb[0].mxu0 %v1871
          %v1873 = vpop.f32.mrb[0].mxu0
          %v1874 = vadd.f32 %v1525, %v1873
          %v1875 = vpop.f32.mrb[0].mxu0
          %v1876 = vand.u32 %v344, 4294901760
          %v1877 = vsub.f32 %v344, %v1876
          %v1878 = vand.u32 %v1877, 4294901760
          %1879 = vmatprep.mubr.f32.mxu0 %v1878
          %v1880 = vand.u32 %v343, 4294901760
          %v1881 = vsub.f32 %v343, %v1880
          %v1882 = vand.u32 %v1881, 4294901760
          %1883 = vmatmul.mubr.f32.gmra.mrb[0].mxu0 %v1882
          %v1884 = vpop.f32.mrb[0].mxu0
          %v1885 = vadd.f32 %v1534, %v1884
          %v1886 = vpop.f32.mrb[0].mxu0
          %v1887 = vand.u32 %v346, 4294901760
          %v1888 = vsub.f32 %v346, %v1887
          %v1889 = vand.u32 %v1888, 4294901760
          %1890 = vmatprep.mubr.f32.mxu0 %v1889
          %v1891 = vand.u32 %v345, 4294901760
          %v1892 = vsub.f32 %v345, %v1891
          %v1893 = vand.u32 %v1892, 4294901760
          %1894 = vmatmul.mubr.f32.gmra.mrb[0].mxu0 %v1893
          %v1895 = vpop.f32.mrb[0].mxu0
          %v1896 = vadd.f32 %v1543, %v1895
          %v1897 = vpop.f32.mrb[0].mxu0
          %v1898 = vand.u32 %v348, 4294901760
          %v1899 = vsub.f32 %v348, %v1898
          %v1900 = vand.u32 %v1899, 4294901760
          %1901 = vmatprep.mubr.f32.mxu0 %v1900
          %v1902 = vand.u32 %v347, 4294901760
          %v1903 = vsub.f32 %v347, %v1902
          %v1904 = vand.u32 %v1903, 4294901760
          %1905 = vmatmul.mubr.f32.gmra.mrb[0].mxu0 %v1904
          %v1906 = vpop.f32.mrb[0].mxu0
          %v1907 = vadd.f32 %v1552, %v1906
          %v1908 = vpop.f32.mrb[0].mxu0
          %v1909 = vand.u32 %v350, 4294901760
          %v1910 = vsub.f32 %v350, %v1909
          %v1911 = vand.u32 %v1910, 4294901760
          %1912 = vmatprep.mubr.f32.mxu0 %v1911
          %v1913 = vand.u32 %v349, 4294901760
          %v1914 = vsub.f32 %v349, %v1913
          %v1915 = vand.u32 %v1914, 4294901760
          %1916 = vmatmul.mubr.f32.gmra.mrb[0].mxu0 %v1915
          %v1917 = vpop.f32.mrb[0].mxu0
          %v1918 = vadd.f32 %v1561, %v1917
          %v1919 = vpop.f32.mrb[0].mxu0
          %v1920 = vand.u32 %v352, 4294901760
          %v1921 = vsub.f32 %v352, %v1920
          %v1922 = vand.u32 %v1921, 4294901760
          %1923 = vmatprep.mubr.f32.mxu0 %v1922
          %v1924 = vand.u32 %v351, 4294901760
          %v1925 = vsub.f32 %v351, %v1924
          %v1926 = vand.u32 %v1925, 4294901760
          %1927 = vmatmul.mubr.f32.gmra.mrb[0].mxu0 %v1926
          %v1928 = vpop.f32.mrb[0].mxu0
          %v1929 = vadd.f32 %v1570, %v1928
          %v1930 = vpop.f32.mrb[0].mxu0
          %v1931 = vand.u32 %v354, 4294901760
          %v1932 = vsub.f32 %v354, %v1931
          %v1933 = vand.u32 %v1932, 4294901760
          %1934 = vmatprep.mubr.f32.mxu0 %v1933
          %v1935 = vand.u32 %v353, 4294901760
          %v1936 = vsub.f32 %v353, %v1935
          %v1937 = vand.u32 %v1936, 4294901760
          %1938 = vmatmul.mubr.f32.gmra.mrb[0].mxu0 %v1937
          %v1939 = vpop.f32.mrb[0].mxu0
          %v1940 = vadd.f32 %v1579, %v1939
          %v1941 = vpop.f32.mrb[0].mxu0
          %1942 = vdwg.mxu0
          %1943 = vmatprep.subr.mxu0 0.0
          %v1944 = vand.u32 %v355, 4294901760
          %v1945 = vsub.f32 %v355, %v1944
          %v1946 = vand.u32 %v1945, 4294901760
          %1947 = vmatpush1.msra.mxu0 %v1946
          %1948 = vmatprep.subr.mxu0 0.0
          %v1949 = vand.u32 %v356, 4294901760
          %v1950 = vsub.f32 %v356, %v1949
          %v1951 = vand.u32 %v1950, 4294901760
          %1952 = vmatpush1.msra.mxu0 %v1951
          %1953 = vmatprep.subr.mxu0 0.0
          %v1954 = vand.u32 %v357, 4294901760
          %v1955 = vsub.f32 %v357, %v1954
          %v1956 = vand.u32 %v1955, 4294901760
          %1957 = vmatpush1.msra.mxu0 %v1956
          %1958 = vmatprep.subr.mxu0 0.0
          %v1959 = vand.u32 %v358, 4294901760
          %v1960 = vsub.f32 %v358, %v1959
          %v1961 = vand.u32 %v1960, 4294901760
          %1962 = vmatpush1.msra.mxu0 %v1961
          %1963 = vmatprep.subr.mxu0 0.0
          %v1964 = vand.u32 %v359, 4294901760
          %v1965 = vsub.f32 %v359, %v1964
          %v1966 = vand.u32 %v1965, 4294901760
          %1967 = vmatpush1.msra.mxu0 %v1966
          %1968 = vmatprep.subr.mxu0 0.0
          %v1969 = vand.u32 %v360, 4294901760
          %v1970 = vsub.f32 %v360, %v1969
          %v1971 = vand.u32 %v1970, 4294901760
          %1972 = vmatpush1.msra.mxu0 %v1971
          %1973 = vmatprep.subr.mxu0 0.0
          %v1974 = vand.u32 %v361, 4294901760
          %v1975 = vsub.f32 %v361, %v1974
          %v1976 = vand.u32 %v1975, 4294901760
          %1977 = vmatpush1.msra.mxu0 %v1976
          %1978 = vmatprep.subr.mxu0 0.0
          %v1979 = vand.u32 %v362, 4294901760
          %v1980 = vsub.f32 %v362, %v1979
          %v1981 = vand.u32 %v1980, 4294901760
          %1982 = vmatpush1.msra.mxu0 %v1981
          %1983 = vmatprep.subr.mxu0 0.0
          %v1984 = vand.u32 %v363, 4294901760
          %v1985 = vsub.f32 %v363, %v1984
          %v1986 = vand.u32 %v1985, 4294901760
          %1987 = vmatpush1.msra.mxu0 %v1986
          %1988 = vmatprep.subr.mxu0 0.0
          %v1989 = vand.u32 %v364, 4294901760
          %v1990 = vsub.f32 %v364, %v1989
          %v1991 = vand.u32 %v1990, 4294901760
          %1992 = vmatpush1.msra.mxu0 %v1991
          %1993 = vmatprep.subr.mxu0 0.0
          %v1994 = vand.u32 %v365, 4294901760
          %v1995 = vsub.f32 %v365, %v1994
          %v1996 = vand.u32 %v1995, 4294901760
          %1997 = vmatpush1.msra.mxu0 %v1996
          %1998 = vmatprep.subr.mxu0 0.0
          %v1999 = vand.u32 %v366, 4294901760
          %v2000 = vsub.f32 %v366, %v1999
          %v2001 = vand.u32 %v2000, 4294901760
          %2002 = vmatpush1.msra.mxu0 %v2001
          %2003 = vmatprep.subr.mxu0 0.0
          %v2004 = vand.u32 %v367, 4294901760
          %v2005 = vsub.f32 %v367, %v2004
          %v2006 = vand.u32 %v2005, 4294901760
          %2007 = vmatpush1.msra.mxu0 %v2006
          %2008 = vmatprep.subr.mxu0 0.0
          %v2009 = vand.u32 %v368, 4294901760
          %v2010 = vsub.f32 %v368, %v2009
          %v2011 = vand.u32 %v2010, 4294901760
          %2012 = vmatpush1.msra.mxu0 %v2011
          %2013 = vmatprep.subr.mxu0 0.0
          %v2014 = vand.u32 %v369, 4294901760
          %v2015 = vsub.f32 %v369, %v2014
          %v2016 = vand.u32 %v2015, 4294901760
          %2017 = vmatpush1.msra.mxu0 %v2016
          %2018 = vmatprep.subr.mxu0 0.0
          %v2019 = vand.u32 %v370, 4294901760
          %v2020 = vsub.f32 %v370, %v2019
          %v2021 = vand.u32 %v2020, 4294901760
          %2022 = vmatpush1.msra.mxu0 %v2021
          %2023 = vmatprep.subr.mxu0 0.0
          %v2024 = vand.u32 %v371, 4294901760
          %v2025 = vsub.f32 %v371, %v2024
          %v2026 = vand.u32 %v2025, 4294901760
          %2027 = vmatpush1.msra.mxu0 %v2026
          %2028 = vmatprep.subr.mxu0 0.0
          %v2029 = vand.u32 %v372, 4294901760
          %v2030 = vsub.f32 %v372, %v2029
          %v2031 = vand.u32 %v2030, 4294901760
          %2032 = vmatpush1.msra.mxu0 %v2031
          %2033 = vmatprep.subr.mxu0 0.0
          %v2034 = vand.u32 %v373, 4294901760
          %v2035 = vsub.f32 %v373, %v2034
          %v2036 = vand.u32 %v2035, 4294901760
          %2037 = vmatpush1.msra.mxu0 %v2036
          %2038 = vmatprep.subr.mxu0 0.0
          %v2039 = vand.u32 %v374, 4294901760
          %v2040 = vsub.f32 %v374, %v2039
          %v2041 = vand.u32 %v2040, 4294901760
          %2042 = vmatpush1.msra.mxu0 %v2041
          %2043 = vmatprep.subr.mxu0 0.0
          %v2044 = vand.u32 %v375, 4294901760
          %v2045 = vsub.f32 %v375, %v2044
          %v2046 = vand.u32 %v2045, 4294901760
          %2047 = vmatpush1.msra.mxu0 %v2046
          %2048 = vmatprep.subr.mxu0 0.0
          %v2049 = vand.u32 %v376, 4294901760
          %v2050 = vsub.f32 %v376, %v2049
          %v2051 = vand.u32 %v2050, 4294901760
          %2052 = vmatpush1.msra.mxu0 %v2051
          %2053 = vmatprep.subr.mxu0 0.0
          %v2054 = vand.u32 %v377, 4294901760
          %v2055 = vsub.f32 %v377, %v2054
          %v2056 = vand.u32 %v2055, 4294901760
          %2057 = vmatpush1.msra.mxu0 %v2056
          %2058 = vmatprep.subr.mxu0 0.0
          %v2059 = vand.u32 %v378, 4294901760
          %v2060 = vsub.f32 %v378, %v2059
          %v2061 = vand.u32 %v2060, 4294901760
          %2062 = vmatpush1.msra.mxu0 %v2061
          %2063 = vmatprep.subr.mxu0 0.0
          %v2064 = vand.u32 %v379, 4294901760
          %v2065 = vsub.f32 %v379, %v2064
          %v2066 = vand.u32 %v2065, 4294901760
          %2067 = vmatpush1.msra.mxu0 %v2066
          %2068 = vmatprep.subr.mxu0 0.0
          %v2069 = vand.u32 %v380, 4294901760
          %v2070 = vsub.f32 %v380, %v2069
          %v2071 = vand.u32 %v2070, 4294901760
          %2072 = vmatpush1.msra.mxu0 %v2071
          %2073 = vmatprep.subr.mxu0 0.0
          %v2074 = vand.u32 %v381, 4294901760
          %v2075 = vsub.f32 %v381, %v2074
          %v2076 = vand.u32 %v2075, 4294901760
          %2077 = vmatpush1.msra.mxu0 %v2076
          %2078 = vmatprep.subr.mxu0 0.0
          %v2079 = vand.u32 %v382, 4294901760
          %v2080 = vsub.f32 %v382, %v2079
          %v2081 = vand.u32 %v2080, 4294901760
          %2082 = vmatpush1.msra.mxu0 %v2081
          %2083 = vmatprep.subr.mxu0 0.0
          %v2084 = vand.u32 %v383, 4294901760
          %v2085 = vsub.f32 %v383, %v2084
          %v2086 = vand.u32 %v2085, 4294901760
          %2087 = vmatpush1.msra.mxu0 %v2086
          %2088 = vmatprep.subr.mxu0 0.0
          %v2089 = vand.u32 %v384, 4294901760
          %v2090 = vsub.f32 %v384, %v2089
          %v2091 = vand.u32 %v2090, 4294901760
          %2092 = vmatpush1.msra.mxu0 %v2091
          %2093 = vmatprep.subr.mxu0 0.0
          %v2094 = vand.u32 %v385, 4294901760
          %v2095 = vsub.f32 %v385, %v2094
          %v2096 = vand.u32 %v2095, 4294901760
          %2097 = vmatpush1.msra.mxu0 %v2096
          %2098 = vmatprep.subr.mxu0 0.0
          %v2099 = vand.u32 %v386, 4294901760
          %v2100 = vsub.f32 %v386, %v2099
          %v2101 = vand.u32 %v2100, 4294901760
          %2102 = vmatpush1.msra.mxu0 %v2101
          %v2103 = vand.u32 %v308, 4294901760
          %2104 = vmatprep.mubr.f32.mxu0 %v2103
          %v2105 = vand.u32 %v307, 4294901760
          %2106 = vmatmul.mubr.f32.gmra.mrb[0].mxu0 %v2105
          %v2107 = vpop.f32.mrb[0].mxu0
          %v2108 = vadd.f32 %v1687, %v2107
          %v2109 = vpop.f32.mrb[0].mxu0
          %v2110 = vand.u32 %v310, 4294901760
          %2111 = vmatprep.mubr.f32.mxu0 %v2110
          %v2112 = vand.u32 %v309, 4294901760
          %2113 = vmatmul.mubr.f32.gmra.mrb[0].mxu0 %v2112
          %v2114 = vpop.f32.mrb[0].mxu0
          %v2115 = vadd.f32 %v1698, %v2114
          %v2116 = vpop.f32.mrb[0].mxu0
          %v2117 = vand.u32 %v312, 4294901760
          %2118 = vmatprep.mubr.f32.mxu0 %v2117
          %v2119 = vand.u32 %v311, 4294901760
          %2120 = vmatmul.mubr.f32.gmra.mrb[0].mxu0 %v2119
          %v2121 = vpop.f32.mrb[0].mxu0
          %v2122 = vadd.f32 %v1709, %v2121
          %v2123 = vpop.f32.mrb[0].mxu0
          %v2124 = vand.u32 %v314, 4294901760
          %2125 = vmatprep.mubr.f32.mxu0 %v2124
          %v2126 = vand.u32 %v313, 4294901760
          %2127 = vmatmul.mubr.f32.gmra.mrb[0].mxu0 %v2126
          %v2128 = vpop.f32.mrb[0].mxu0
          %v2129 = vadd.f32 %v1720, %v2128
          %v2130 = vpop.f32.mrb[0].mxu0
          %v2131 = vand.u32 %v316, 4294901760
          %2132 = vmatprep.mubr.f32.mxu0 %v2131
          %v2133 = vand.u32 %v315, 4294901760
          %2134 = vmatmul.mubr.f32.gmra.mrb[0].mxu0 %v2133
          %v2135 = vpop.f32.mrb[0].mxu0
          %v2136 = vadd.f32 %v1731, %v2135
          %v2137 = vpop.f32.mrb[0].mxu0
          %v2138 = vand.u32 %v318, 4294901760
          %2139 = vmatprep.mubr.f32.mxu0 %v2138
          %v2140 = vand.u32 %v317, 4294901760
          %2141 = vmatmul.mubr.f32.gmra.mrb[0].mxu0 %v2140
          %v2142 = vpop.f32.mrb[0].mxu0
          %v2143 = vadd.f32 %v1742, %v2142
          %v2144 = vpop.f32.mrb[0].mxu0
          %v2145 = vand.u32 %v320, 4294901760
          %2146 = vmatprep.mubr.f32.mxu0 %v2145
          %v2147 = vand.u32 %v319, 4294901760
          %2148 = vmatmul.mubr.f32.gmra.mrb[0].mxu0 %v2147
          %v2149 = vpop.f32.mrb[0].mxu0
          %v2150 = vadd.f32 %v1753, %v2149
          %v2151 = vpop.f32.mrb[0].mxu0
          %v2152 = vand.u32 %v322, 4294901760
          %2153 = vmatprep.mubr.f32.mxu0 %v2152
          %v2154 = vand.u32 %v321, 4294901760
          %2155 = vmatmul.mubr.f32.gmra.mrb[0].mxu0 %v2154
          %v2156 = vpop.f32.mrb[0].mxu0
          %v2157 = vadd.f32 %v1764, %v2156
          %v2158 = vpop.f32.mrb[0].mxu0
          %v2159 = vand.u32 %v324, 4294901760
          %2160 = vmatprep.mubr.f32.mxu0 %v2159
          %v2161 = vand.u32 %v323, 4294901760
          %2162 = vmatmul.mubr.f32.gmra.mrb[0].mxu0 %v2161
          %v2163 = vpop.f32.mrb[0].mxu0
          %v2164 = vadd.f32 %v1775, %v2163
          %v2165 = vpop.f32.mrb[0].mxu0
          %v2166 = vand.u32 %v326, 4294901760
          %2167 = vmatprep.mubr.f32.mxu0 %v2166
          %v2168 = vand.u32 %v325, 4294901760
          %2169 = vmatmul.mubr.f32.gmra.mrb[0].mxu0 %v2168
          %v2170 = vpop.f32.mrb[0].mxu0
          %v2171 = vadd.f32 %v1786, %v2170
          %v2172 = vpop.f32.mrb[0].mxu0
          %v2173 = vand.u32 %v328, 4294901760
          %2174 = vmatprep.mubr.f32.mxu0 %v2173
          %v2175 = vand.u32 %v327, 4294901760
          %2176 = vmatmul.mubr.f32.gmra.mrb[0].mxu0 %v2175
          %v2177 = vpop.f32.mrb[0].mxu0
          %v2178 = vadd.f32 %v1797, %v2177
          %v2179 = vpop.f32.mrb[0].mxu0
          %v2180 = vand.u32 %v330, 4294901760
          %2181 = vmatprep.mubr.f32.mxu0 %v2180
          %v2182 = vand.u32 %v329, 4294901760
          %2183 = vmatmul.mubr.f32.gmra.mrb[0].mxu0 %v2182
          %v2184 = vpop.f32.mrb[0].mxu0
          %v2185 = vadd.f32 %v1808, %v2184
          %v2186 = vpop.f32.mrb[0].mxu0
          %v2187 = vand.u32 %v332, 4294901760
          %2188 = vmatprep.mubr.f32.mxu0 %v2187
          %v2189 = vand.u32 %v331, 4294901760
          %2190 = vmatmul.mubr.f32.gmra.mrb[0].mxu0 %v2189
          %v2191 = vpop.f32.mrb[0].mxu0
          %v2192 = vadd.f32 %v1819, %v2191
          %v2193 = vpop.f32.mrb[0].mxu0
          %v2194 = vand.u32 %v334, 4294901760
          %2195 = vmatprep.mubr.f32.mxu0 %v2194
          %v2196 = vand.u32 %v333, 4294901760
          %2197 = vmatmul.mubr.f32.gmra.mrb[0].mxu0 %v2196
          %v2198 = vpop.f32.mrb[0].mxu0
          %v2199 = vadd.f32 %v1830, %v2198
          %v2200 = vpop.f32.mrb[0].mxu0
          %v2201 = vand.u32 %v336, 4294901760
          %2202 = vmatprep.mubr.f32.mxu0 %v2201
          %v2203 = vand.u32 %v335, 4294901760
          %2204 = vmatmul.mubr.f32.gmra.mrb[0].mxu0 %v2203
          %v2205 = vpop.f32.mrb[0].mxu0
          %v2206 = vadd.f32 %v1841, %v2205
          %v2207 = vpop.f32.mrb[0].mxu0
          %v2208 = vand.u32 %v338, 4294901760
          %2209 = vmatprep.mubr.f32.mxu0 %v2208
          %v2210 = vand.u32 %v337, 4294901760
          %2211 = vmatmul.mubr.f32.gmra.mrb[0].mxu0 %v2210
          %v2212 = vpop.f32.mrb[0].mxu0
          %v2213 = vadd.f32 %v1852, %v2212
          %v2214 = vpop.f32.mrb[0].mxu0
          %v2215 = vand.u32 %v340, 4294901760
          %2216 = vmatprep.mubr.f32.mxu0 %v2215
          %v2217 = vand.u32 %v339, 4294901760
          %2218 = vmatmul.mubr.f32.gmra.mrb[0].mxu0 %v2217
          %v2219 = vpop.f32.mrb[0].mxu0
          %v2220 = vadd.f32 %v1863, %v2219
          %v2221 = vpop.f32.mrb[0].mxu0
          %v2222 = vand.u32 %v342, 4294901760
          %2223 = vmatprep.mubr.f32.mxu0 %v2222
          %v2224 = vand.u32 %v341, 4294901760
          %2225 = vmatmul.mubr.f32.gmra.mrb[0].mxu0 %v2224
          %v2226 = vpop.f32.mrb[0].mxu0
          %v2227 = vadd.f32 %v1874, %v2226
          %v2228 = vpop.f32.mrb[0].mxu0
          %v2229 = vand.u32 %v344, 4294901760
          %2230 = vmatprep.mubr.f32.mxu0 %v2229
          %v2231 = vand.u32 %v343, 4294901760
          %2232 = vmatmul.mubr.f32.gmra.mrb[0].mxu0 %v2231
          %v2233 = vpop.f32.mrb[0].mxu0
          %v2234 = vadd.f32 %v1885, %v2233
          %v2235 = vpop.f32.mrb[0].mxu0
          %v2236 = vand.u32 %v346, 4294901760
          %2237 = vmatprep.mubr.f32.mxu0 %v2236
          %v2238 = vand.u32 %v345, 4294901760
          %2239 = vmatmul.mubr.f32.gmra.mrb[0].mxu0 %v2238
          %v2240 = vpop.f32.mrb[0].mxu0
          %v2241 = vadd.f32 %v1896, %v2240
          %v2242 = vpop.f32.mrb[0].mxu0
          %v2243 = vand.u32 %v348, 4294901760
          %2244 = vmatprep.mubr.f32.mxu0 %v2243
          %v2245 = vand.u32 %v347, 4294901760
          %2246 = vmatmul.mubr.f32.gmra.mrb[0].mxu0 %v2245
          %v2247 = vpop.f32.mrb[0].mxu0
          %v2248 = vadd.f32 %v1907, %v2247
          %v2249 = vpop.f32.mrb[0].mxu0
          %v2250 = vand.u32 %v350, 4294901760
          %2251 = vmatprep.mubr.f32.mxu0 %v2250
          %v2252 = vand.u32 %v349, 4294901760
          %2253 = vmatmul.mubr.f32.gmra.mrb[0].mxu0 %v2252
          %v2254 = vpop.f32.mrb[0].mxu0
          %v2255 = vadd.f32 %v1918, %v2254
          %v2256 = vpop.f32.mrb[0].mxu0
          %v2257 = vand.u32 %v352, 4294901760
          %2258 = vmatprep.mubr.f32.mxu0 %v2257
          %v2259 = vand.u32 %v351, 4294901760
          %2260 = vmatmul.mubr.f32.gmra.mrb[0].mxu0 %v2259
          %v2261 = vpop.f32.mrb[0].mxu0
          %v2262 = vadd.f32 %v1929, %v2261
          %v2263 = vpop.f32.mrb[0].mxu0
          %v2264 = vand.u32 %v354, 4294901760
          %2265 = vmatprep.mubr.f32.mxu0 %v2264
          %v2266 = vand.u32 %v353, 4294901760
          %2267 = vmatmul.mubr.f32.gmra.mrb[0].mxu0 %v2266
          %v2268 = vpop.f32.mrb[0].mxu0
          %v2269 = vadd.f32 %v1940, %v2268
          %v2270 = vpop.f32.mrb[0].mxu0
          %2271 = vdwg.mxu0
          %2272 = vmatprep.subr.mxu0 0.0
          %v2273 = vand.u32 %v355, 4294901760
          %2274 = vmatpush1.msra.mxu0 %v2273
          %2275 = vmatprep.subr.mxu0 0.0
          %v2276 = vand.u32 %v356, 4294901760
          %2277 = vmatpush1.msra.mxu0 %v2276
          %2278 = vmatprep.subr.mxu0 0.0
          %v2279 = vand.u32 %v357, 4294901760
          %2280 = vmatpush1.msra.mxu0 %v2279
          %2281 = vmatprep.subr.mxu0 0.0
          %v2282 = vand.u32 %v358, 4294901760
          %2283 = vmatpush1.msra.mxu0 %v2282
          %2284 = vmatprep.subr.mxu0 0.0
          %v2285 = vand.u32 %v359, 4294901760
          %2286 = vmatpush1.msra.mxu0 %v2285
          %2287 = vmatprep.subr.mxu0 0.0
          %v2288 = vand.u32 %v360, 4294901760
          %2289 = vmatpush1.msra.mxu0 %v2288
          %2290 = vmatprep.subr.mxu0 0.0
          %v2291 = vand.u32 %v361, 4294901760
          %2292 = vmatpush1.msra.mxu0 %v2291
          %2293 = vmatprep.subr.mxu0 0.0
          %v2294 = vand.u32 %v362, 4294901760
          %2295 = vmatpush1.msra.mxu0 %v2294
          %2296 = vmatprep.subr.mxu0 0.0
          %v2297 = vand.u32 %v363, 4294901760
          %2298 = vmatpush1.msra.mxu0 %v2297
          %2299 = vmatprep.subr.mxu0 0.0
          %v2300 = vand.u32 %v364, 4294901760
          %2301 = vmatpush1.msra.mxu0 %v2300
          %2302 = vmatprep.subr.mxu0 0.0
          %v2303 = vand.u32 %v365, 4294901760
          %2304 = vmatpush1.msra.mxu0 %v2303
          %2305 = vmatprep.subr.mxu0 0.0
          %v2306 = vand.u32 %v366, 4294901760
          %2307 = vmatpush1.msra.mxu0 %v2306
          %2308 = vmatprep.subr.mxu0 0.0
          %v2309 = vand.u32 %v367, 4294901760
          %2310 = vmatpush1.msra.mxu0 %v2309
          %2311 = vmatprep.subr.mxu0 0.0
          %v2312 = vand.u32 %v368, 4294901760
          %2313 = vmatpush1.msra.mxu0 %v2312
          %2314 = vmatprep.subr.mxu0 0.0
          %v2315 = vand.u32 %v369, 4294901760
          %2316 = vmatpush1.msra.mxu0 %v2315
          %2317 = vmatprep.subr.mxu0 0.0
          %v2318 = vand.u32 %v370, 4294901760
          %2319 = vmatpush1.msra.mxu0 %v2318
          %2320 = vmatprep.subr.mxu0 0.0
          %v2321 = vand.u32 %v371, 4294901760
          %2322 = vmatpush1.msra.mxu0 %v2321
          %2323 = vmatprep.subr.mxu0 0.0
          %v2324 = vand.u32 %v372, 4294901760
          %2325 = vmatpush1.msra.mxu0 %v2324
          %2326 = vmatprep.subr.mxu0 0.0
          %v2327 = vand.u32 %v373, 4294901760
          %2328 = vmatpush1.msra.mxu0 %v2327
          %2329 = vmatprep.subr.mxu0 0.0
          %v2330 = vand.u32 %v374, 4294901760
          %2331 = vmatpush1.msra.mxu0 %v2330
          %2332 = vmatprep.subr.mxu0 0.0
          %v2333 = vand.u32 %v375, 4294901760
          %2334 = vmatpush1.msra.mxu0 %v2333
          %2335 = vmatprep.subr.mxu0 0.0
          %v2336 = vand.u32 %v376, 4294901760
          %2337 = vmatpush1.msra.mxu0 %v2336
          %2338 = vmatprep.subr.mxu0 0.0
          %v2339 = vand.u32 %v377, 4294901760
          %2340 = vmatpush1.msra.mxu0 %v2339
          %2341 = vmatprep.subr.mxu0 0.0
          %v2342 = vand.u32 %v378, 4294901760
          %2343 = vmatpush1.msra.mxu0 %v2342
          %2344 = vmatprep.subr.mxu0 0.0
          %v2345 = vand.u32 %v379, 4294901760
          %2346 = vmatpush1.msra.mxu0 %v2345
          %2347 = vmatprep.subr.mxu0 0.0
          %v2348 = vand.u32 %v380, 4294901760
          %2349 = vmatpush1.msra.mxu0 %v2348
          %2350 = vmatprep.subr.mxu0 0.0
          %v2351 = vand.u32 %v381, 4294901760
          %2352 = vmatpush1.msra.mxu0 %v2351
          %2353 = vmatprep.subr.mxu0 0.0
          %v2354 = vand.u32 %v382, 4294901760
          %2355 = vmatpush1.msra.mxu0 %v2354
          %2356 = vmatprep.subr.mxu0 0.0
          %v2357 = vand.u32 %v383, 4294901760
          %2358 = vmatpush1.msra.mxu0 %v2357
          %2359 = vmatprep.subr.mxu0 0.0
          %v2360 = vand.u32 %v384, 4294901760
          %2361 = vmatpush1.msra.mxu0 %v2360
          %2362 = vmatprep.subr.mxu0 0.0
          %v2363 = vand.u32 %v385, 4294901760
          %2364 = vmatpush1.msra.mxu0 %v2363
          %2365 = vmatprep.subr.mxu0 0.0
          %v2366 = vand.u32 %v386, 4294901760
          %2367 = vmatpush1.msra.mxu0 %v2366
          %v2368 = vand.u32 %v308, 4294901760
          %2369 = vmatprep.mubr.f32.mxu0 %v2368
          %v2370 = vand.u32 %v307, 4294901760
          %2371 = vmatmul.mubr.f32.gmra.mrb[0].mxu0 %v2370
          %v2372 = vpop.f32.mrb[0].mxu0
          %v2373 = vadd.f32 %v2108, %v2372
          %v2374 = vpop.f32.mrb[0].mxu0
          %v2375 = vand.u32 %v310, 4294901760
          %2376 = vmatprep.mubr.f32.mxu0 %v2375
          %v2377 = vand.u32 %v309, 4294901760
          %2378 = vmatmul.mubr.f32.gmra.mrb[0].mxu0 %v2377
          %v2379 = vpop.f32.mrb[0].mxu0
          %v2380 = vadd.f32 %v2115, %v2379
          %v2381 = vpop.f32.mrb[0].mxu0
          %v2382 = vand.u32 %v312, 4294901760
          %2383 = vmatprep.mubr.f32.mxu0 %v2382
          %v2384 = vand.u32 %v311, 4294901760
          %2385 = vmatmul.mubr.f32.gmra.mrb[0].mxu0 %v2384
          %v2386 = vpop.f32.mrb[0].mxu0
          %v2387 = vadd.f32 %v2122, %v2386
          %v2388 = vpop.f32.mrb[0].mxu0
          %v2389 = vand.u32 %v314, 4294901760
          %2390 = vmatprep.mubr.f32.mxu0 %v2389
          %v2391 = vand.u32 %v313, 4294901760
          %2392 = vmatmul.mubr.f32.gmra.mrb[0].mxu0 %v2391
          %v2393 = vpop.f32.mrb[0].mxu0
          %v2394 = vadd.f32 %v2129, %v2393
          %v2395 = vpop.f32.mrb[0].mxu0
          %v2396 = vand.u32 %v316, 4294901760
          %2397 = vmatprep.mubr.f32.mxu0 %v2396
          %v2398 = vand.u32 %v315, 4294901760
          %2399 = vmatmul.mubr.f32.gmra.mrb[0].mxu0 %v2398
          %v2400 = vpop.f32.mrb[0].mxu0
          %v2401 = vadd.f32 %v2136, %v2400
          %v2402 = vpop.f32.mrb[0].mxu0
          %v2403 = vand.u32 %v318, 4294901760
          %2404 = vmatprep.mubr.f32.mxu0 %v2403
          %v2405 = vand.u32 %v317, 4294901760
          %2406 = vmatmul.mubr.f32.gmra.mrb[0].mxu0 %v2405
          %v2407 = vpop.f32.mrb[0].mxu0
          %v2408 = vadd.f32 %v2143, %v2407
          %v2409 = vpop.f32.mrb[0].mxu0
          %v2410 = vand.u32 %v320, 4294901760
          %2411 = vmatprep.mubr.f32.mxu0 %v2410
          %v2412 = vand.u32 %v319, 4294901760
          %2413 = vmatmul.mubr.f32.gmra.mrb[0].mxu0 %v2412
          %v2414 = vpop.f32.mrb[0].mxu0
          %v2415 = vadd.f32 %v2150, %v2414
          %v2416 = vpop.f32.mrb[0].mxu0
          %v2417 = vand.u32 %v322, 4294901760
          %2418 = vmatprep.mubr.f32.mxu0 %v2417
          %v2419 = vand.u32 %v321, 4294901760
          %2420 = vmatmul.mubr.f32.gmra.mrb[0].mxu0 %v2419
          %v2421 = vpop.f32.mrb[0].mxu0
          %v2422 = vadd.f32 %v2157, %v2421
          %v2423 = vpop.f32.mrb[0].mxu0
          %v2424 = vand.u32 %v324, 4294901760
          %2425 = vmatprep.mubr.f32.mxu0 %v2424
          %v2426 = vand.u32 %v323, 4294901760
          %2427 = vmatmul.mubr.f32.gmra.mrb[0].mxu0 %v2426
          %v2428 = vpop.f32.mrb[0].mxu0
          %v2429 = vadd.f32 %v2164, %v2428
          %v2430 = vpop.f32.mrb[0].mxu0
          %v2431 = vand.u32 %v326, 4294901760
          %2432 = vmatprep.mubr.f32.mxu0 %v2431
          %v2433 = vand.u32 %v325, 4294901760
          %2434 = vmatmul.mubr.f32.gmra.mrb[0].mxu0 %v2433
          %v2435 = vpop.f32.mrb[0].mxu0
          %v2436 = vadd.f32 %v2171, %v2435
          %v2437 = vpop.f32.mrb[0].mxu0
          %v2438 = vand.u32 %v328, 4294901760
          %2439 = vmatprep.mubr.f32.mxu0 %v2438
          %v2440 = vand.u32 %v327, 4294901760
          %2441 = vmatmul.mubr.f32.gmra.mrb[0].mxu0 %v2440
          %v2442 = vpop.f32.mrb[0].mxu0
          %v2443 = vadd.f32 %v2178, %v2442
          %v2444 = vpop.f32.mrb[0].mxu0
          %v2445 = vand.u32 %v330, 4294901760
          %2446 = vmatprep.mubr.f32.mxu0 %v2445
          %v2447 = vand.u32 %v329, 4294901760
          %2448 = vmatmul.mubr.f32.gmra.mrb[0].mxu0 %v2447
          %v2449 = vpop.f32.mrb[0].mxu0
          %v2450 = vadd.f32 %v2185, %v2449
          %v2451 = vpop.f32.mrb[0].mxu0
          %v2452 = vand.u32 %v332, 4294901760
          %2453 = vmatprep.mubr.f32.mxu0 %v2452
          %v2454 = vand.u32 %v331, 4294901760
          %2455 = vmatmul.mubr.f32.gmra.mrb[0].mxu0 %v2454
          %v2456 = vpop.f32.mrb[0].mxu0
          %v2457 = vadd.f32 %v2192, %v2456
          %v2458 = vpop.f32.mrb[0].mxu0
          %v2459 = vand.u32 %v334, 4294901760
          %2460 = vmatprep.mubr.f32.mxu0 %v2459
          %v2461 = vand.u32 %v333, 4294901760
          %2462 = vmatmul.mubr.f32.gmra.mrb[0].mxu0 %v2461
          %v2463 = vpop.f32.mrb[0].mxu0
          %v2464 = vadd.f32 %v2199, %v2463
          %v2465 = vpop.f32.mrb[0].mxu0
          %v2466 = vand.u32 %v336, 4294901760
          %2467 = vmatprep.mubr.f32.mxu0 %v2466
          %v2468 = vand.u32 %v335, 4294901760
          %2469 = vmatmul.mubr.f32.gmra.mrb[0].mxu0 %v2468
          %v2470 = vpop.f32.mrb[0].mxu0
          %v2471 = vadd.f32 %v2206, %v2470
          %v2472 = vpop.f32.mrb[0].mxu0
          %v2473 = vand.u32 %v338, 4294901760
          %2474 = vmatprep.mubr.f32.mxu0 %v2473
          %v2475 = vand.u32 %v337, 4294901760
          %2476 = vmatmul.mubr.f32.gmra.mrb[0].mxu0 %v2475
          %v2477 = vpop.f32.mrb[0].mxu0
          %v2478 = vadd.f32 %v2213, %v2477
          %v2479 = vpop.f32.mrb[0].mxu0
          %v2480 = vand.u32 %v340, 4294901760
          %2481 = vmatprep.mubr.f32.mxu0 %v2480
          %v2482 = vand.u32 %v339, 4294901760
          %2483 = vmatmul.mubr.f32.gmra.mrb[0].mxu0 %v2482
          %v2484 = vpop.f32.mrb[0].mxu0
          %v2485 = vadd.f32 %v2220, %v2484
          %v2486 = vpop.f32.mrb[0].mxu0
          %v2487 = vand.u32 %v342, 4294901760
          %2488 = vmatprep.mubr.f32.mxu0 %v2487
          %v2489 = vand.u32 %v341, 4294901760
          %2490 = vmatmul.mubr.f32.gmra.mrb[0].mxu0 %v2489
          %v2491 = vpop.f32.mrb[0].mxu0
          %v2492 = vadd.f32 %v2227, %v2491
          %v2493 = vpop.f32.mrb[0].mxu0
          %v2494 = vand.u32 %v344, 4294901760
          %2495 = vmatprep.mubr.f32.mxu0 %v2494
          %v2496 = vand.u32 %v343, 4294901760
          %2497 = vmatmul.mubr.f32.gmra.mrb[0].mxu0 %v2496
          %v2498 = vpop.f32.mrb[0].mxu0
          %v2499 = vadd.f32 %v2234, %v2498
          %v2500 = vpop.f32.mrb[0].mxu0
          %v2501 = vand.u32 %v346, 4294901760
          %2502 = vmatprep.mubr.f32.mxu0 %v2501
          %v2503 = vand.u32 %v345, 4294901760
          %2504 = vmatmul.mubr.f32.gmra.mrb[0].mxu0 %v2503
          %v2505 = vpop.f32.mrb[0].mxu0
          %v2506 = vadd.f32 %v2241, %v2505
          %v2507 = vpop.f32.mrb[0].mxu0
          %v2508 = vand.u32 %v348, 4294901760
          %2509 = vmatprep.mubr.f32.mxu0 %v2508
          %v2510 = vand.u32 %v347, 4294901760
          %2511 = vmatmul.mubr.f32.gmra.mrb[0].mxu0 %v2510
          %v2512 = vpop.f32.mrb[0].mxu0
          %v2513 = vadd.f32 %v2248, %v2512
          %v2514 = vpop.f32.mrb[0].mxu0
          %v2515 = vand.u32 %v350, 4294901760
          %2516 = vmatprep.mubr.f32.mxu0 %v2515
          %v2517 = vand.u32 %v349, 4294901760
          %2518 = vmatmul.mubr.f32.gmra.mrb[0].mxu0 %v2517
          %v2519 = vpop.f32.mrb[0].mxu0
          %v2520 = vadd.f32 %v2255, %v2519
          %v2521 = vpop.f32.mrb[0].mxu0
          %v2522 = vand.u32 %v352, 4294901760
          %2523 = vmatprep.mubr.f32.mxu0 %v2522
          %v2524 = vand.u32 %v351, 4294901760
          %2525 = vmatmul.mubr.f32.gmra.mrb[0].mxu0 %v2524
          %v2526 = vpop.f32.mrb[0].mxu0
          %v2527 = vadd.f32 %v2262, %v2526
          %v2528 = vpop.f32.mrb[0].mxu0
          %v2529 = vand.u32 %v354, 4294901760
          %2530 = vmatprep.mubr.f32.mxu0 %v2529
          %v2531 = vand.u32 %v353, 4294901760
          %2532 = vmatmul.mubr.f32.gmra.mrb[0].mxu0 %v2531
          %v2533 = vpop.f32.mrb[0].mxu0
          %v2534 = vadd.f32 %v2269, %v2533
          %v2535 = vpop.f32.mrb[0].mxu0
          %2536 = vdwg.mxu0
          %v2537 = vld [vmem:[%s2] sm:$0xff]
          %v2538 = vld [vmem:[%s2 + $0x8] sm:$0xff]
          %v2539 = vld [vmem:[%s2 + $0x10] sm:$0xff]
          %v2540 = vld [vmem:[%s2 + $0x18] sm:$0xff]
          %vm2541 = vcmask 523264
          %v2543 = vsel %vm2541, %v2538, 0
          %v2546 = vsel %vm2541, %v2540, 0
          %2548 = vmatprep.subr.mxu0 0.0
          %v2549 = vand.u32 %v2373, 4294901760
          %2550 = vmatpush1.msra.mxu0 %v2549
          %2551 = vmatprep.subr.mxu0 0.0
          %v2552 = vand.u32 %v2380, 4294901760
          %2553 = vmatpush1.msra.mxu0 %v2552
          %2554 = vmatprep.subr.mxu0 0.0
          %v2555 = vand.u32 %v2387, 4294901760
          %2556 = vmatpush1.msra.mxu0 %v2555
          %2557 = vmatprep.subr.mxu0 0.0
          %v2558 = vand.u32 %v2394, 4294901760
          %2559 = vmatpush1.msra.mxu0 %v2558
          %2560 = vmatprep.subr.mxu0 0.0
          %v2561 = vand.u32 %v2401, 4294901760
          %2562 = vmatpush1.msra.mxu0 %v2561
          %2563 = vmatprep.subr.mxu0 0.0
          %v2564 = vand.u32 %v2408, 4294901760
          %2565 = vmatpush1.msra.mxu0 %v2564
          %2566 = vmatprep.subr.mxu0 0.0
          %v2567 = vand.u32 %v2415, 4294901760
          %2568 = vmatpush1.msra.mxu0 %v2567
          %2569 = vmatprep.subr.mxu0 0.0
          %v2570 = vand.u32 %v2422, 4294901760
          %2571 = vmatpush1.msra.mxu0 %v2570
          %2572 = vmatprep.subr.mxu0 0.0
          %v2573 = vand.u32 %v2429, 4294901760
          %2574 = vmatpush1.msra.mxu0 %v2573
          %2575 = vmatprep.subr.mxu0 0.0
          %v2576 = vand.u32 %v2436, 4294901760
          %2577 = vmatpush1.msra.mxu0 %v2576
          %2578 = vmatprep.subr.mxu0 0.0
          %v2579 = vand.u32 %v2443, 4294901760
          %2580 = vmatpush1.msra.mxu0 %v2579
          %2581 = vmatprep.subr.mxu0 0.0
          %v2582 = vand.u32 %v2450, 4294901760
          %2583 = vmatpush1.msra.mxu0 %v2582
          %2584 = vmatprep.subr.mxu0 0.0
          %v2585 = vand.u32 %v2457, 4294901760
          %2586 = vmatpush1.msra.mxu0 %v2585
          %2587 = vmatprep.subr.mxu0 0.0
          %v2588 = vand.u32 %v2464, 4294901760
          %2589 = vmatpush1.msra.mxu0 %v2588
          %2590 = vmatprep.subr.mxu0 0.0
          %v2591 = vand.u32 %v2471, 4294901760
          %2592 = vmatpush1.msra.mxu0 %v2591
          %2593 = vmatprep.subr.mxu0 0.0
          %v2594 = vand.u32 %v2478, 4294901760
          %2595 = vmatpush1.msra.mxu0 %v2594
          %2596 = vmatprep.subr.mxu0 0.0
          %v2597 = vand.u32 %v2485, 4294901760
          %2598 = vmatpush1.msra.mxu0 %v2597
          %2599 = vmatprep.subr.mxu0 0.0
          %v2600 = vand.u32 %v2492, 4294901760
          %2601 = vmatpush1.msra.mxu0 %v2600
          %2602 = vmatprep.subr.mxu0 0.0
          %v2603 = vand.u32 %v2499, 4294901760
          %2604 = vmatpush1.msra.mxu0 %v2603
          %2605 = vmatprep.subr.mxu0 0.0
          %v2606 = vand.u32 %v2506, 4294901760
          %2607 = vmatpush1.msra.mxu0 %v2606
          %2608 = vmatprep.subr.mxu0 0.0
          %v2609 = vand.u32 %v2513, 4294901760
          %2610 = vmatpush1.msra.mxu0 %v2609
          %2611 = vmatprep.subr.mxu0 0.0
          %v2612 = vand.u32 %v2520, 4294901760
          %2613 = vmatpush1.msra.mxu0 %v2612
          %2614 = vmatprep.subr.mxu0 0.0
          %v2615 = vand.u32 %v2527, 4294901760
          %2616 = vmatpush1.msra.mxu0 %v2615
          %2617 = vmatprep.subr.mxu0 0.0
          %v2618 = vand.u32 %v2534, 4294901760
          %2619 = vmatpush1.msra.mxu0 %v2618
          %2620 = vmatprep.subr.mxu0 0.0
          %2621 = vmatpush1.msra.mxu0 0.0
          %2622 = vmatprep.subr.mxu0 0.0
          %2623 = vmatpush1.msra.mxu0 0.0
          %2624 = vmatprep.subr.mxu0 0.0
          %2625 = vmatpush1.msra.mxu0 0.0
          %2626 = vmatprep.subr.mxu0 0.0
          %2627 = vmatpush1.msra.mxu0 0.0
          %2628 = vmatprep.subr.mxu0 0.0
          %2629 = vmatpush1.msra.mxu0 0.0
          %2630 = vmatprep.subr.mxu0 0.0
          %2631 = vmatpush1.msra.mxu0 0.0
          %2632 = vmatprep.subr.mxu0 0.0
          %2633 = vmatpush1.msra.mxu0 0.0
          %2634 = vmatprep.subr.mxu0 0.0
          %2635 = vmatpush1.msra.mxu0 0.0
          %v2636 = vand.u32 %v2543, 4294901760
          %v2637 = vsub.f32 %v2543, %v2636
          %v2638 = vand.u32 %v2637, 4294901760
          %v2639 = vsub.f32 %v2637, %v2638
          %v2640 = vand.u32 %v2639, 4294901760
          %2641 = vmatprep.mubr.f32.mxu0 %v2640
          %v2642 = vand.u32 %v2537, 4294901760
          %v2643 = vsub.f32 %v2537, %v2642
          %v2644 = vand.u32 %v2643, 4294901760
          %v2645 = vsub.f32 %v2643, %v2644
          %v2646 = vand.u32 %v2645, 4294901760
          %2647 = vmatmul.mubr.f32.gmra.mrb[0].mxu0 %v2646
          %v2648 = vpop.f32.mrb[0].mxu0
          %v2649 = vadd.f32 0.0, %v2648
          %v2650 = vpop.f32.mrb[0].mxu0
          %v2651 = vand.u32 %v2546, 4294901760
          %v2652 = vsub.f32 %v2546, %v2651
          %v2653 = vand.u32 %v2652, 4294901760
          %v2654 = vsub.f32 %v2652, %v2653
          %v2655 = vand.u32 %v2654, 4294901760
          %2656 = vmatprep.mubr.f32.mxu0 %v2655
          %v2657 = vand.u32 %v2539, 4294901760
          %v2658 = vsub.f32 %v2539, %v2657
          %v2659 = vand.u32 %v2658, 4294901760
          %v2660 = vsub.f32 %v2658, %v2659
          %v2661 = vand.u32 %v2660, 4294901760
          %2662 = vmatmul.mubr.f32.gmra.mrb[0].mxu0 %v2661
          %v2663 = vpop.f32.mrb[0].mxu0
          %v2664 = vadd.f32 0.0, %v2663
          %v2665 = vpop.f32.mrb[0].mxu0
          %2666 = vdwg.mxu0
          %2667 = vmatprep.subr.mxu0 0.0
          %v2668 = vand.u32 %v2373, 4294901760
          %v2669 = vsub.f32 %v2373, %v2668
          %v2670 = vand.u32 %v2669, 4294901760
          %v2671 = vsub.f32 %v2669, %v2670
          %v2672 = vand.u32 %v2671, 4294901760
          %2673 = vmatpush1.msra.mxu0 %v2672
          %2674 = vmatprep.subr.mxu0 0.0
          %v2675 = vand.u32 %v2380, 4294901760
          %v2676 = vsub.f32 %v2380, %v2675
          %v2677 = vand.u32 %v2676, 4294901760
          %v2678 = vsub.f32 %v2676, %v2677
          %v2679 = vand.u32 %v2678, 4294901760
          %2680 = vmatpush1.msra.mxu0 %v2679
          %2681 = vmatprep.subr.mxu0 0.0
          %v2682 = vand.u32 %v2387, 4294901760
          %v2683 = vsub.f32 %v2387, %v2682
          %v2684 = vand.u32 %v2683, 4294901760
          %v2685 = vsub.f32 %v2683, %v2684
          %v2686 = vand.u32 %v2685, 4294901760
          %2687 = vmatpush1.msra.mxu0 %v2686
          %2688 = vmatprep.subr.mxu0 0.0
          %v2689 = vand.u32 %v2394, 4294901760
          %v2690 = vsub.f32 %v2394, %v2689
          %v2691 = vand.u32 %v2690, 4294901760
          %v2692 = vsub.f32 %v2690, %v2691
          %v2693 = vand.u32 %v2692, 4294901760
          %2694 = vmatpush1.msra.mxu0 %v2693
          %2695 = vmatprep.subr.mxu0 0.0
          %v2696 = vand.u32 %v2401, 4294901760
          %v2697 = vsub.f32 %v2401, %v2696
          %v2698 = vand.u32 %v2697, 4294901760
          %v2699 = vsub.f32 %v2697, %v2698
          %v2700 = vand.u32 %v2699, 4294901760
          %2701 = vmatpush1.msra.mxu0 %v2700
          %2702 = vmatprep.subr.mxu0 0.0
          %v2703 = vand.u32 %v2408, 4294901760
          %v2704 = vsub.f32 %v2408, %v2703
          %v2705 = vand.u32 %v2704, 4294901760
          %v2706 = vsub.f32 %v2704, %v2705
          %v2707 = vand.u32 %v2706, 4294901760
          %2708 = vmatpush1.msra.mxu0 %v2707
          %2709 = vmatprep.subr.mxu0 0.0
          %v2710 = vand.u32 %v2415, 4294901760
          %v2711 = vsub.f32 %v2415, %v2710
          %v2712 = vand.u32 %v2711, 4294901760
          %v2713 = vsub.f32 %v2711, %v2712
          %v2714 = vand.u32 %v2713, 4294901760
          %2715 = vmatpush1.msra.mxu0 %v2714
          %2716 = vmatprep.subr.mxu0 0.0
          %v2717 = vand.u32 %v2422, 4294901760
          %v2718 = vsub.f32 %v2422, %v2717
          %v2719 = vand.u32 %v2718, 4294901760
          %v2720 = vsub.f32 %v2718, %v2719
          %v2721 = vand.u32 %v2720, 4294901760
          %2722 = vmatpush1.msra.mxu0 %v2721
          %2723 = vmatprep.subr.mxu0 0.0
          %v2724 = vand.u32 %v2429, 4294901760
          %v2725 = vsub.f32 %v2429, %v2724
          %v2726 = vand.u32 %v2725, 4294901760
          %v2727 = vsub.f32 %v2725, %v2726
          %v2728 = vand.u32 %v2727, 4294901760
          %2729 = vmatpush1.msra.mxu0 %v2728
          %2730 = vmatprep.subr.mxu0 0.0
          %v2731 = vand.u32 %v2436, 4294901760
          %v2732 = vsub.f32 %v2436, %v2731
          %v2733 = vand.u32 %v2732, 4294901760
          %v2734 = vsub.f32 %v2732, %v2733
          %v2735 = vand.u32 %v2734, 4294901760
          %2736 = vmatpush1.msra.mxu0 %v2735
          %2737 = vmatprep.subr.mxu0 0.0
          %v2738 = vand.u32 %v2443, 4294901760
          %v2739 = vsub.f32 %v2443, %v2738
          %v2740 = vand.u32 %v2739, 4294901760
          %v2741 = vsub.f32 %v2739, %v2740
          %v2742 = vand.u32 %v2741, 4294901760
          %2743 = vmatpush1.msra.mxu0 %v2742
          %2744 = vmatprep.subr.mxu0 0.0
          %v2745 = vand.u32 %v2450, 4294901760
          %v2746 = vsub.f32 %v2450, %v2745
          %v2747 = vand.u32 %v2746, 4294901760
          %v2748 = vsub.f32 %v2746, %v2747
          %v2749 = vand.u32 %v2748, 4294901760
          %2750 = vmatpush1.msra.mxu0 %v2749
          %2751 = vmatprep.subr.mxu0 0.0
          %v2752 = vand.u32 %v2457, 4294901760
          %v2753 = vsub.f32 %v2457, %v2752
          %v2754 = vand.u32 %v2753, 4294901760
          %v2755 = vsub.f32 %v2753, %v2754
          %v2756 = vand.u32 %v2755, 4294901760
          %2757 = vmatpush1.msra.mxu0 %v2756
          %2758 = vmatprep.subr.mxu0 0.0
          %v2759 = vand.u32 %v2464, 4294901760
          %v2760 = vsub.f32 %v2464, %v2759
          %v2761 = vand.u32 %v2760, 4294901760
          %v2762 = vsub.f32 %v2760, %v2761
          %v2763 = vand.u32 %v2762, 4294901760
          %2764 = vmatpush1.msra.mxu0 %v2763
          %2765 = vmatprep.subr.mxu0 0.0
          %v2766 = vand.u32 %v2471, 4294901760
          %v2767 = vsub.f32 %v2471, %v2766
          %v2768 = vand.u32 %v2767, 4294901760
          %v2769 = vsub.f32 %v2767, %v2768
          %v2770 = vand.u32 %v2769, 4294901760
          %2771 = vmatpush1.msra.mxu0 %v2770
          %2772 = vmatprep.subr.mxu0 0.0
          %v2773 = vand.u32 %v2478, 4294901760
          %v2774 = vsub.f32 %v2478, %v2773
          %v2775 = vand.u32 %v2774, 4294901760
          %v2776 = vsub.f32 %v2774, %v2775
          %v2777 = vand.u32 %v2776, 4294901760
          %2778 = vmatpush1.msra.mxu0 %v2777
          %2779 = vmatprep.subr.mxu0 0.0
          %v2780 = vand.u32 %v2485, 4294901760
          %v2781 = vsub.f32 %v2485, %v2780
          %v2782 = vand.u32 %v2781, 4294901760
          %v2783 = vsub.f32 %v2781, %v2782
          %v2784 = vand.u32 %v2783, 4294901760
          %2785 = vmatpush1.msra.mxu0 %v2784
          %2786 = vmatprep.subr.mxu0 0.0
          %v2787 = vand.u32 %v2492, 4294901760
          %v2788 = vsub.f32 %v2492, %v2787
          %v2789 = vand.u32 %v2788, 4294901760
          %v2790 = vsub.f32 %v2788, %v2789
          %v2791 = vand.u32 %v2790, 4294901760
          %2792 = vmatpush1.msra.mxu0 %v2791
          %2793 = vmatprep.subr.mxu0 0.0
          %v2794 = vand.u32 %v2499, 4294901760
          %v2795 = vsub.f32 %v2499, %v2794
          %v2796 = vand.u32 %v2795, 4294901760
          %v2797 = vsub.f32 %v2795, %v2796
          %v2798 = vand.u32 %v2797, 4294901760
          %2799 = vmatpush1.msra.mxu0 %v2798
          %2800 = vmatprep.subr.mxu0 0.0
          %v2801 = vand.u32 %v2506, 4294901760
          %v2802 = vsub.f32 %v2506, %v2801
          %v2803 = vand.u32 %v2802, 4294901760
          %v2804 = vsub.f32 %v2802, %v2803
          %v2805 = vand.u32 %v2804, 4294901760
          %2806 = vmatpush1.msra.mxu0 %v2805
          %2807 = vmatprep.subr.mxu0 0.0
          %v2808 = vand.u32 %v2513, 4294901760
          %v2809 = vsub.f32 %v2513, %v2808
          %v2810 = vand.u32 %v2809, 4294901760
          %v2811 = vsub.f32 %v2809, %v2810
          %v2812 = vand.u32 %v2811, 4294901760
          %2813 = vmatpush1.msra.mxu0 %v2812
          %2814 = vmatprep.subr.mxu0 0.0
          %v2815 = vand.u32 %v2520, 4294901760
          %v2816 = vsub.f32 %v2520, %v2815
          %v2817 = vand.u32 %v2816, 4294901760
          %v2818 = vsub.f32 %v2816, %v2817
          %v2819 = vand.u32 %v2818, 4294901760
          %2820 = vmatpush1.msra.mxu0 %v2819
          %2821 = vmatprep.subr.mxu0 0.0
          %v2822 = vand.u32 %v2527, 4294901760
          %v2823 = vsub.f32 %v2527, %v2822
          %v2824 = vand.u32 %v2823, 4294901760
          %v2825 = vsub.f32 %v2823, %v2824
          %v2826 = vand.u32 %v2825, 4294901760
          %2827 = vmatpush1.msra.mxu0 %v2826
          %2828 = vmatprep.subr.mxu0 0.0
          %v2829 = vand.u32 %v2534, 4294901760
          %v2830 = vsub.f32 %v2534, %v2829
          %v2831 = vand.u32 %v2830, 4294901760
          %v2832 = vsub.f32 %v2830, %v2831
          %v2833 = vand.u32 %v2832, 4294901760
          %2834 = vmatpush1.msra.mxu0 %v2833
          %2835 = vmatprep.subr.mxu0 0.0
          %2836 = vmatpush1.msra.mxu0 0.0
          %2837 = vmatprep.subr.mxu0 0.0
          %2838 = vmatpush1.msra.mxu0 0.0
          %2839 = vmatprep.subr.mxu0 0.0
          %2840 = vmatpush1.msra.mxu0 0.0
          %2841 = vmatprep.subr.mxu0 0.0
          %2842 = vmatpush1.msra.mxu0 0.0
          %2843 = vmatprep.subr.mxu0 0.0
          %2844 = vmatpush1.msra.mxu0 0.0
          %2845 = vmatprep.subr.mxu0 0.0
          %2846 = vmatpush1.msra.mxu0 0.0
          %2847 = vmatprep.subr.mxu0 0.0
          %2848 = vmatpush1.msra.mxu0 0.0
          %2849 = vmatprep.subr.mxu0 0.0
          %2850 = vmatpush1.msra.mxu0 0.0
          %v2851 = vand.u32 %v2543, 4294901760
          %2852 = vmatprep.mubr.f32.mxu0 %v2851
          %v2853 = vand.u32 %v2537, 4294901760
          %2854 = vmatmul.mubr.f32.gmra.mrb[0].mxu0 %v2853
          %v2855 = vpop.f32.mrb[0].mxu0
          %v2856 = vadd.f32 %v2649, %v2855
          %v2857 = vpop.f32.mrb[0].mxu0
          %v2858 = vand.u32 %v2546, 4294901760
          %2859 = vmatprep.mubr.f32.mxu0 %v2858
          %v2860 = vand.u32 %v2539, 4294901760
          %2861 = vmatmul.mubr.f32.gmra.mrb[0].mxu0 %v2860
          %v2862 = vpop.f32.mrb[0].mxu0
          %v2863 = vadd.f32 %v2664, %v2862
          %v2864 = vpop.f32.mrb[0].mxu0
          %2865 = vdwg.mxu0
          %2866 = vmatprep.subr.mxu0 0.0
          %v2867 = vand.u32 %v2373, 4294901760
          %v2868 = vsub.f32 %v2373, %v2867
          %2869 = vmatpush1.msra.mxu0 %v2868
          %2870 = vmatprep.subr.mxu0 0.0
          %v2871 = vand.u32 %v2380, 4294901760
          %v2872 = vsub.f32 %v2380, %v2871
          %2873 = vmatpush1.msra.mxu0 %v2872
          %2874 = vmatprep.subr.mxu0 0.0
          %v2875 = vand.u32 %v2387, 4294901760
          %v2876 = vsub.f32 %v2387, %v2875
          %2877 = vmatpush1.msra.mxu0 %v2876
          %2878 = vmatprep.subr.mxu0 0.0
          %v2879 = vand.u32 %v2394, 4294901760
          %v2880 = vsub.f32 %v2394, %v2879
          %2881 = vmatpush1.msra.mxu0 %v2880
          %2882 = vmatprep.subr.mxu0 0.0
          %v2883 = vand.u32 %v2401, 4294901760
          %v2884 = vsub.f32 %v2401, %v2883
          %2885 = vmatpush1.msra.mxu0 %v2884
          %2886 = vmatprep.subr.mxu0 0.0
          %v2887 = vand.u32 %v2408, 4294901760
          %v2888 = vsub.f32 %v2408, %v2887
          %2889 = vmatpush1.msra.mxu0 %v2888
          %2890 = vmatprep.subr.mxu0 0.0
          %v2891 = vand.u32 %v2415, 4294901760
          %v2892 = vsub.f32 %v2415, %v2891
          %2893 = vmatpush1.msra.mxu0 %v2892
          %2894 = vmatprep.subr.mxu0 0.0
          %v2895 = vand.u32 %v2422, 4294901760
          %v2896 = vsub.f32 %v2422, %v2895
          %2897 = vmatpush1.msra.mxu0 %v2896
          %2898 = vmatprep.subr.mxu0 0.0
          %v2899 = vand.u32 %v2429, 4294901760
          %v2900 = vsub.f32 %v2429, %v2899
          %2901 = vmatpush1.msra.mxu0 %v2900
          %2902 = vmatprep.subr.mxu0 0.0
          %v2903 = vand.u32 %v2436, 4294901760
          %v2904 = vsub.f32 %v2436, %v2903
          %2905 = vmatpush1.msra.mxu0 %v2904
          %2906 = vmatprep.subr.mxu0 0.0
          %v2907 = vand.u32 %v2443, 4294901760
          %v2908 = vsub.f32 %v2443, %v2907
          %2909 = vmatpush1.msra.mxu0 %v2908
          %2910 = vmatprep.subr.mxu0 0.0
          %v2911 = vand.u32 %v2450, 4294901760
          %v2912 = vsub.f32 %v2450, %v2911
          %2913 = vmatpush1.msra.mxu0 %v2912
          %2914 = vmatprep.subr.mxu0 0.0
          %v2915 = vand.u32 %v2457, 4294901760
          %v2916 = vsub.f32 %v2457, %v2915
          %2917 = vmatpush1.msra.mxu0 %v2916
          %2918 = vmatprep.subr.mxu0 0.0
          %v2919 = vand.u32 %v2464, 4294901760
          %v2920 = vsub.f32 %v2464, %v2919
          %2921 = vmatpush1.msra.mxu0 %v2920
          %2922 = vmatprep.subr.mxu0 0.0
          %v2923 = vand.u32 %v2471, 4294901760
          %v2924 = vsub.f32 %v2471, %v2923
          %2925 = vmatpush1.msra.mxu0 %v2924
          %2926 = vmatprep.subr.mxu0 0.0
          %v2927 = vand.u32 %v2478, 4294901760
          %v2928 = vsub.f32 %v2478, %v2927
          %2929 = vmatpush1.msra.mxu0 %v2928
          %2930 = vmatprep.subr.mxu0 0.0
          %v2931 = vand.u32 %v2485, 4294901760
          %v2932 = vsub.f32 %v2485, %v2931
          %2933 = vmatpush1.msra.mxu0 %v2932
          %2934 = vmatprep.subr.mxu0 0.0
          %v2935 = vand.u32 %v2492, 4294901760
          %v2936 = vsub.f32 %v2492, %v2935
          %2937 = vmatpush1.msra.mxu0 %v2936
          %2938 = vmatprep.subr.mxu0 0.0
          %v2939 = vand.u32 %v2499, 4294901760
          %v2940 = vsub.f32 %v2499, %v2939
          %2941 = vmatpush1.msra.mxu0 %v2940
          %2942 = vmatprep.subr.mxu0 0.0
          %v2943 = vand.u32 %v2506, 4294901760
          %v2944 = vsub.f32 %v2506, %v2943
          %2945 = vmatpush1.msra.mxu0 %v2944
          %2946 = vmatprep.subr.mxu0 0.0
          %v2947 = vand.u32 %v2513, 4294901760
          %v2948 = vsub.f32 %v2513, %v2947
          %2949 = vmatpush1.msra.mxu0 %v2948
          %2950 = vmatprep.subr.mxu0 0.0
          %v2951 = vand.u32 %v2520, 4294901760
          %v2952 = vsub.f32 %v2520, %v2951
          %2953 = vmatpush1.msra.mxu0 %v2952
          %2954 = vmatprep.subr.mxu0 0.0
          %v2955 = vand.u32 %v2527, 4294901760
          %v2956 = vsub.f32 %v2527, %v2955
          %2957 = vmatpush1.msra.mxu0 %v2956
          %2958 = vmatprep.subr.mxu0 0.0
          %v2959 = vand.u32 %v2534, 4294901760
          %v2960 = vsub.f32 %v2534, %v2959
          %2961 = vmatpush1.msra.mxu0 %v2960
          %2962 = vmatprep.subr.mxu0 0.0
          %2963 = vmatpush1.msra.mxu0 0.0
          %2964 = vmatprep.subr.mxu0 0.0
          %2965 = vmatpush1.msra.mxu0 0.0
          %2966 = vmatprep.subr.mxu0 0.0
          %2967 = vmatpush1.msra.mxu0 0.0
          %2968 = vmatprep.subr.mxu0 0.0
          %2969 = vmatpush1.msra.mxu0 0.0
          %2970 = vmatprep.subr.mxu0 0.0
          %2971 = vmatpush1.msra.mxu0 0.0
          %2972 = vmatprep.subr.mxu0 0.0
          %2973 = vmatpush1.msra.mxu0 0.0
          %2974 = vmatprep.subr.mxu0 0.0
          %2975 = vmatpush1.msra.mxu0 0.0
          %2976 = vmatprep.subr.mxu0 0.0
          %2977 = vmatpush1.msra.mxu0 0.0
          %v2978 = vand.u32 %v2543, 4294901760
          %v2979 = vsub.f32 %v2543, %v2978
          %2980 = vmatprep.mubr.f32.mxu0 %v2979
          %v2981 = vand.u32 %v2537, 4294901760
          %v2982 = vsub.f32 %v2537, %v2981
          %2983 = vmatmul.mubr.f32.gmra.mrb[0].mxu0 %v2982
          %v2984 = vpop.f32.mrb[0].mxu0
          %v2985 = vadd.f32 %v2856, %v2984
          %v2986 = vpop.f32.mrb[0].mxu0
          %v2987 = vand.u32 %v2546, 4294901760
          %v2988 = vsub.f32 %v2546, %v2987
          %2989 = vmatprep.mubr.f32.mxu0 %v2988
          %v2990 = vand.u32 %v2539, 4294901760
          %v2991 = vsub.f32 %v2539, %v2990
          %2992 = vmatmul.mubr.f32.gmra.mrb[0].mxu0 %v2991
          %v2993 = vpop.f32.mrb[0].mxu0
          %v2994 = vadd.f32 %v2863, %v2993
          %v2995 = vpop.f32.mrb[0].mxu0
          %2996 = vdwg.mxu0
          %2997 = vmatprep.subr.mxu0 0.0
          %v2998 = vand.u32 %v2373, 4294901760
          %2999 = vmatpush1.msra.mxu0 %v2998
          %3000 = vmatprep.subr.mxu0 0.0
          %v3001 = vand.u32 %v2380, 4294901760
          %3002 = vmatpush1.msra.mxu0 %v3001
          %3003 = vmatprep.subr.mxu0 0.0
          %v3004 = vand.u32 %v2387, 4294901760
          %3005 = vmatpush1.msra.mxu0 %v3004
          %3006 = vmatprep.subr.mxu0 0.0
          %v3007 = vand.u32 %v2394, 4294901760
          %3008 = vmatpush1.msra.mxu0 %v3007
          %3009 = vmatprep.subr.mxu0 0.0
          %v3010 = vand.u32 %v2401, 4294901760
          %3011 = vmatpush1.msra.mxu0 %v3010
          %3012 = vmatprep.subr.mxu0 0.0
          %v3013 = vand.u32 %v2408, 4294901760
          %3014 = vmatpush1.msra.mxu0 %v3013
          %3015 = vmatprep.subr.mxu0 0.0
          %v3016 = vand.u32 %v2415, 4294901760
          %3017 = vmatpush1.msra.mxu0 %v3016
          %3018 = vmatprep.subr.mxu0 0.0
          %v3019 = vand.u32 %v2422, 4294901760
          %3020 = vmatpush1.msra.mxu0 %v3019
          %3021 = vmatprep.subr.mxu0 0.0
          %v3022 = vand.u32 %v2429, 4294901760
          %3023 = vmatpush1.msra.mxu0 %v3022
          %3024 = vmatprep.subr.mxu0 0.0
          %v3025 = vand.u32 %v2436, 4294901760
          %3026 = vmatpush1.msra.mxu0 %v3025
          %3027 = vmatprep.subr.mxu0 0.0
          %v3028 = vand.u32 %v2443, 4294901760
          %3029 = vmatpush1.msra.mxu0 %v3028
          %3030 = vmatprep.subr.mxu0 0.0
          %v3031 = vand.u32 %v2450, 4294901760
          %3032 = vmatpush1.msra.mxu0 %v3031
          %3033 = vmatprep.subr.mxu0 0.0
          %v3034 = vand.u32 %v2457, 4294901760
          %3035 = vmatpush1.msra.mxu0 %v3034
          %3036 = vmatprep.subr.mxu0 0.0
          %v3037 = vand.u32 %v2464, 4294901760
          %3038 = vmatpush1.msra.mxu0 %v3037
          %3039 = vmatprep.subr.mxu0 0.0
          %v3040 = vand.u32 %v2471, 4294901760
          %3041 = vmatpush1.msra.mxu0 %v3040
          %3042 = vmatprep.subr.mxu0 0.0
          %v3043 = vand.u32 %v2478, 4294901760
          %3044 = vmatpush1.msra.mxu0 %v3043
          %3045 = vmatprep.subr.mxu0 0.0
          %v3046 = vand.u32 %v2485, 4294901760
          %3047 = vmatpush1.msra.mxu0 %v3046
          %3048 = vmatprep.subr.mxu0 0.0
          %v3049 = vand.u32 %v2492, 4294901760
          %3050 = vmatpush1.msra.mxu0 %v3049
          %3051 = vmatprep.subr.mxu0 0.0
          %v3052 = vand.u32 %v2499, 4294901760
          %3053 = vmatpush1.msra.mxu0 %v3052
          %3054 = vmatprep.subr.mxu0 0.0
          %v3055 = vand.u32 %v2506, 4294901760
          %3056 = vmatpush1.msra.mxu0 %v3055
          %3057 = vmatprep.subr.mxu0 0.0
          %v3058 = vand.u32 %v2513, 4294901760
          %3059 = vmatpush1.msra.mxu0 %v3058
          %3060 = vmatprep.subr.mxu0 0.0
          %v3061 = vand.u32 %v2520, 4294901760
          %3062 = vmatpush1.msra.mxu0 %v3061
          %3063 = vmatprep.subr.mxu0 0.0
          %v3064 = vand.u32 %v2527, 4294901760
          %3065 = vmatpush1.msra.mxu0 %v3064
          %3066 = vmatprep.subr.mxu0 0.0
          %v3067 = vand.u32 %v2534, 4294901760
          %3068 = vmatpush1.msra.mxu0 %v3067
          %3069 = vmatprep.subr.mxu0 0.0
          %3070 = vmatpush1.msra.mxu0 0.0
          %3071 = vmatprep.subr.mxu0 0.0
          %3072 = vmatpush1.msra.mxu0 0.0
          %3073 = vmatprep.subr.mxu0 0.0
          %3074 = vmatpush1.msra.mxu0 0.0
          %3075 = vmatprep.subr.mxu0 0.0
          %3076 = vmatpush1.msra.mxu0 0.0
          %3077 = vmatprep.subr.mxu0 0.0
          %3078 = vmatpush1.msra.mxu0 0.0
          %3079 = vmatprep.subr.mxu0 0.0
          %3080 = vmatpush1.msra.mxu0 0.0
          %3081 = vmatprep.subr.mxu0 0.0
          %3082 = vmatpush1.msra.mxu0 0.0
          %3083 = vmatprep.subr.mxu0 0.0
          %3084 = vmatpush1.msra.mxu0 0.0
          %v3085 = vand.u32 %v2543, 4294901760
          %v3086 = vsub.f32 %v2543, %v3085
          %v3087 = vand.u32 %v3086, 4294901760
          %3088 = vmatprep.mubr.f32.mxu0 %v3087
          %v3089 = vand.u32 %v2537, 4294901760
          %v3090 = vsub.f32 %v2537, %v3089
          %v3091 = vand.u32 %v3090, 4294901760
          %3092 = vmatmul.mubr.f32.gmra.mrb[0].mxu0 %v3091
          %v3093 = vpop.f32.mrb[0].mxu0
          %v3094 = vadd.f32 %v2985, %v3093
          %v3095 = vpop.f32.mrb[0].mxu0
          %v3096 = vand.u32 %v2546, 4294901760
          %v3097 = vsub.f32 %v2546, %v3096
          %v3098 = vand.u32 %v3097, 4294901760
          %3099 = vmatprep.mubr.f32.mxu0 %v3098
          %v3100 = vand.u32 %v2539, 4294901760
          %v3101 = vsub.f32 %v2539, %v3100
          %v3102 = vand.u32 %v3101, 4294901760
          %3103 = vmatmul.mubr.f32.gmra.mrb[0].mxu0 %v3102
          %v3104 = vpop.f32.mrb[0].mxu0
          %v3105 = vadd.f32 %v2994, %v3104
          %v3106 = vpop.f32.mrb[0].mxu0
          %3107 = vdwg.mxu0
          %3108 = vmatprep.subr.mxu0 0.0
          %v3109 = vand.u32 %v2373, 4294901760
          %v3110 = vsub.f32 %v2373, %v3109
          %v3111 = vand.u32 %v3110, 4294901760
          %3112 = vmatpush1.msra.mxu0 %v3111
          %3113 = vmatprep.subr.mxu0 0.0
          %v3114 = vand.u32 %v2380, 4294901760
          %v3115 = vsub.f32 %v2380, %v3114
          %v3116 = vand.u32 %v3115, 4294901760
          %3117 = vmatpush1.msra.mxu0 %v3116
          %3118 = vmatprep.subr.mxu0 0.0
          %v3119 = vand.u32 %v2387, 4294901760
          %v3120 = vsub.f32 %v2387, %v3119
          %v3121 = vand.u32 %v3120, 4294901760
          %3122 = vmatpush1.msra.mxu0 %v3121
          %3123 = vmatprep.subr.mxu0 0.0
          %v3124 = vand.u32 %v2394, 4294901760
          %v3125 = vsub.f32 %v2394, %v3124
          %v3126 = vand.u32 %v3125, 4294901760
          %3127 = vmatpush1.msra.mxu0 %v3126
          %3128 = vmatprep.subr.mxu0 0.0
          %v3129 = vand.u32 %v2401, 4294901760
          %v3130 = vsub.f32 %v2401, %v3129
          %v3131 = vand.u32 %v3130, 4294901760
          %3132 = vmatpush1.msra.mxu0 %v3131
          %3133 = vmatprep.subr.mxu0 0.0
          %v3134 = vand.u32 %v2408, 4294901760
          %v3135 = vsub.f32 %v2408, %v3134
          %v3136 = vand.u32 %v3135, 4294901760
          %3137 = vmatpush1.msra.mxu0 %v3136
          %3138 = vmatprep.subr.mxu0 0.0
          %v3139 = vand.u32 %v2415, 4294901760
          %v3140 = vsub.f32 %v2415, %v3139
          %v3141 = vand.u32 %v3140, 4294901760
          %3142 = vmatpush1.msra.mxu0 %v3141
          %3143 = vmatprep.subr.mxu0 0.0
          %v3144 = vand.u32 %v2422, 4294901760
          %v3145 = vsub.f32 %v2422, %v3144
          %v3146 = vand.u32 %v3145, 4294901760
          %3147 = vmatpush1.msra.mxu0 %v3146
          %3148 = vmatprep.subr.mxu0 0.0
          %v3149 = vand.u32 %v2429, 4294901760
          %v3150 = vsub.f32 %v2429, %v3149
          %v3151 = vand.u32 %v3150, 4294901760
          %3152 = vmatpush1.msra.mxu0 %v3151
          %3153 = vmatprep.subr.mxu0 0.0
          %v3154 = vand.u32 %v2436, 4294901760
          %v3155 = vsub.f32 %v2436, %v3154
          %v3156 = vand.u32 %v3155, 4294901760
          %3157 = vmatpush1.msra.mxu0 %v3156
          %3158 = vmatprep.subr.mxu0 0.0
          %v3159 = vand.u32 %v2443, 4294901760
          %v3160 = vsub.f32 %v2443, %v3159
          %v3161 = vand.u32 %v3160, 4294901760
          %3162 = vmatpush1.msra.mxu0 %v3161
          %3163 = vmatprep.subr.mxu0 0.0
          %v3164 = vand.u32 %v2450, 4294901760
          %v3165 = vsub.f32 %v2450, %v3164
          %v3166 = vand.u32 %v3165, 4294901760
          %3167 = vmatpush1.msra.mxu0 %v3166
          %3168 = vmatprep.subr.mxu0 0.0
          %v3169 = vand.u32 %v2457, 4294901760
          %v3170 = vsub.f32 %v2457, %v3169
          %v3171 = vand.u32 %v3170, 4294901760
          %3172 = vmatpush1.msra.mxu0 %v3171
          %3173 = vmatprep.subr.mxu0 0.0
          %v3174 = vand.u32 %v2464, 4294901760
          %v3175 = vsub.f32 %v2464, %v3174
          %v3176 = vand.u32 %v3175, 4294901760
          %3177 = vmatpush1.msra.mxu0 %v3176
          %3178 = vmatprep.subr.mxu0 0.0
          %v3179 = vand.u32 %v2471, 4294901760
          %v3180 = vsub.f32 %v2471, %v3179
          %v3181 = vand.u32 %v3180, 4294901760
          %3182 = vmatpush1.msra.mxu0 %v3181
          %3183 = vmatprep.subr.mxu0 0.0
          %v3184 = vand.u32 %v2478, 4294901760
          %v3185 = vsub.f32 %v2478, %v3184
          %v3186 = vand.u32 %v3185, 4294901760
          %3187 = vmatpush1.msra.mxu0 %v3186
          %3188 = vmatprep.subr.mxu0 0.0
          %v3189 = vand.u32 %v2485, 4294901760
          %v3190 = vsub.f32 %v2485, %v3189
          %v3191 = vand.u32 %v3190, 4294901760
          %3192 = vmatpush1.msra.mxu0 %v3191
          %3193 = vmatprep.subr.mxu0 0.0
          %v3194 = vand.u32 %v2492, 4294901760
          %v3195 = vsub.f32 %v2492, %v3194
          %v3196 = vand.u32 %v3195, 4294901760
          %3197 = vmatpush1.msra.mxu0 %v3196
          %3198 = vmatprep.subr.mxu0 0.0
          %v3199 = vand.u32 %v2499, 4294901760
          %v3200 = vsub.f32 %v2499, %v3199
          %v3201 = vand.u32 %v3200, 4294901760
          %3202 = vmatpush1.msra.mxu0 %v3201
          %3203 = vmatprep.subr.mxu0 0.0
          %v3204 = vand.u32 %v2506, 4294901760
          %v3205 = vsub.f32 %v2506, %v3204
          %v3206 = vand.u32 %v3205, 4294901760
          %3207 = vmatpush1.msra.mxu0 %v3206
          %3208 = vmatprep.subr.mxu0 0.0
          %v3209 = vand.u32 %v2513, 4294901760
          %v3210 = vsub.f32 %v2513, %v3209
          %v3211 = vand.u32 %v3210, 4294901760
          %3212 = vmatpush1.msra.mxu0 %v3211
          %3213 = vmatprep.subr.mxu0 0.0
          %v3214 = vand.u32 %v2520, 4294901760
          %v3215 = vsub.f32 %v2520, %v3214
          %v3216 = vand.u32 %v3215, 4294901760
          %3217 = vmatpush1.msra.mxu0 %v3216
          %3218 = vmatprep.subr.mxu0 0.0
          %v3219 = vand.u32 %v2527, 4294901760
          %v3220 = vsub.f32 %v2527, %v3219
          %v3221 = vand.u32 %v3220, 4294901760
          %3222 = vmatpush1.msra.mxu0 %v3221
          %3223 = vmatprep.subr.mxu0 0.0
          %v3224 = vand.u32 %v2534, 4294901760
          %v3225 = vsub.f32 %v2534, %v3224
          %v3226 = vand.u32 %v3225, 4294901760
          %3227 = vmatpush1.msra.mxu0 %v3226
          %3228 = vmatprep.subr.mxu0 0.0
          %3229 = vmatpush1.msra.mxu0 0.0
          %3230 = vmatprep.subr.mxu0 0.0
          %3231 = vmatpush1.msra.mxu0 0.0
          %3232 = vmatprep.subr.mxu0 0.0
          %3233 = vmatpush1.msra.mxu0 0.0
          %3234 = vmatprep.subr.mxu0 0.0
          %3235 = vmatpush1.msra.mxu0 0.0
          %3236 = vmatprep.subr.mxu0 0.0
          %3237 = vmatpush1.msra.mxu0 0.0
          %3238 = vmatprep.subr.mxu0 0.0
          %3239 = vmatpush1.msra.mxu0 0.0
          %3240 = vmatprep.subr.mxu0 0.0
          %3241 = vmatpush1.msra.mxu0 0.0
          %3242 = vmatprep.subr.mxu0 0.0
          %3243 = vmatpush1.msra.mxu0 0.0
          %v3244 = vand.u32 %v2543, 4294901760
          %3245 = vmatprep.mubr.f32.mxu0 %v3244
          %v3246 = vand.u32 %v2537, 4294901760
          %3247 = vmatmul.mubr.f32.gmra.mrb[0].mxu0 %v3246
          %v3248 = vpop.f32.mrb[0].mxu0
          %v3249 = vadd.f32 %v3094, %v3248
          %v3250 = vpop.f32.mrb[0].mxu0
          %v3251 = vand.u32 %v2546, 4294901760
          %3252 = vmatprep.mubr.f32.mxu0 %v3251
          %v3253 = vand.u32 %v2539, 4294901760
          %3254 = vmatmul.mubr.f32.gmra.mrb[0].mxu0 %v3253
          %v3255 = vpop.f32.mrb[0].mxu0
          %v3256 = vadd.f32 %v3105, %v3255
          %v3257 = vpop.f32.mrb[0].mxu0
          %3258 = vdwg.mxu0
          %3259 = vmatprep.subr.mxu0 0.0
          %v3260 = vand.u32 %v2373, 4294901760
          %3261 = vmatpush1.msra.mxu0 %v3260
          %3262 = vmatprep.subr.mxu0 0.0
          %v3263 = vand.u32 %v2380, 4294901760
          %3264 = vmatpush1.msra.mxu0 %v3263
          %3265 = vmatprep.subr.mxu0 0.0
          %v3266 = vand.u32 %v2387, 4294901760
          %3267 = vmatpush1.msra.mxu0 %v3266
          %3268 = vmatprep.subr.mxu0 0.0
          %v3269 = vand.u32 %v2394, 4294901760
          %3270 = vmatpush1.msra.mxu0 %v3269
          %3271 = vmatprep.subr.mxu0 0.0
          %v3272 = vand.u32 %v2401, 4294901760
          %3273 = vmatpush1.msra.mxu0 %v3272
          %3274 = vmatprep.subr.mxu0 0.0
          %v3275 = vand.u32 %v2408, 4294901760
          %3276 = vmatpush1.msra.mxu0 %v3275
          %3277 = vmatprep.subr.mxu0 0.0
          %v3278 = vand.u32 %v2415, 4294901760
          %3279 = vmatpush1.msra.mxu0 %v3278
          %3280 = vmatprep.subr.mxu0 0.0
          %v3281 = vand.u32 %v2422, 4294901760
          %3282 = vmatpush1.msra.mxu0 %v3281
          %3283 = vmatprep.subr.mxu0 0.0
          %v3284 = vand.u32 %v2429, 4294901760
          %3285 = vmatpush1.msra.mxu0 %v3284
          %3286 = vmatprep.subr.mxu0 0.0
          %v3287 = vand.u32 %v2436, 4294901760
          %3288 = vmatpush1.msra.mxu0 %v3287
          %3289 = vmatprep.subr.mxu0 0.0
          %v3290 = vand.u32 %v2443, 4294901760
          %3291 = vmatpush1.msra.mxu0 %v3290
          %3292 = vmatprep.subr.mxu0 0.0
          %v3293 = vand.u32 %v2450, 4294901760
          %3294 = vmatpush1.msra.mxu0 %v3293
          %3295 = vmatprep.subr.mxu0 0.0
          %v3296 = vand.u32 %v2457, 4294901760
          %3297 = vmatpush1.msra.mxu0 %v3296
          %3298 = vmatprep.subr.mxu0 0.0
          %v3299 = vand.u32 %v2464, 4294901760
          %3300 = vmatpush1.msra.mxu0 %v3299
          %3301 = vmatprep.subr.mxu0 0.0
          %v3302 = vand.u32 %v2471, 4294901760
          %3303 = vmatpush1.msra.mxu0 %v3302
          %3304 = vmatprep.subr.mxu0 0.0
          %v3305 = vand.u32 %v2478, 4294901760
          %3306 = vmatpush1.msra.mxu0 %v3305
          %3307 = vmatprep.subr.mxu0 0.0
          %v3308 = vand.u32 %v2485, 4294901760
          %3309 = vmatpush1.msra.mxu0 %v3308
          %3310 = vmatprep.subr.mxu0 0.0
          %v3311 = vand.u32 %v2492, 4294901760
          %3312 = vmatpush1.msra.mxu0 %v3311
          %3313 = vmatprep.subr.mxu0 0.0
          %v3314 = vand.u32 %v2499, 4294901760
          %3315 = vmatpush1.msra.mxu0 %v3314
          %3316 = vmatprep.subr.mxu0 0.0
          %v3317 = vand.u32 %v2506, 4294901760
          %3318 = vmatpush1.msra.mxu0 %v3317
          %3319 = vmatprep.subr.mxu0 0.0
          %v3320 = vand.u32 %v2513, 4294901760
          %3321 = vmatpush1.msra.mxu0 %v3320
          %3322 = vmatprep.subr.mxu0 0.0
          %v3323 = vand.u32 %v2520, 4294901760
          %3324 = vmatpush1.msra.mxu0 %v3323
          %3325 = vmatprep.subr.mxu0 0.0
          %v3326 = vand.u32 %v2527, 4294901760
          %3327 = vmatpush1.msra.mxu0 %v3326
          %3328 = vmatprep.subr.mxu0 0.0
          %v3329 = vand.u32 %v2534, 4294901760
          %3330 = vmatpush1.msra.mxu0 %v3329
          %3331 = vmatprep.subr.mxu0 0.0
          %3332 = vmatpush1.msra.mxu0 0.0
          %3333 = vmatprep.subr.mxu0 0.0
          %3334 = vmatpush1.msra.mxu0 0.0
          %3335 = vmatprep.subr.mxu0 0.0
          %3336 = vmatpush1.msra.mxu0 0.0
          %3337 = vmatprep.subr.mxu0 0.0
          %3338 = vmatpush1.msra.mxu0 0.0
          %3339 = vmatprep.subr.mxu0 0.0
          %3340 = vmatpush1.msra.mxu0 0.0
          %3341 = vmatprep.subr.mxu0 0.0
          %3342 = vmatpush1.msra.mxu0 0.0
          %3343 = vmatprep.subr.mxu0 0.0
          %3344 = vmatpush1.msra.mxu0 0.0
          %3345 = vmatprep.subr.mxu0 0.0
          %3346 = vmatpush1.msra.mxu0 0.0
          %v3347 = vand.u32 %v2543, 4294901760
          %3348 = vmatprep.mubr.f32.mxu0 %v3347
          %v3349 = vand.u32 %v2537, 4294901760
          %3350 = vmatmul.mubr.f32.gmra.mrb[0].mxu0 %v3349
          %v3351 = vpop.f32.mrb[0].mxu0
          %v3352 = vadd.f32 %v3249, %v3351
          %v3353 = vpop.f32.mrb[0].mxu0
          %v3354 = vand.u32 %v2546, 4294901760
          %3355 = vmatprep.mubr.f32.mxu0 %v3354
          %v3356 = vand.u32 %v2539, 4294901760
          %3357 = vmatmul.mubr.f32.gmra.mrb[0].mxu0 %v3356
          %v3358 = vpop.f32.mrb[0].mxu0
          %v3359 = vadd.f32 %v3256, %v3358
          %v3360 = vpop.f32.mrb[0].mxu0
          %3361 = vdwg.mxu0
          %v3362 = vld [vmem:[%s3] sm:$0xff]
          %v3363 = vld [vmem:[%s3 + $0x8] sm:$0xff]
          %vm3364 = vcmask 130048
          %v3366 = vsel %vm3364, %v3362, 0
          %v3369 = vsel %vm3364, %v3363, 0
          %3371 = vmatprep.subr.mxu0 0.0
          %v3372 = vand.u32 %v3352, 4294901760
          %3373 = vmatpush1.msra.mxu0 %v3372
          %3374 = vmatprep.subr.mxu0 0.0
          %v3375 = vand.u32 %v3359, 4294901760
          %3376 = vmatpush1.msra.mxu0 %v3375
          %3377 = vmatprep.subr.mxu0 0.0
          %3378 = vmatpush1.msra.mxu0 0.0
          %3379 = vmatprep.subr.mxu0 0.0
          %3380 = vmatpush1.msra.mxu0 0.0
          %3381 = vmatprep.subr.mxu0 0.0
          %3382 = vmatpush1.msra.mxu0 0.0
          %3383 = vmatprep.subr.mxu0 0.0
          %3384 = vmatpush1.msra.mxu0 0.0
          %3385 = vmatprep.subr.mxu0 0.0
          %3386 = vmatpush1.msra.mxu0 0.0
          %3387 = vmatprep.subr.mxu0 0.0
          %3388 = vmatpush1.msra.mxu0 0.0
          %3389 = vmatprep.subr.mxu0 0.0
          %3390 = vmatpush1.msra.mxu0 0.0
          %3391 = vmatprep.subr.mxu0 0.0
          %3392 = vmatpush1.msra.mxu0 0.0
          %3393 = vmatprep.subr.mxu0 0.0
          %3394 = vmatpush1.msra.mxu0 0.0
          %3395 = vmatprep.subr.mxu0 0.0
          %3396 = vmatpush1.msra.mxu0 0.0
          %3397 = vmatprep.subr.mxu0 0.0
          %3398 = vmatpush1.msra.mxu0 0.0
          %3399 = vmatprep.subr.mxu0 0.0
          %3400 = vmatpush1.msra.mxu0 0.0
          %3401 = vmatprep.subr.mxu0 0.0
          %3402 = vmatpush1.msra.mxu0 0.0
          %3403 = vmatprep.subr.mxu0 0.0
          %3404 = vmatpush1.msra.mxu0 0.0
          %3405 = vmatprep.subr.mxu0 0.0
          %3406 = vmatpush1.msra.mxu0 0.0
          %3407 = vmatprep.subr.mxu0 0.0
          %3408 = vmatpush1.msra.mxu0 0.0
          %3409 = vmatprep.subr.mxu0 0.0
          %3410 = vmatpush1.msra.mxu0 0.0
          %3411 = vmatprep.subr.mxu0 0.0
          %3412 = vmatpush1.msra.mxu0 0.0
          %3413 = vmatprep.subr.mxu0 0.0
          %3414 = vmatpush1.msra.mxu0 0.0
          %3415 = vmatprep.subr.mxu0 0.0
          %3416 = vmatpush1.msra.mxu0 0.0
          %3417 = vmatprep.subr.mxu0 0.0
          %3418 = vmatpush1.msra.mxu0 0.0
          %3419 = vmatprep.subr.mxu0 0.0
          %3420 = vmatpush1.msra.mxu0 0.0
          %3421 = vmatprep.subr.mxu0 0.0
          %3422 = vmatpush1.msra.mxu0 0.0
          %3423 = vmatprep.subr.mxu0 0.0
          %3424 = vmatpush1.msra.mxu0 0.0
          %3425 = vmatprep.subr.mxu0 0.0
          %3426 = vmatpush1.msra.mxu0 0.0
          %3427 = vmatprep.subr.mxu0 0.0
          %3428 = vmatpush1.msra.mxu0 0.0
          %3429 = vmatprep.subr.mxu0 0.0
          %3430 = vmatpush1.msra.mxu0 0.0
          %3431 = vmatprep.subr.mxu0 0.0
          %3432 = vmatpush1.msra.mxu0 0.0
          %3433 = vmatprep.subr.mxu0 0.0
          %3434 = vmatpush1.msra.mxu0 0.0
          %3435 = vmatprep.subr.mxu0 0.0
          %3436 = vmatpush1.msra.mxu0 0.0
          %3437 = vmatprep.mubr.f32.mxu0 0.0
          %v3438 = vand.u32 %v3366, 4294901760
          %v3439 = vsub.f32 %v3366, %v3438
          %v3440 = vand.u32 %v3439, 4294901760
          %v3441 = vsub.f32 %v3439, %v3440
          %v3442 = vand.u32 %v3441, 4294901760
          %3443 = vmatmul.mubr.f32.gmra.mrb[0].mxu0 %v3442
          %v3444 = vpop.f32.mrb[0].mxu0
          %v3445 = vadd.f32 0.0, %v3444
          %v3446 = vpop.f32.mrb[0].mxu0
          %3447 = vmatprep.mubr.f32.mxu0 0.0
          %v3448 = vand.u32 %v3369, 4294901760
          %v3449 = vsub.f32 %v3369, %v3448
          %v3450 = vand.u32 %v3449, 4294901760
          %v3451 = vsub.f32 %v3449, %v3450
          %v3452 = vand.u32 %v3451, 4294901760
          %3453 = vmatmul.mubr.f32.gmra.mrb[0].mxu0 %v3452
          %v3454 = vpop.f32.mrb[0].mxu0
          %v3455 = vadd.f32 0.0, %v3454
          %v3456 = vpop.f32.mrb[0].mxu0
          %3457 = vdwg.mxu0
          %3458 = vmatprep.subr.mxu0 0.0
          %v3459 = vand.u32 %v3352, 4294901760
          %v3460 = vsub.f32 %v3352, %v3459
          %v3461 = vand.u32 %v3460, 4294901760
          %v3462 = vsub.f32 %v3460, %v3461
          %v3463 = vand.u32 %v3462, 4294901760
          %3464 = vmatpush1.msra.mxu0 %v3463
          %3465 = vmatprep.subr.mxu0 0.0
          %v3466 = vand.u32 %v3359, 4294901760
          %v3467 = vsub.f32 %v3359, %v3466
          %v3468 = vand.u32 %v3467, 4294901760
          %v3469 = vsub.f32 %v3467, %v3468
          %v3470 = vand.u32 %v3469, 4294901760
          %3471 = vmatpush1.msra.mxu0 %v3470
          %3472 = vmatprep.subr.mxu0 0.0
          %3473 = vmatpush1.msra.mxu0 0.0
          %3474 = vmatprep.subr.mxu0 0.0
          %3475 = vmatpush1.msra.mxu0 0.0
          %3476 = vmatprep.subr.mxu0 0.0
          %3477 = vmatpush1.msra.mxu0 0.0
          %3478 = vmatprep.subr.mxu0 0.0
          %3479 = vmatpush1.msra.mxu0 0.0
          %3480 = vmatprep.subr.mxu0 0.0
          %3481 = vmatpush1.msra.mxu0 0.0
          %3482 = vmatprep.subr.mxu0 0.0
          %3483 = vmatpush1.msra.mxu0 0.0
          %3484 = vmatprep.subr.mxu0 0.0
          %3485 = vmatpush1.msra.mxu0 0.0
          %3486 = vmatprep.subr.mxu0 0.0
          %3487 = vmatpush1.msra.mxu0 0.0
          %3488 = vmatprep.subr.mxu0 0.0
          %3489 = vmatpush1.msra.mxu0 0.0
          %3490 = vmatprep.subr.mxu0 0.0
          %3491 = vmatpush1.msra.mxu0 0.0
          %3492 = vmatprep.subr.mxu0 0.0
          %3493 = vmatpush1.msra.mxu0 0.0
          %3494 = vmatprep.subr.mxu0 0.0
          %3495 = vmatpush1.msra.mxu0 0.0
          %3496 = vmatprep.subr.mxu0 0.0
          %3497 = vmatpush1.msra.mxu0 0.0
          %3498 = vmatprep.subr.mxu0 0.0
          %3499 = vmatpush1.msra.mxu0 0.0
          %3500 = vmatprep.subr.mxu0 0.0
          %3501 = vmatpush1.msra.mxu0 0.0
          %3502 = vmatprep.subr.mxu0 0.0
          %3503 = vmatpush1.msra.mxu0 0.0
          %3504 = vmatprep.subr.mxu0 0.0
          %3505 = vmatpush1.msra.mxu0 0.0
          %3506 = vmatprep.subr.mxu0 0.0
          %3507 = vmatpush1.msra.mxu0 0.0
          %3508 = vmatprep.subr.mxu0 0.0
          %3509 = vmatpush1.msra.mxu0 0.0
          %3510 = vmatprep.subr.mxu0 0.0
          %3511 = vmatpush1.msra.mxu0 0.0
          %3512 = vmatprep.subr.mxu0 0.0
          %3513 = vmatpush1.msra.mxu0 0.0
          %3514 = vmatprep.subr.mxu0 0.0
          %3515 = vmatpush1.msra.mxu0 0.0
          %3516 = vmatprep.subr.mxu0 0.0
          %3517 = vmatpush1.msra.mxu0 0.0
          %3518 = vmatprep.subr.mxu0 0.0
          %3519 = vmatpush1.msra.mxu0 0.0
          %3520 = vmatprep.subr.mxu0 0.0
          %3521 = vmatpush1.msra.mxu0 0.0
          %3522 = vmatprep.subr.mxu0 0.0
          %3523 = vmatpush1.msra.mxu0 0.0
          %3524 = vmatprep.subr.mxu0 0.0
          %3525 = vmatpush1.msra.mxu0 0.0
          %3526 = vmatprep.subr.mxu0 0.0
          %3527 = vmatpush1.msra.mxu0 0.0
          %3528 = vmatprep.subr.mxu0 0.0
          %3529 = vmatpush1.msra.mxu0 0.0
          %3530 = vmatprep.subr.mxu0 0.0
          %3531 = vmatpush1.msra.mxu0 0.0
          %3532 = vmatprep.mubr.f32.mxu0 0.0
          %v3533 = vand.u32 %v3366, 4294901760
          %3534 = vmatmul.mubr.f32.gmra.mrb[0].mxu0 %v3533
          %v3535 = vpop.f32.mrb[0].mxu0
          %v3536 = vadd.f32 %v3445, %v3535
          %v3537 = vpop.f32.mrb[0].mxu0
          %3538 = vmatprep.mubr.f32.mxu0 0.0
          %v3539 = vand.u32 %v3369, 4294901760
          %3540 = vmatmul.mubr.f32.gmra.mrb[0].mxu0 %v3539
          %v3541 = vpop.f32.mrb[0].mxu0
          %v3542 = vadd.f32 %v3455, %v3541
          %v3543 = vpop.f32.mrb[0].mxu0
          %3544 = vdwg.mxu0
          %3545 = vmatprep.subr.mxu0 0.0
          %v3546 = vand.u32 %v3352, 4294901760
          %v3547 = vsub.f32 %v3352, %v3546
          %3548 = vmatpush1.msra.mxu0 %v3547
          %3549 = vmatprep.subr.mxu0 0.0
          %v3550 = vand.u32 %v3359, 4294901760
          %v3551 = vsub.f32 %v3359, %v3550
          %3552 = vmatpush1.msra.mxu0 %v3551
          %3553 = vmatprep.subr.mxu0 0.0
          %3554 = vmatpush1.msra.mxu0 0.0
          %3555 = vmatprep.subr.mxu0 0.0
          %3556 = vmatpush1.msra.mxu0 0.0
          %3557 = vmatprep.subr.mxu0 0.0
          %3558 = vmatpush1.msra.mxu0 0.0
          %3559 = vmatprep.subr.mxu0 0.0
          %3560 = vmatpush1.msra.mxu0 0.0
          %3561 = vmatprep.subr.mxu0 0.0
          %3562 = vmatpush1.msra.mxu0 0.0
          %3563 = vmatprep.subr.mxu0 0.0
          %3564 = vmatpush1.msra.mxu0 0.0
          %3565 = vmatprep.subr.mxu0 0.0
          %3566 = vmatpush1.msra.mxu0 0.0
          %3567 = vmatprep.subr.mxu0 0.0
          %3568 = vmatpush1.msra.mxu0 0.0
          %3569 = vmatprep.subr.mxu0 0.0
          %3570 = vmatpush1.msra.mxu0 0.0
          %3571 = vmatprep.subr.mxu0 0.0
          %3572 = vmatpush1.msra.mxu0 0.0
          %3573 = vmatprep.subr.mxu0 0.0
          %3574 = vmatpush1.msra.mxu0 0.0
          %3575 = vmatprep.subr.mxu0 0.0
          %3576 = vmatpush1.msra.mxu0 0.0
          %3577 = vmatprep.subr.mxu0 0.0
          %3578 = vmatpush1.msra.mxu0 0.0
          %3579 = vmatprep.subr.mxu0 0.0
          %3580 = vmatpush1.msra.mxu0 0.0
          %3581 = vmatprep.subr.mxu0 0.0
          %3582 = vmatpush1.msra.mxu0 0.0
          %3583 = vmatprep.subr.mxu0 0.0
          %3584 = vmatpush1.msra.mxu0 0.0
          %3585 = vmatprep.subr.mxu0 0.0
          %3586 = vmatpush1.msra.mxu0 0.0
          %3587 = vmatprep.subr.mxu0 0.0
          %3588 = vmatpush1.msra.mxu0 0.0
          %3589 = vmatprep.subr.mxu0 0.0
          %3590 = vmatpush1.msra.mxu0 0.0
          %3591 = vmatprep.subr.mxu0 0.0
          %3592 = vmatpush1.msra.mxu0 0.0
          %3593 = vmatprep.subr.mxu0 0.0
          %3594 = vmatpush1.msra.mxu0 0.0
          %3595 = vmatprep.subr.mxu0 0.0
          %3596 = vmatpush1.msra.mxu0 0.0
          %3597 = vmatprep.subr.mxu0 0.0
          %3598 = vmatpush1.msra.mxu0 0.0
          %3599 = vmatprep.subr.mxu0 0.0
          %3600 = vmatpush1.msra.mxu0 0.0
          %3601 = vmatprep.subr.mxu0 0.0
          %3602 = vmatpush1.msra.mxu0 0.0
          %3603 = vmatprep.subr.mxu0 0.0
          %3604 = vmatpush1.msra.mxu0 0.0
          %3605 = vmatprep.subr.mxu0 0.0
          %3606 = vmatpush1.msra.mxu0 0.0
          %3607 = vmatprep.subr.mxu0 0.0
          %3608 = vmatpush1.msra.mxu0 0.0
          %3609 = vmatprep.subr.mxu0 0.0
          %3610 = vmatpush1.msra.mxu0 0.0
          %3611 = vmatprep.subr.mxu0 0.0
          %3612 = vmatpush1.msra.mxu0 0.0
          %3613 = vmatprep.mubr.f32.mxu0 0.0
          %v3614 = vand.u32 %v3366, 4294901760
          %v3615 = vsub.f32 %v3366, %v3614
          %3616 = vmatmul.mubr.f32.gmra.mrb[0].mxu0 %v3615
          %v3617 = vpop.f32.mrb[0].mxu0
          %v3618 = vadd.f32 %v3536, %v3617
          %v3619 = vpop.f32.mrb[0].mxu0
          %3620 = vmatprep.mubr.f32.mxu0 0.0
          %v3621 = vand.u32 %v3369, 4294901760
          %v3622 = vsub.f32 %v3369, %v3621
          %3623 = vmatmul.mubr.f32.gmra.mrb[0].mxu0 %v3622
          %v3624 = vpop.f32.mrb[0].mxu0
          %v3625 = vadd.f32 %v3542, %v3624
          %v3626 = vpop.f32.mrb[0].mxu0
          %3627 = vdwg.mxu0
          %3628 = vmatprep.subr.mxu0 0.0
          %v3629 = vand.u32 %v3352, 4294901760
          %3630 = vmatpush1.msra.mxu0 %v3629
          %3631 = vmatprep.subr.mxu0 0.0
          %v3632 = vand.u32 %v3359, 4294901760
          %3633 = vmatpush1.msra.mxu0 %v3632
          %3634 = vmatprep.subr.mxu0 0.0
          %3635 = vmatpush1.msra.mxu0 0.0
          %3636 = vmatprep.subr.mxu0 0.0
          %3637 = vmatpush1.msra.mxu0 0.0
          %3638 = vmatprep.subr.mxu0 0.0
          %3639 = vmatpush1.msra.mxu0 0.0
          %3640 = vmatprep.subr.mxu0 0.0
          %3641 = vmatpush1.msra.mxu0 0.0
          %3642 = vmatprep.subr.mxu0 0.0
          %3643 = vmatpush1.msra.mxu0 0.0
          %3644 = vmatprep.subr.mxu0 0.0
          %3645 = vmatpush1.msra.mxu0 0.0
          %3646 = vmatprep.subr.mxu0 0.0
          %3647 = vmatpush1.msra.mxu0 0.0
          %3648 = vmatprep.subr.mxu0 0.0
          %3649 = vmatpush1.msra.mxu0 0.0
          %3650 = vmatprep.subr.mxu0 0.0
          %3651 = vmatpush1.msra.mxu0 0.0
          %3652 = vmatprep.subr.mxu0 0.0
          %3653 = vmatpush1.msra.mxu0 0.0
          %3654 = vmatprep.subr.mxu0 0.0
          %3655 = vmatpush1.msra.mxu0 0.0
          %3656 = vmatprep.subr.mxu0 0.0
          %3657 = vmatpush1.msra.mxu0 0.0
          %3658 = vmatprep.subr.mxu0 0.0
          %3659 = vmatpush1.msra.mxu0 0.0
          %3660 = vmatprep.subr.mxu0 0.0
          %3661 = vmatpush1.msra.mxu0 0.0
          %3662 = vmatprep.subr.mxu0 0.0
          %3663 = vmatpush1.msra.mxu0 0.0
          %3664 = vmatprep.subr.mxu0 0.0
          %3665 = vmatpush1.msra.mxu0 0.0
          %3666 = vmatprep.subr.mxu0 0.0
          %3667 = vmatpush1.msra.mxu0 0.0
          %3668 = vmatprep.subr.mxu0 0.0
          %3669 = vmatpush1.msra.mxu0 0.0
          %3670 = vmatprep.subr.mxu0 0.0
          %3671 = vmatpush1.msra.mxu0 0.0
          %3672 = vmatprep.subr.mxu0 0.0
          %3673 = vmatpush1.msra.mxu0 0.0
          %3674 = vmatprep.subr.mxu0 0.0
          %3675 = vmatpush1.msra.mxu0 0.0
          %3676 = vmatprep.subr.mxu0 0.0
          %3677 = vmatpush1.msra.mxu0 0.0
          %3678 = vmatprep.subr.mxu0 0.0
          %3679 = vmatpush1.msra.mxu0 0.0
          %3680 = vmatprep.subr.mxu0 0.0
          %3681 = vmatpush1.msra.mxu0 0.0
          %3682 = vmatprep.subr.mxu0 0.0
          %3683 = vmatpush1.msra.mxu0 0.0
          %3684 = vmatprep.subr.mxu0 0.0
          %3685 = vmatpush1.msra.mxu0 0.0
          %3686 = vmatprep.subr.mxu0 0.0
          %3687 = vmatpush1.msra.mxu0 0.0
          %3688 = vmatprep.subr.mxu0 0.0
          %3689 = vmatpush1.msra.mxu0 0.0
          %3690 = vmatprep.subr.mxu0 0.0
          %3691 = vmatpush1.msra.mxu0 0.0
          %3692 = vmatprep.subr.mxu0 0.0
          %3693 = vmatpush1.msra.mxu0 0.0
          %3694 = vmatprep.mubr.f32.mxu0 0.0
          %v3695 = vand.u32 %v3366, 4294901760
          %v3696 = vsub.f32 %v3366, %v3695
          %v3697 = vand.u32 %v3696, 4294901760
          %3698 = vmatmul.mubr.f32.gmra.mrb[0].mxu0 %v3697
          %v3699 = vpop.f32.mrb[0].mxu0
          %v3700 = vadd.f32 %v3618, %v3699
          %v3701 = vpop.f32.mrb[0].mxu0
          %3702 = vmatprep.mubr.f32.mxu0 0.0
          %v3703 = vand.u32 %v3369, 4294901760
          %v3704 = vsub.f32 %v3369, %v3703
          %v3705 = vand.u32 %v3704, 4294901760
          %3706 = vmatmul.mubr.f32.gmra.mrb[0].mxu0 %v3705
          %v3707 = vpop.f32.mrb[0].mxu0
          %v3708 = vadd.f32 %v3625, %v3707
          %v3709 = vpop.f32.mrb[0].mxu0
          %3710 = vdwg.mxu0
          %3711 = vmatprep.subr.mxu0 0.0
          %v3712 = vand.u32 %v3352, 4294901760
          %v3713 = vsub.f32 %v3352, %v3712
          %v3714 = vand.u32 %v3713, 4294901760
          %3715 = vmatpush1.msra.mxu0 %v3714
          %3716 = vmatprep.subr.mxu0 0.0
          %v3717 = vand.u32 %v3359, 4294901760
          %v3718 = vsub.f32 %v3359, %v3717
          %v3719 = vand.u32 %v3718, 4294901760
          %3720 = vmatpush1.msra.mxu0 %v3719
          %3721 = vmatprep.subr.mxu0 0.0
          %3722 = vmatpush1.msra.mxu0 0.0
          %3723 = vmatprep.subr.mxu0 0.0
          %3724 = vmatpush1.msra.mxu0 0.0
          %3725 = vmatprep.subr.mxu0 0.0
          %3726 = vmatpush1.msra.mxu0 0.0
          %3727 = vmatprep.subr.mxu0 0.0
          %3728 = vmatpush1.msra.mxu0 0.0
          %3729 = vmatprep.subr.mxu0 0.0
          %3730 = vmatpush1.msra.mxu0 0.0
          %3731 = vmatprep.subr.mxu0 0.0
          %3732 = vmatpush1.msra.mxu0 0.0
          %3733 = vmatprep.subr.mxu0 0.0
          %3734 = vmatpush1.msra.mxu0 0.0
          %3735 = vmatprep.subr.mxu0 0.0
          %3736 = vmatpush1.msra.mxu0 0.0
          %3737 = vmatprep.subr.mxu0 0.0
          %3738 = vmatpush1.msra.mxu0 0.0
          %3739 = vmatprep.subr.mxu0 0.0
          %3740 = vmatpush1.msra.mxu0 0.0
          %3741 = vmatprep.subr.mxu0 0.0
          %3742 = vmatpush1.msra.mxu0 0.0
          %3743 = vmatprep.subr.mxu0 0.0
          %3744 = vmatpush1.msra.mxu0 0.0
          %3745 = vmatprep.subr.mxu0 0.0
          %3746 = vmatpush1.msra.mxu0 0.0
          %3747 = vmatprep.subr.mxu0 0.0
          %3748 = vmatpush1.msra.mxu0 0.0
          %3749 = vmatprep.subr.mxu0 0.0
          %3750 = vmatpush1.msra.mxu0 0.0
          %3751 = vmatprep.subr.mxu0 0.0
          %3752 = vmatpush1.msra.mxu0 0.0
          %3753 = vmatprep.subr.mxu0 0.0
          %3754 = vmatpush1.msra.mxu0 0.0
          %3755 = vmatprep.subr.mxu0 0.0
          %3756 = vmatpush1.msra.mxu0 0.0
          %3757 = vmatprep.subr.mxu0 0.0
          %3758 = vmatpush1.msra.mxu0 0.0
          %3759 = vmatprep.subr.mxu0 0.0
          %3760 = vmatpush1.msra.mxu0 0.0
          %3761 = vmatprep.subr.mxu0 0.0
          %3762 = vmatpush1.msra.mxu0 0.0
          %3763 = vmatprep.subr.mxu0 0.0
          %3764 = vmatpush1.msra.mxu0 0.0
          %3765 = vmatprep.subr.mxu0 0.0
          %3766 = vmatpush1.msra.mxu0 0.0
          %3767 = vmatprep.subr.mxu0 0.0
          %3768 = vmatpush1.msra.mxu0 0.0
          %3769 = vmatprep.subr.mxu0 0.0
          %3770 = vmatpush1.msra.mxu0 0.0
          %3771 = vmatprep.subr.mxu0 0.0
          %3772 = vmatpush1.msra.mxu0 0.0
          %3773 = vmatprep.subr.mxu0 0.0
          %3774 = vmatpush1.msra.mxu0 0.0
          %3775 = vmatprep.subr.mxu0 0.0
          %3776 = vmatpush1.msra.mxu0 0.0
          %3777 = vmatprep.subr.mxu0 0.0
          %3778 = vmatpush1.msra.mxu0 0.0
          %3779 = vmatprep.subr.mxu0 0.0
          %3780 = vmatpush1.msra.mxu0 0.0
          %3781 = vmatprep.mubr.f32.mxu0 0.0
          %v3782 = vand.u32 %v3366, 4294901760
          %3783 = vmatmul.mubr.f32.gmra.mrb[0].mxu0 %v3782
          %v3784 = vpop.f32.mrb[0].mxu0
          %v3785 = vadd.f32 %v3700, %v3784
          %v3786 = vpop.f32.mrb[0].mxu0
          %3787 = vmatprep.mubr.f32.mxu0 0.0
          %v3788 = vand.u32 %v3369, 4294901760
          %3789 = vmatmul.mubr.f32.gmra.mrb[0].mxu0 %v3788
          %v3790 = vpop.f32.mrb[0].mxu0
          %v3791 = vadd.f32 %v3708, %v3790
          %v3792 = vpop.f32.mrb[0].mxu0
          %3793 = vdwg.mxu0
          %3794 = vmatprep.subr.mxu0 0.0
          %v3795 = vand.u32 %v3352, 4294901760
          %3796 = vmatpush1.msra.mxu0 %v3795
          %3797 = vmatprep.subr.mxu0 0.0
          %v3798 = vand.u32 %v3359, 4294901760
          %3799 = vmatpush1.msra.mxu0 %v3798
          %3800 = vmatprep.subr.mxu0 0.0
          %3801 = vmatpush1.msra.mxu0 0.0
          %3802 = vmatprep.subr.mxu0 0.0
          %3803 = vmatpush1.msra.mxu0 0.0
          %3804 = vmatprep.subr.mxu0 0.0
          %3805 = vmatpush1.msra.mxu0 0.0
          %3806 = vmatprep.subr.mxu0 0.0
          %3807 = vmatpush1.msra.mxu0 0.0
          %3808 = vmatprep.subr.mxu0 0.0
          %3809 = vmatpush1.msra.mxu0 0.0
          %3810 = vmatprep.subr.mxu0 0.0
          %3811 = vmatpush1.msra.mxu0 0.0
          %3812 = vmatprep.subr.mxu0 0.0
          %3813 = vmatpush1.msra.mxu0 0.0
          %3814 = vmatprep.subr.mxu0 0.0
          %3815 = vmatpush1.msra.mxu0 0.0
          %3816 = vmatprep.subr.mxu0 0.0
          %3817 = vmatpush1.msra.mxu0 0.0
          %3818 = vmatprep.subr.mxu0 0.0
          %3819 = vmatpush1.msra.mxu0 0.0
          %3820 = vmatprep.subr.mxu0 0.0
          %3821 = vmatpush1.msra.mxu0 0.0
          %3822 = vmatprep.subr.mxu0 0.0
          %3823 = vmatpush1.msra.mxu0 0.0
          %3824 = vmatprep.subr.mxu0 0.0
          %3825 = vmatpush1.msra.mxu0 0.0
          %3826 = vmatprep.subr.mxu0 0.0
          %3827 = vmatpush1.msra.mxu0 0.0
          %3828 = vmatprep.subr.mxu0 0.0
          %3829 = vmatpush1.msra.mxu0 0.0
          %3830 = vmatprep.subr.mxu0 0.0
          %3831 = vmatpush1.msra.mxu0 0.0
          %3832 = vmatprep.subr.mxu0 0.0
          %3833 = vmatpush1.msra.mxu0 0.0
          %3834 = vmatprep.subr.mxu0 0.0
          %3835 = vmatpush1.msra.mxu0 0.0
          %3836 = vmatprep.subr.mxu0 0.0
          %3837 = vmatpush1.msra.mxu0 0.0
          %3838 = vmatprep.subr.mxu0 0.0
          %3839 = vmatpush1.msra.mxu0 0.0
          %3840 = vmatprep.subr.mxu0 0.0
          %3841 = vmatpush1.msra.mxu0 0.0
          %3842 = vmatprep.subr.mxu0 0.0
          %3843 = vmatpush1.msra.mxu0 0.0
          %3844 = vmatprep.subr.mxu0 0.0
          %3845 = vmatpush1.msra.mxu0 0.0
          %3846 = vmatprep.subr.mxu0 0.0
          %3847 = vmatpush1.msra.mxu0 0.0
          %3848 = vmatprep.subr.mxu0 0.0
          %3849 = vmatpush1.msra.mxu0 0.0
          %3850 = vmatprep.subr.mxu0 0.0
          %3851 = vmatpush1.msra.mxu0 0.0
          %3852 = vmatprep.subr.mxu0 0.0
          %3853 = vmatpush1.msra.mxu0 0.0
          %3854 = vmatprep.subr.mxu0 0.0
          %3855 = vmatpush1.msra.mxu0 0.0
          %3856 = vmatprep.subr.mxu0 0.0
          %3857 = vmatpush1.msra.mxu0 0.0
          %3858 = vmatprep.subr.mxu0 0.0
          %3859 = vmatpush1.msra.mxu0 0.0
          %3860 = vmatprep.mubr.f32.mxu0 0.0
          %v3861 = vand.u32 %v3366, 4294901760
          %3862 = vmatmul.mubr.f32.gmra.mrb[0].mxu0 %v3861
          %v3863 = vpop.f32.mrb[0].mxu0
          %v3864 = vadd.f32 %v3785, %v3863
          %v3865 = vpop.f32.mrb[0].mxu0
          %3866 = vmatprep.mubr.f32.mxu0 0.0
          %v3867 = vand.u32 %v3369, 4294901760
          %3868 = vmatmul.mubr.f32.gmra.mrb[0].mxu0 %v3867
          %v3869 = vpop.f32.mrb[0].mxu0
          %v3870 = vadd.f32 %v3791, %v3869
          %v3871 = vpop.f32.mrb[0].mxu0
          %3872 = vdwg.mxu0
          %v3873 = vsel %vm3364, %v3864, 0.0
          %3874 = vadd.xlane.f32.xlu0 %v3873
          %v3875 = vpop.xlane.xlu0 %3874
          %v3876 = vsel %vm3364, %v3870, 0.0
          %3877 = vadd.xlane.f32.xlu0 %v3876
          %v3878 = vpop.xlane.xlu0 %3877
          %v3879 = vmul.f32 %v3875, 0.015625
          %v3880 = vmul.f32 %v3878, 0.015625
          %v3881 = vsub.f32 %v3352, %v3879
          %v3882 = vsub.f32 %v3359, %v3880
          %v3883 = vmul.f32 %v3881, %v3881
          %v3884 = vmul.f32 %v3882, %v3882
          %3885 = vmatprep.subr.mxu0 0.0
          %v3886 = vand.u32 %v3883, 4294901760
          %3887 = vmatpush1.msra.mxu0 %v3886
          %3888 = vmatprep.subr.mxu0 0.0
          %v3889 = vand.u32 %v3884, 4294901760
          %3890 = vmatpush1.msra.mxu0 %v3889
          %3891 = vmatprep.subr.mxu0 0.0
          %3892 = vmatpush1.msra.mxu0 0.0
          %3893 = vmatprep.subr.mxu0 0.0
          %3894 = vmatpush1.msra.mxu0 0.0
          %3895 = vmatprep.subr.mxu0 0.0
          %3896 = vmatpush1.msra.mxu0 0.0
          %3897 = vmatprep.subr.mxu0 0.0
          %3898 = vmatpush1.msra.mxu0 0.0
          %3899 = vmatprep.subr.mxu0 0.0
          %3900 = vmatpush1.msra.mxu0 0.0
          %3901 = vmatprep.subr.mxu0 0.0
          %3902 = vmatpush1.msra.mxu0 0.0
          %3903 = vmatprep.subr.mxu0 0.0
          %3904 = vmatpush1.msra.mxu0 0.0
          %3905 = vmatprep.subr.mxu0 0.0
          %3906 = vmatpush1.msra.mxu0 0.0
          %3907 = vmatprep.subr.mxu0 0.0
          %3908 = vmatpush1.msra.mxu0 0.0
          %3909 = vmatprep.subr.mxu0 0.0
          %3910 = vmatpush1.msra.mxu0 0.0
          %3911 = vmatprep.subr.mxu0 0.0
          %3912 = vmatpush1.msra.mxu0 0.0
          %3913 = vmatprep.subr.mxu0 0.0
          %3914 = vmatpush1.msra.mxu0 0.0
          %3915 = vmatprep.subr.mxu0 0.0
          %3916 = vmatpush1.msra.mxu0 0.0
          %3917 = vmatprep.subr.mxu0 0.0
          %3918 = vmatpush1.msra.mxu0 0.0
          %3919 = vmatprep.subr.mxu0 0.0
          %3920 = vmatpush1.msra.mxu0 0.0
          %3921 = vmatprep.subr.mxu0 0.0
          %3922 = vmatpush1.msra.mxu0 0.0
          %3923 = vmatprep.subr.mxu0 0.0
          %3924 = vmatpush1.msra.mxu0 0.0
          %3925 = vmatprep.subr.mxu0 0.0
          %3926 = vmatpush1.msra.mxu0 0.0
          %3927 = vmatprep.subr.mxu0 0.0
          %3928 = vmatpush1.msra.mxu0 0.0
          %3929 = vmatprep.subr.mxu0 0.0
          %3930 = vmatpush1.msra.mxu0 0.0
          %3931 = vmatprep.subr.mxu0 0.0
          %3932 = vmatpush1.msra.mxu0 0.0
          %3933 = vmatprep.subr.mxu0 0.0
          %3934 = vmatpush1.msra.mxu0 0.0
          %3935 = vmatprep.subr.mxu0 0.0
          %3936 = vmatpush1.msra.mxu0 0.0
          %3937 = vmatprep.subr.mxu0 0.0
          %3938 = vmatpush1.msra.mxu0 0.0
          %3939 = vmatprep.subr.mxu0 0.0
          %3940 = vmatpush1.msra.mxu0 0.0
          %3941 = vmatprep.subr.mxu0 0.0
          %3942 = vmatpush1.msra.mxu0 0.0
          %3943 = vmatprep.subr.mxu0 0.0
          %3944 = vmatpush1.msra.mxu0 0.0
          %3945 = vmatprep.subr.mxu0 0.0
          %3946 = vmatpush1.msra.mxu0 0.0
          %3947 = vmatprep.subr.mxu0 0.0
          %3948 = vmatpush1.msra.mxu0 0.0
          %3949 = vmatprep.subr.mxu0 0.0
          %3950 = vmatpush1.msra.mxu0 0.0
          %3951 = vmatprep.mubr.f32.mxu0 0.0
          %v3952 = vand.u32 %v3366, 4294901760
          %v3953 = vsub.f32 %v3366, %v3952
          %v3954 = vand.u32 %v3953, 4294901760
          %v3955 = vsub.f32 %v3953, %v3954
          %v3956 = vand.u32 %v3955, 4294901760
          %3957 = vmatmul.mubr.f32.gmra.mrb[0].mxu0 %v3956
          %v3958 = vpop.f32.mrb[0].mxu0
          %v3959 = vadd.f32 0.0, %v3958
          %v3960 = vpop.f32.mrb[0].mxu0
          %3961 = vmatprep.mubr.f32.mxu0 0.0
          %v3962 = vand.u32 %v3369, 4294901760
          %v3963 = vsub.f32 %v3369, %v3962
          %v3964 = vand.u32 %v3963, 4294901760
          %v3965 = vsub.f32 %v3963, %v3964
          %v3966 = vand.u32 %v3965, 4294901760
          %3967 = vmatmul.mubr.f32.gmra.mrb[0].mxu0 %v3966
          %v3968 = vpop.f32.mrb[0].mxu0
          %v3969 = vadd.f32 0.0, %v3968
          %v3970 = vpop.f32.mrb[0].mxu0
          %3971 = vdwg.mxu0
          %3972 = vmatprep.subr.mxu0 0.0
          %v3973 = vand.u32 %v3883, 4294901760
          %v3974 = vsub.f32 %v3883, %v3973
          %v3975 = vand.u32 %v3974, 4294901760
          %v3976 = vsub.f32 %v3974, %v3975
          %v3977 = vand.u32 %v3976, 4294901760
          %3978 = vmatpush1.msra.mxu0 %v3977
          %3979 = vmatprep.subr.mxu0 0.0
          %v3980 = vand.u32 %v3884, 4294901760
          %v3981 = vsub.f32 %v3884, %v3980
          %v3982 = vand.u32 %v3981, 4294901760
          %v3983 = vsub.f32 %v3981, %v3982
          %v3984 = vand.u32 %v3983, 4294901760
          %3985 = vmatpush1.msra.mxu0 %v3984
          %3986 = vmatprep.subr.mxu0 0.0
          %3987 = vmatpush1.msra.mxu0 0.0
          %3988 = vmatprep.subr.mxu0 0.0
          %3989 = vmatpush1.msra.mxu0 0.0
          %3990 = vmatprep.subr.mxu0 0.0
          %3991 = vmatpush1.msra.mxu0 0.0
          %3992 = vmatprep.subr.mxu0 0.0
          %3993 = vmatpush1.msra.mxu0 0.0
          %3994 = vmatprep.subr.mxu0 0.0
          %3995 = vmatpush1.msra.mxu0 0.0
          %3996 = vmatprep.subr.mxu0 0.0
          %3997 = vmatpush1.msra.mxu0 0.0
          %3998 = vmatprep.subr.mxu0 0.0
          %3999 = vmatpush1.msra.mxu0 0.0
          %4000 = vmatprep.subr.mxu0 0.0
          %4001 = vmatpush1.msra.mxu0 0.0
          %4002 = vmatprep.subr.mxu0 0.0
          %4003 = vmatpush1.msra.mxu0 0.0
          %4004 = vmatprep.subr.mxu0 0.0
          %4005 = vmatpush1.msra.mxu0 0.0
          %4006 = vmatprep.subr.mxu0 0.0
          %4007 = vmatpush1.msra.mxu0 0.0
          %4008 = vmatprep.subr.mxu0 0.0
          %4009 = vmatpush1.msra.mxu0 0.0
          %4010 = vmatprep.subr.mxu0 0.0
          %4011 = vmatpush1.msra.mxu0 0.0
          %4012 = vmatprep.subr.mxu0 0.0
          %4013 = vmatpush1.msra.mxu0 0.0
          %4014 = vmatprep.subr.mxu0 0.0
          %4015 = vmatpush1.msra.mxu0 0.0
          %4016 = vmatprep.subr.mxu0 0.0
          %4017 = vmatpush1.msra.mxu0 0.0
          %4018 = vmatprep.subr.mxu0 0.0
          %4019 = vmatpush1.msra.mxu0 0.0
          %4020 = vmatprep.subr.mxu0 0.0
          %4021 = vmatpush1.msra.mxu0 0.0
          %4022 = vmatprep.subr.mxu0 0.0
          %4023 = vmatpush1.msra.mxu0 0.0
          %4024 = vmatprep.subr.mxu0 0.0
          %4025 = vmatpush1.msra.mxu0 0.0
          %4026 = vmatprep.subr.mxu0 0.0
          %4027 = vmatpush1.msra.mxu0 0.0
          %4028 = vmatprep.subr.mxu0 0.0
          %4029 = vmatpush1.msra.mxu0 0.0
          %4030 = vmatprep.subr.mxu0 0.0
          %4031 = vmatpush1.msra.mxu0 0.0
          %4032 = vmatprep.subr.mxu0 0.0
          %4033 = vmatpush1.msra.mxu0 0.0
          %4034 = vmatprep.subr.mxu0 0.0
          %4035 = vmatpush1.msra.mxu0 0.0
          %4036 = vmatprep.subr.mxu0 0.0
          %4037 = vmatpush1.msra.mxu0 0.0
          %4038 = vmatprep.subr.mxu0 0.0
          %4039 = vmatpush1.msra.mxu0 0.0
          %4040 = vmatprep.subr.mxu0 0.0
          %4041 = vmatpush1.msra.mxu0 0.0
          %4042 = vmatprep.subr.mxu0 0.0
          %4043 = vmatpush1.msra.mxu0 0.0
          %4044 = vmatprep.subr.mxu0 0.0
          %4045 = vmatpush1.msra.mxu0 0.0
          %4046 = vmatprep.mubr.f32.mxu0 0.0
          %v4047 = vand.u32 %v3366, 4294901760
          %4048 = vmatmul.mubr.f32.gmra.mrb[0].mxu0 %v4047
          %v4049 = vpop.f32.mrb[0].mxu0
          %v4050 = vadd.f32 %v3959, %v4049
          %v4051 = vpop.f32.mrb[0].mxu0
          %4052 = vmatprep.mubr.f32.mxu0 0.0
          %v4053 = vand.u32 %v3369, 4294901760
          %4054 = vmatmul.mubr.f32.gmra.mrb[0].mxu0 %v4053
          %v4055 = vpop.f32.mrb[0].mxu0
          %v4056 = vadd.f32 %v3969, %v4055
          %v4057 = vpop.f32.mrb[0].mxu0
          %4058 = vdwg.mxu0
          %4059 = vmatprep.subr.mxu0 0.0
          %v4060 = vand.u32 %v3883, 4294901760
          %v4061 = vsub.f32 %v3883, %v4060
          %4062 = vmatpush1.msra.mxu0 %v4061
          %4063 = vmatprep.subr.mxu0 0.0
          %v4064 = vand.u32 %v3884, 4294901760
          %v4065 = vsub.f32 %v3884, %v4064
          %4066 = vmatpush1.msra.mxu0 %v4065
          %4067 = vmatprep.subr.mxu0 0.0
          %4068 = vmatpush1.msra.mxu0 0.0
          %4069 = vmatprep.subr.mxu0 0.0
          %4070 = vmatpush1.msra.mxu0 0.0
          %4071 = vmatprep.subr.mxu0 0.0
          %4072 = vmatpush1.msra.mxu0 0.0
          %4073 = vmatprep.subr.mxu0 0.0
          %4074 = vmatpush1.msra.mxu0 0.0
          %4075 = vmatprep.subr.mxu0 0.0
          %4076 = vmatpush1.msra.mxu0 0.0
          %4077 = vmatprep.subr.mxu0 0.0
          %4078 = vmatpush1.msra.mxu0 0.0
          %4079 = vmatprep.subr.mxu0 0.0
          %4080 = vmatpush1.msra.mxu0 0.0
          %4081 = vmatprep.subr.mxu0 0.0
          %4082 = vmatpush1.msra.mxu0 0.0
          %4083 = vmatprep.subr.mxu0 0.0
          %4084 = vmatpush1.msra.mxu0 0.0
          %4085 = vmatprep.subr.mxu0 0.0
          %4086 = vmatpush1.msra.mxu0 0.0
          %4087 = vmatprep.subr.mxu0 0.0
          %4088 = vmatpush1.msra.mxu0 0.0
          %4089 = vmatprep.subr.mxu0 0.0
          %4090 = vmatpush1.msra.mxu0 0.0
          %4091 = vmatprep.subr.mxu0 0.0
          %4092 = vmatpush1.msra.mxu0 0.0
          %4093 = vmatprep.subr.mxu0 0.0
          %4094 = vmatpush1.msra.mxu0 0.0
          %4095 = vmatprep.subr.mxu0 0.0
          %4096 = vmatpush1.msra.mxu0 0.0
          %4097 = vmatprep.subr.mxu0 0.0
          %4098 = vmatpush1.msra.mxu0 0.0
          %4099 = vmatprep.subr.mxu0 0.0
          %4100 = vmatpush1.msra.mxu0 0.0
          %4101 = vmatprep.subr.mxu0 0.0
          %4102 = vmatpush1.msra.mxu0 0.0
          %4103 = vmatprep.subr.mxu0 0.0
          %4104 = vmatpush1.msra.mxu0 0.0
          %4105 = vmatprep.subr.mxu0 0.0
          %4106 = vmatpush1.msra.mxu0 0.0
          %4107 = vmatprep.subr.mxu0 0.0
          %4108 = vmatpush1.msra.mxu0 0.0
          %4109 = vmatprep.subr.mxu0 0.0
          %4110 = vmatpush1.msra.mxu0 0.0
          %4111 = vmatprep.subr.mxu0 0.0
          %4112 = vmatpush1.msra.mxu0 0.0
          %4113 = vmatprep.subr.mxu0 0.0
          %4114 = vmatpush1.msra.mxu0 0.0
          %4115 = vmatprep.subr.mxu0 0.0
          %4116 = vmatpush1.msra.mxu0 0.0
          %4117 = vmatprep.subr.mxu0 0.0
          %4118 = vmatpush1.msra.mxu0 0.0
          %4119 = vmatprep.subr.mxu0 0.0
          %4120 = vmatpush1.msra.mxu0 0.0
          %4121 = vmatprep.subr.mxu0 0.0
          %4122 = vmatpush1.msra.mxu0 0.0
          %4123 = vmatprep.subr.mxu0 0.0
          %4124 = vmatpush1.msra.mxu0 0.0
          %4125 = vmatprep.subr.mxu0 0.0
          %4126 = vmatpush1.msra.mxu0 0.0
          %4127 = vmatprep.mubr.f32.mxu0 0.0
          %v4128 = vand.u32 %v3366, 4294901760
          %v4129 = vsub.f32 %v3366, %v4128
          %4130 = vmatmul.mubr.f32.gmra.mrb[0].mxu0 %v4129
          %v4131 = vpop.f32.mrb[0].mxu0
          %v4132 = vadd.f32 %v4050, %v4131
          %v4133 = vpop.f32.mrb[0].mxu0
          %4134 = vmatprep.mubr.f32.mxu0 0.0
          %v4135 = vand.u32 %v3369, 4294901760
          %v4136 = vsub.f32 %v3369, %v4135
          %4137 = vmatmul.mubr.f32.gmra.mrb[0].mxu0 %v4136
          %v4138 = vpop.f32.mrb[0].mxu0
          %v4139 = vadd.f32 %v4056, %v4138
          %v4140 = vpop.f32.mrb[0].mxu0
          %4141 = vdwg.mxu0
          %4142 = vmatprep.subr.mxu0 0.0
          %v4143 = vand.u32 %v3883, 4294901760
          %4144 = vmatpush1.msra.mxu0 %v4143
          %4145 = vmatprep.subr.mxu0 0.0
          %v4146 = vand.u32 %v3884, 4294901760
          %4147 = vmatpush1.msra.mxu0 %v4146
          %4148 = vmatprep.subr.mxu0 0.0
          %4149 = vmatpush1.msra.mxu0 0.0
          %4150 = vmatprep.subr.mxu0 0.0
          %4151 = vmatpush1.msra.mxu0 0.0
          %4152 = vmatprep.subr.mxu0 0.0
          %4153 = vmatpush1.msra.mxu0 0.0
          %4154 = vmatprep.subr.mxu0 0.0
          %4155 = vmatpush1.msra.mxu0 0.0
          %4156 = vmatprep.subr.mxu0 0.0
          %4157 = vmatpush1.msra.mxu0 0.0
          %4158 = vmatprep.subr.mxu0 0.0
          %4159 = vmatpush1.msra.mxu0 0.0
          %4160 = vmatprep.subr.mxu0 0.0
          %4161 = vmatpush1.msra.mxu0 0.0
          %4162 = vmatprep.subr.mxu0 0.0
          %4163 = vmatpush1.msra.mxu0 0.0
          %4164 = vmatprep.subr.mxu0 0.0
          %4165 = vmatpush1.msra.mxu0 0.0
          %4166 = vmatprep.subr.mxu0 0.0
          %4167 = vmatpush1.msra.mxu0 0.0
          %4168 = vmatprep.subr.mxu0 0.0
          %4169 = vmatpush1.msra.mxu0 0.0
          %4170 = vmatprep.subr.mxu0 0.0
          %4171 = vmatpush1.msra.mxu0 0.0
          %4172 = vmatprep.subr.mxu0 0.0
          %4173 = vmatpush1.msra.mxu0 0.0
          %4174 = vmatprep.subr.mxu0 0.0
          %4175 = vmatpush1.msra.mxu0 0.0
          %4176 = vmatprep.subr.mxu0 0.0
          %4177 = vmatpush1.msra.mxu0 0.0
          %4178 = vmatprep.subr.mxu0 0.0
          %4179 = vmatpush1.msra.mxu0 0.0
          %4180 = vmatprep.subr.mxu0 0.0
          %4181 = vmatpush1.msra.mxu0 0.0
          %4182 = vmatprep.subr.mxu0 0.0
          %4183 = vmatpush1.msra.mxu0 0.0
          %4184 = vmatprep.subr.mxu0 0.0
          %4185 = vmatpush1.msra.mxu0 0.0
          %4186 = vmatprep.subr.mxu0 0.0
          %4187 = vmatpush1.msra.mxu0 0.0
          %4188 = vmatprep.subr.mxu0 0.0
          %4189 = vmatpush1.msra.mxu0 0.0
          %4190 = vmatprep.subr.mxu0 0.0
          %4191 = vmatpush1.msra.mxu0 0.0
          %4192 = vmatprep.subr.mxu0 0.0
          %4193 = vmatpush1.msra.mxu0 0.0
          %4194 = vmatprep.subr.mxu0 0.0
          %4195 = vmatpush1.msra.mxu0 0.0
          %4196 = vmatprep.subr.mxu0 0.0
          %4197 = vmatpush1.msra.mxu0 0.0
          %4198 = vmatprep.subr.mxu0 0.0
          %4199 = vmatpush1.msra.mxu0 0.0
          %4200 = vmatprep.subr.mxu0 0.0
          %4201 = vmatpush1.msra.mxu0 0.0
          %4202 = vmatprep.subr.mxu0 0.0
          %4203 = vmatpush1.msra.mxu0 0.0
          %4204 = vmatprep.subr.mxu0 0.0
          %4205 = vmatpush1.msra.mxu0 0.0
          %4206 = vmatprep.subr.mxu0 0.0
          %4207 = vmatpush1.msra.mxu0 0.0
          %4208 = vmatprep.mubr.f32.mxu0 0.0
          %v4209 = vand.u32 %v3366, 4294901760
          %v4210 = vsub.f32 %v3366, %v4209
          %v4211 = vand.u32 %v4210, 4294901760
          %4212 = vmatmul.mubr.f32.gmra.mrb[0].mxu0 %v4211
          %v4213 = vpop.f32.mrb[0].mxu0
          %v4214 = vadd.f32 %v4132, %v4213
          %v4215 = vpop.f32.mrb[0].mxu0
          %4216 = vmatprep.mubr.f32.mxu0 0.0
          %v4217 = vand.u32 %v3369, 4294901760
          %v4218 = vsub.f32 %v3369, %v4217
          %v4219 = vand.u32 %v4218, 4294901760
          %4220 = vmatmul.mubr.f32.gmra.mrb[0].mxu0 %v4219
          %v4221 = vpop.f32.mrb[0].mxu0
          %v4222 = vadd.f32 %v4139, %v4221
          %v4223 = vpop.f32.mrb[0].mxu0
          %4224 = vdwg.mxu0
          %4225 = vmatprep.subr.mxu0 0.0
          %v4226 = vand.u32 %v3883, 4294901760
          %v4227 = vsub.f32 %v3883, %v4226
          %v4228 = vand.u32 %v4227, 4294901760
          %4229 = vmatpush1.msra.mxu0 %v4228
          %4230 = vmatprep.subr.mxu0 0.0
          %v4231 = vand.u32 %v3884, 4294901760
          %v4232 = vsub.f32 %v3884, %v4231
          %v4233 = vand.u32 %v4232, 4294901760
          %4234 = vmatpush1.msra.mxu0 %v4233
          %4235 = vmatprep.subr.mxu0 0.0
          %4236 = vmatpush1.msra.mxu0 0.0
          %4237 = vmatprep.subr.mxu0 0.0
          %4238 = vmatpush1.msra.mxu0 0.0
          %4239 = vmatprep.subr.mxu0 0.0
          %4240 = vmatpush1.msra.mxu0 0.0
          %4241 = vmatprep.subr.mxu0 0.0
          %4242 = vmatpush1.msra.mxu0 0.0
          %4243 = vmatprep.subr.mxu0 0.0
          %4244 = vmatpush1.msra.mxu0 0.0
          %4245 = vmatprep.subr.mxu0 0.0
          %4246 = vmatpush1.msra.mxu0 0.0
          %4247 = vmatprep.subr.mxu0 0.0
          %4248 = vmatpush1.msra.mxu0 0.0
          %4249 = vmatprep.subr.mxu0 0.0
          %4250 = vmatpush1.msra.mxu0 0.0
          %4251 = vmatprep.subr.mxu0 0.0
          %4252 = vmatpush1.msra.mxu0 0.0
          %4253 = vmatprep.subr.mxu0 0.0
          %4254 = vmatpush1.msra.mxu0 0.0
          %4255 = vmatprep.subr.mxu0 0.0
          %4256 = vmatpush1.msra.mxu0 0.0
          %4257 = vmatprep.subr.mxu0 0.0
          %4258 = vmatpush1.msra.mxu0 0.0
          %4259 = vmatprep.subr.mxu0 0.0
          %4260 = vmatpush1.msra.mxu0 0.0
          %4261 = vmatprep.subr.mxu0 0.0
          %4262 = vmatpush1.msra.mxu0 0.0
          %4263 = vmatprep.subr.mxu0 0.0
          %4264 = vmatpush1.msra.mxu0 0.0
          %4265 = vmatprep.subr.mxu0 0.0
          %4266 = vmatpush1.msra.mxu0 0.0
          %4267 = vmatprep.subr.mxu0 0.0
          %4268 = vmatpush1.msra.mxu0 0.0
          %4269 = vmatprep.subr.mxu0 0.0
          %4270 = vmatpush1.msra.mxu0 0.0
          %4271 = vmatprep.subr.mxu0 0.0
          %4272 = vmatpush1.msra.mxu0 0.0
          %4273 = vmatprep.subr.mxu0 0.0
          %4274 = vmatpush1.msra.mxu0 0.0
          %4275 = vmatprep.subr.mxu0 0.0
          %4276 = vmatpush1.msra.mxu0 0.0
          %4277 = vmatprep.subr.mxu0 0.0
          %4278 = vmatpush1.msra.mxu0 0.0
          %4279 = vmatprep.subr.mxu0 0.0
          %4280 = vmatpush1.msra.mxu0 0.0
          %4281 = vmatprep.subr.mxu0 0.0
          %4282 = vmatpush1.msra.mxu0 0.0
          %4283 = vmatprep.subr.mxu0 0.0
          %4284 = vmatpush1.msra.mxu0 0.0
          %4285 = vmatprep.subr.mxu0 0.0
          %4286 = vmatpush1.msra.mxu0 0.0
          %4287 = vmatprep.subr.mxu0 0.0
          %4288 = vmatpush1.msra.mxu0 0.0
          %4289 = vmatprep.subr.mxu0 0.0
          %4290 = vmatpush1.msra.mxu0 0.0
          %4291 = vmatprep.subr.mxu0 0.0
          %4292 = vmatpush1.msra.mxu0 0.0
          %4293 = vmatprep.subr.mxu0 0.0
          %4294 = vmatpush1.msra.mxu0 0.0
          %4295 = vmatprep.mubr.f32.mxu0 0.0
          %v4296 = vand.u32 %v3366, 4294901760
          %4297 = vmatmul.mubr.f32.gmra.mrb[0].mxu0 %v4296
          %v4298 = vpop.f32.mrb[0].mxu0
          %v4299 = vadd.f32 %v4214, %v4298
          %v4300 = vpop.f32.mrb[0].mxu0
          %4301 = vmatprep.mubr.f32.mxu0 0.0
          %v4302 = vand.u32 %v3369, 4294901760
          %4303 = vmatmul.mubr.f32.gmra.mrb[0].mxu0 %v4302
          %v4304 = vpop.f32.mrb[0].mxu0
          %v4305 = vadd.f32 %v4222, %v4304
          %v4306 = vpop.f32.mrb[0].mxu0
          %4307 = vdwg.mxu0
          %4308 = vmatprep.subr.mxu0 0.0
          %v4309 = vand.u32 %v3883, 4294901760
          %4310 = vmatpush1.msra.mxu0 %v4309
          %4311 = vmatprep.subr.mxu0 0.0
          %v4312 = vand.u32 %v3884, 4294901760
          %4313 = vmatpush1.msra.mxu0 %v4312
          %4314 = vmatprep.subr.mxu0 0.0
          %4315 = vmatpush1.msra.mxu0 0.0
          %4316 = vmatprep.subr.mxu0 0.0
          %4317 = vmatpush1.msra.mxu0 0.0
          %4318 = vmatprep.subr.mxu0 0.0
          %4319 = vmatpush1.msra.mxu0 0.0
          %4320 = vmatprep.subr.mxu0 0.0
          %4321 = vmatpush1.msra.mxu0 0.0
          %4322 = vmatprep.subr.mxu0 0.0
          %4323 = vmatpush1.msra.mxu0 0.0
          %4324 = vmatprep.subr.mxu0 0.0
          %4325 = vmatpush1.msra.mxu0 0.0
          %4326 = vmatprep.subr.mxu0 0.0
          %4327 = vmatpush1.msra.mxu0 0.0
          %4328 = vmatprep.subr.mxu0 0.0
          %4329 = vmatpush1.msra.mxu0 0.0
          %4330 = vmatprep.subr.mxu0 0.0
          %4331 = vmatpush1.msra.mxu0 0.0
          %4332 = vmatprep.subr.mxu0 0.0
          %4333 = vmatpush1.msra.mxu0 0.0
          %4334 = vmatprep.subr.mxu0 0.0
          %4335 = vmatpush1.msra.mxu0 0.0
          %4336 = vmatprep.subr.mxu0 0.0
          %4337 = vmatpush1.msra.mxu0 0.0
          %4338 = vmatprep.subr.mxu0 0.0
          %4339 = vmatpush1.msra.mxu0 0.0
          %4340 = vmatprep.subr.mxu0 0.0
          %4341 = vmatpush1.msra.mxu0 0.0
          %4342 = vmatprep.subr.mxu0 0.0
          %4343 = vmatpush1.msra.mxu0 0.0
          %4344 = vmatprep.subr.mxu0 0.0
          %4345 = vmatpush1.msra.mxu0 0.0
          %4346 = vmatprep.subr.mxu0 0.0
          %4347 = vmatpush1.msra.mxu0 0.0
          %4348 = vmatprep.subr.mxu0 0.0
          %4349 = vmatpush1.msra.mxu0 0.0
          %4350 = vmatprep.subr.mxu0 0.0
          %4351 = vmatpush1.msra.mxu0 0.0
          %4352 = vmatprep.subr.mxu0 0.0
          %4353 = vmatpush1.msra.mxu0 0.0
          %4354 = vmatprep.subr.mxu0 0.0
          %4355 = vmatpush1.msra.mxu0 0.0
          %4356 = vmatprep.subr.mxu0 0.0
          %4357 = vmatpush1.msra.mxu0 0.0
          %4358 = vmatprep.subr.mxu0 0.0
          %4359 = vmatpush1.msra.mxu0 0.0
          %4360 = vmatprep.subr.mxu0 0.0
          %4361 = vmatpush1.msra.mxu0 0.0
          %4362 = vmatprep.subr.mxu0 0.0
          %4363 = vmatpush1.msra.mxu0 0.0
          %4364 = vmatprep.subr.mxu0 0.0
          %4365 = vmatpush1.msra.mxu0 0.0
          %4366 = vmatprep.subr.mxu0 0.0
          %4367 = vmatpush1.msra.mxu0 0.0
          %4368 = vmatprep.subr.mxu0 0.0
          %4369 = vmatpush1.msra.mxu0 0.0
          %4370 = vmatprep.subr.mxu0 0.0
          %4371 = vmatpush1.msra.mxu0 0.0
          %4372 = vmatprep.subr.mxu0 0.0
          %4373 = vmatpush1.msra.mxu0 0.0
          %4374 = vmatprep.mubr.f32.mxu0 0.0
          %v4375 = vand.u32 %v3366, 4294901760
          %4376 = vmatmul.mubr.f32.gmra.mrb[0].mxu0 %v4375
          %v4377 = vpop.f32.mrb[0].mxu0
          %v4378 = vadd.f32 %v4299, %v4377
          %v4379 = vpop.f32.mrb[0].mxu0
          %4380 = vmatprep.mubr.f32.mxu0 0.0
          %v4381 = vand.u32 %v3369, 4294901760
          %4382 = vmatmul.mubr.f32.gmra.mrb[0].mxu0 %v4381
          %v4383 = vpop.f32.mrb[0].mxu0
          %v4384 = vadd.f32 %v4305, %v4383
          %v4385 = vpop.f32.mrb[0].mxu0
          %4386 = vdwg.mxu0
          %v4387 = vsel %vm3364, %v4378, 0.0
          %4388 = vadd.xlane.f32.xlu0 %v4387
          %v4389 = vpop.xlane.xlu0 %4388
          %v4390 = vsel %vm3364, %v4384, 0.0
          %4391 = vadd.xlane.f32.xlu0 %v4390
          %v4392 = vpop.xlane.xlu0 %4391
          %v4393 = vmul.f32 %v4389, 0.015625
          %v4394 = vmul.f32 %v4392, 0.015625
          %v4395 = vadd.f32 %v4393, 1e-05
          %v4396 = vadd.f32 %v4394, 1e-05
          %v4397 = vrsqrt.pop %v4395
          %v4398 = vrsqrt.pop %v4396
          %v4399 = vmul.f32 %v3362, %v4397
          %v4400 = vmul.f32 %v3363, %v4398
          %v4401 = vmul.f32 %v3879, %v4399
          %v4402 = vmul.f32 %v3880, %v4400
          %4405 = vrot.lane.b32.xlu0 %v4401, 1
          %v4406 = vpop.permute.xlu0 %4405
          %4407 = vrot.lane.b32.xlu0 %v4402, 1
          %v4408 = vpop.permute.xlu0 %4407
          %v4411 = vsub.f32 %v3362, %v4406
          %v4412 = vsub.f32 %v3363, %v4408
          %4414 = vset.pattern.permute.xlu0 16
          %4415 = vperm.xlu0 %4414, %v4399
          %v4416 = vpop.permute.xlu0 %4415
          %4419 = vset.pattern.permute.xlu0 16
          %4420 = vperm.xlu0 %4419, %v4400
          %v4421 = vpop.permute.xlu0 %4420
          %v4423 = vmul.f32 %v3352, %v4416
          %v4424 = vmul.f32 %v3359, %v4421
          %4426 = vset.pattern.permute.xlu0 17
          %4427 = vperm.xlu0 %4426, %v4411
          %v4428 = vpop.permute.xlu0 %4427
          %4431 = vset.pattern.permute.xlu0 17
          %4432 = vperm.xlu0 %4431, %v4412
          %v4433 = vpop.permute.xlu0 %4432
          %v4435 = vadd.f32 %v4423, %v4428
          %v4436 = vadd.f32 %v4424, %v4433
          %v4437 = vmax.f32 %v4435, 0.0
          %v4438 = vmax.f32 %v4436, 0.0
          %v4439 = vld [vmem:[%s4] sm:$0xff]
          %v4440 = vld [vmem:[%s4 + $0x8] sm:$0xff]
          %v4441 = vld [vmem:[%s4 + $0x10] sm:$0xff]
          %v4442 = vld [vmem:[%s4 + $0x18] sm:$0xff]
          %v4443 = vld [vmem:[%s4 + $0x20] sm:$0xff]
          %v4444 = vld [vmem:[%s4 + $0x28] sm:$0xff]
          %v4445 = vld [vmem:[%s4 + $0x30] sm:$0xff]
          %v4446 = vld [vmem:[%s4 + $0x38] sm:$0xff]
          %v4448 = vsel %vm3364, %v4439, 0
          %v4451 = vsel %vm3364, %v4440, 0
          %v4454 = vsel %vm3364, %v4441, 0
          %v4457 = vsel %vm3364, %v4442, 0
          %v4460 = vsel %vm3364, %v4443, 0
          %v4463 = vsel %vm3364, %v4444, 0
          %v4466 = vsel %vm3364, %v4445, 0
          %v4469 = vsel %vm3364, %v4446, 0
          %4471 = vmatprep.subr.mxu0 0.0
          %v4472 = vand.u32 %v4437, 4294901760
          %4473 = vmatpush1.msra.mxu0 %v4472
          %4474 = vmatprep.subr.mxu0 0.0
          %v4475 = vand.u32 %v4438, 4294901760
          %4476 = vmatpush1.msra.mxu0 %v4475
          %4477 = vmatprep.subr.mxu0 0.0
          %4478 = vmatpush1.msra.mxu0 0.0
          %4479 = vmatprep.subr.mxu0 0.0
          %4480 = vmatpush1.msra.mxu0 0.0
          %4481 = vmatprep.subr.mxu0 0.0
          %4482 = vmatpush1.msra.mxu0 0.0
          %4483 = vmatprep.subr.mxu0 0.0
          %4484 = vmatpush1.msra.mxu0 0.0
          %4485 = vmatprep.subr.mxu0 0.0
          %4486 = vmatpush1.msra.mxu0 0.0
          %4487 = vmatprep.subr.mxu0 0.0
          %4488 = vmatpush1.msra.mxu0 0.0
          %4489 = vmatprep.subr.mxu0 0.0
          %4490 = vmatpush1.msra.mxu0 0.0
          %4491 = vmatprep.subr.mxu0 0.0
          %4492 = vmatpush1.msra.mxu0 0.0
          %4493 = vmatprep.subr.mxu0 0.0
          %4494 = vmatpush1.msra.mxu0 0.0
          %4495 = vmatprep.subr.mxu0 0.0
          %4496 = vmatpush1.msra.mxu0 0.0
          %4497 = vmatprep.subr.mxu0 0.0
          %4498 = vmatpush1.msra.mxu0 0.0
          %4499 = vmatprep.subr.mxu0 0.0
          %4500 = vmatpush1.msra.mxu0 0.0
          %4501 = vmatprep.subr.mxu0 0.0
          %4502 = vmatpush1.msra.mxu0 0.0
          %4503 = vmatprep.subr.mxu0 0.0
          %4504 = vmatpush1.msra.mxu0 0.0
          %4505 = vmatprep.subr.mxu0 0.0
          %4506 = vmatpush1.msra.mxu0 0.0
          %4507 = vmatprep.subr.mxu0 0.0
          %4508 = vmatpush1.msra.mxu0 0.0
          %4509 = vmatprep.subr.mxu0 0.0
          %4510 = vmatpush1.msra.mxu0 0.0
          %4511 = vmatprep.subr.mxu0 0.0
          %4512 = vmatpush1.msra.mxu0 0.0
          %4513 = vmatprep.subr.mxu0 0.0
          %4514 = vmatpush1.msra.mxu0 0.0
          %4515 = vmatprep.subr.mxu0 0.0
          %4516 = vmatpush1.msra.mxu0 0.0
          %4517 = vmatprep.subr.mxu0 0.0
          %4518 = vmatpush1.msra.mxu0 0.0
          %4519 = vmatprep.subr.mxu0 0.0
          %4520 = vmatpush1.msra.mxu0 0.0
          %4521 = vmatprep.subr.mxu0 0.0
          %4522 = vmatpush1.msra.mxu0 0.0
          %4523 = vmatprep.subr.mxu0 0.0
          %4524 = vmatpush1.msra.mxu0 0.0
          %4525 = vmatprep.subr.mxu0 0.0
          %4526 = vmatpush1.msra.mxu0 0.0
          %4527 = vmatprep.subr.mxu0 0.0
          %4528 = vmatpush1.msra.mxu0 0.0
          %4529 = vmatprep.subr.mxu0 0.0
          %4530 = vmatpush1.msra.mxu0 0.0
          %4531 = vmatprep.subr.mxu0 0.0
          %4532 = vmatpush1.msra.mxu0 0.0
          %4533 = vmatprep.subr.mxu0 0.0
          %4534 = vmatpush1.msra.mxu0 0.0
          %4535 = vmatprep.subr.mxu0 0.0
          %4536 = vmatpush1.msra.mxu0 0.0
          %4537 = vmatprep.mubr.f32.mxu0 0.0
          %v4538 = vand.u32 %v4448, 4294901760
          %v4539 = vsub.f32 %v4448, %v4538
          %v4540 = vand.u32 %v4539, 4294901760
          %v4541 = vsub.f32 %v4539, %v4540
          %v4542 = vand.u32 %v4541, 4294901760
          %4543 = vmatmul.mubr.f32.gmra.mrb[0].mxu0 %v4542
          %v4544 = vpop.f32.mrb[0].mxu0
          %v4545 = vadd.f32 0.0, %v4544
          %v4546 = vpop.f32.mrb[0].mxu0
          %4547 = vmatprep.mubr.f32.mxu0 0.0
          %v4548 = vand.u32 %v4451, 4294901760
          %v4549 = vsub.f32 %v4451, %v4548
          %v4550 = vand.u32 %v4549, 4294901760
          %v4551 = vsub.f32 %v4549, %v4550
          %v4552 = vand.u32 %v4551, 4294901760
          %4553 = vmatmul.mubr.f32.gmra.mrb[0].mxu0 %v4552
          %v4554 = vpop.f32.mrb[0].mxu0
          %v4555 = vadd.f32 0.0, %v4554
          %v4556 = vpop.f32.mrb[0].mxu0
          %4557 = vmatprep.mubr.f32.mxu0 0.0
          %v4558 = vand.u32 %v4454, 4294901760
          %v4559 = vsub.f32 %v4454, %v4558
          %v4560 = vand.u32 %v4559, 4294901760
          %v4561 = vsub.f32 %v4559, %v4560
          %v4562 = vand.u32 %v4561, 4294901760
          %4563 = vmatmul.mubr.f32.gmra.mrb[0].mxu0 %v4562
          %v4564 = vpop.f32.mrb[0].mxu0
          %v4565 = vadd.f32 0.0, %v4564
          %v4566 = vpop.f32.mrb[0].mxu0
          %4567 = vmatprep.mubr.f32.mxu0 0.0
          %v4568 = vand.u32 %v4457, 4294901760
          %v4569 = vsub.f32 %v4457, %v4568
          %v4570 = vand.u32 %v4569, 4294901760
          %v4571 = vsub.f32 %v4569, %v4570
          %v4572 = vand.u32 %v4571, 4294901760
          %4573 = vmatmul.mubr.f32.gmra.mrb[0].mxu0 %v4572
          %v4574 = vpop.f32.mrb[0].mxu0
          %v4575 = vadd.f32 0.0, %v4574
          %v4576 = vpop.f32.mrb[0].mxu0
          %4577 = vmatprep.mubr.f32.mxu0 0.0
          %v4578 = vand.u32 %v4460, 4294901760
          %v4579 = vsub.f32 %v4460, %v4578
          %v4580 = vand.u32 %v4579, 4294901760
          %v4581 = vsub.f32 %v4579, %v4580
          %v4582 = vand.u32 %v4581, 4294901760
          %4583 = vmatmul.mubr.f32.gmra.mrb[0].mxu0 %v4582
          %v4584 = vpop.f32.mrb[0].mxu0
          %v4585 = vadd.f32 0.0, %v4584
          %v4586 = vpop.f32.mrb[0].mxu0
          %4587 = vmatprep.mubr.f32.mxu0 0.0
          %v4588 = vand.u32 %v4463, 4294901760
          %v4589 = vsub.f32 %v4463, %v4588
          %v4590 = vand.u32 %v4589, 4294901760
          %v4591 = vsub.f32 %v4589, %v4590
          %v4592 = vand.u32 %v4591, 4294901760
          %4593 = vmatmul.mubr.f32.gmra.mrb[0].mxu0 %v4592
          %v4594 = vpop.f32.mrb[0].mxu0
          %v4595 = vadd.f32 0.0, %v4594
          %v4596 = vpop.f32.mrb[0].mxu0
          %4597 = vmatprep.mubr.f32.mxu0 0.0
          %v4598 = vand.u32 %v4466, 4294901760
          %v4599 = vsub.f32 %v4466, %v4598
          %v4600 = vand.u32 %v4599, 4294901760
          %v4601 = vsub.f32 %v4599, %v4600
          %v4602 = vand.u32 %v4601, 4294901760
          %4603 = vmatmul.mubr.f32.gmra.mrb[0].mxu0 %v4602
          %v4604 = vpop.f32.mrb[0].mxu0
          %v4605 = vadd.f32 0.0, %v4604
          %v4606 = vpop.f32.mrb[0].mxu0
          %4607 = vmatprep.mubr.f32.mxu0 0.0
          %v4608 = vand.u32 %v4469, 4294901760
          %v4609 = vsub.f32 %v4469, %v4608
          %v4610 = vand.u32 %v4609, 4294901760
          %v4611 = vsub.f32 %v4609, %v4610
          %v4612 = vand.u32 %v4611, 4294901760
          %4613 = vmatmul.mubr.f32.gmra.mrb[0].mxu0 %v4612
          %v4614 = vpop.f32.mrb[0].mxu0
          %v4615 = vadd.f32 0.0, %v4614
          %v4616 = vpop.f32.mrb[0].mxu0
          %4617 = vdwg.mxu0
          %4618 = vmatprep.subr.mxu0 0.0
          %v4619 = vand.u32 %v4437, 4294901760
          %v4620 = vsub.f32 %v4437, %v4619
          %v4621 = vand.u32 %v4620, 4294901760
          %v4622 = vsub.f32 %v4620, %v4621
          %v4623 = vand.u32 %v4622, 4294901760
          %4624 = vmatpush1.msra.mxu0 %v4623
          %4625 = vmatprep.subr.mxu0 0.0
          %v4626 = vand.u32 %v4438, 4294901760
          %v4627 = vsub.f32 %v4438, %v4626
          %v4628 = vand.u32 %v4627, 4294901760
          %v4629 = vsub.f32 %v4627, %v4628
          %v4630 = vand.u32 %v4629, 4294901760
          %4631 = vmatpush1.msra.mxu0 %v4630
          %4632 = vmatprep.subr.mxu0 0.0
          %4633 = vmatpush1.msra.mxu0 0.0
          %4634 = vmatprep.subr.mxu0 0.0
          %4635 = vmatpush1.msra.mxu0 0.0
          %4636 = vmatprep.subr.mxu0 0.0
          %4637 = vmatpush1.msra.mxu0 0.0
          %4638 = vmatprep.subr.mxu0 0.0
          %4639 = vmatpush1.msra.mxu0 0.0
          %4640 = vmatprep.subr.mxu0 0.0
          %4641 = vmatpush1.msra.mxu0 0.0
          %4642 = vmatprep.subr.mxu0 0.0
          %4643 = vmatpush1.msra.mxu0 0.0
          %4644 = vmatprep.subr.mxu0 0.0
          %4645 = vmatpush1.msra.mxu0 0.0
          %4646 = vmatprep.subr.mxu0 0.0
          %4647 = vmatpush1.msra.mxu0 0.0
          %4648 = vmatprep.subr.mxu0 0.0
          %4649 = vmatpush1.msra.mxu0 0.0
          %4650 = vmatprep.subr.mxu0 0.0
          %4651 = vmatpush1.msra.mxu0 0.0
          %4652 = vmatprep.subr.mxu0 0.0
          %4653 = vmatpush1.msra.mxu0 0.0
          %4654 = vmatprep.subr.mxu0 0.0
          %4655 = vmatpush1.msra.mxu0 0.0
          %4656 = vmatprep.subr.mxu0 0.0
          %4657 = vmatpush1.msra.mxu0 0.0
          %4658 = vmatprep.subr.mxu0 0.0
          %4659 = vmatpush1.msra.mxu0 0.0
          %4660 = vmatprep.subr.mxu0 0.0
          %4661 = vmatpush1.msra.mxu0 0.0
          %4662 = vmatprep.subr.mxu0 0.0
          %4663 = vmatpush1.msra.mxu0 0.0
          %4664 = vmatprep.subr.mxu0 0.0
          %4665 = vmatpush1.msra.mxu0 0.0
          %4666 = vmatprep.subr.mxu0 0.0
          %4667 = vmatpush1.msra.mxu0 0.0
          %4668 = vmatprep.subr.mxu0 0.0
          %4669 = vmatpush1.msra.mxu0 0.0
          %4670 = vmatprep.subr.mxu0 0.0
          %4671 = vmatpush1.msra.mxu0 0.0
          %4672 = vmatprep.subr.mxu0 0.0
          %4673 = vmatpush1.msra.mxu0 0.0
          %4674 = vmatprep.subr.mxu0 0.0
          %4675 = vmatpush1.msra.mxu0 0.0
          %4676 = vmatprep.subr.mxu0 0.0
          %4677 = vmatpush1.msra.mxu0 0.0
          %4678 = vmatprep.subr.mxu0 0.0
          %4679 = vmatpush1.msra.mxu0 0.0
          %4680 = vmatprep.subr.mxu0 0.0
          %4681 = vmatpush1.msra.mxu0 0.0
          %4682 = vmatprep.subr.mxu0 0.0
          %4683 = vmatpush1.msra.mxu0 0.0
          %4684 = vmatprep.subr.mxu0 0.0
          %4685 = vmatpush1.msra.mxu0 0.0
          %4686 = vmatprep.subr.mxu0 0.0
          %4687 = vmatpush1.msra.mxu0 0.0
          %4688 = vmatprep.subr.mxu0 0.0
          %4689 = vmatpush1.msra.mxu0 0.0
          %4690 = vmatprep.subr.mxu0 0.0
          %4691 = vmatpush1.msra.mxu0 0.0
          %4692 = vmatprep.mubr.f32.mxu0 0.0
          %v4693 = vand.u32 %v4448, 4294901760
          %4694 = vmatmul.mubr.f32.gmra.mrb[0].mxu0 %v4693
          %v4695 = vpop.f32.mrb[0].mxu0
          %v4696 = vadd.f32 %v4545, %v4695
          %v4697 = vpop.f32.mrb[0].mxu0
          %4698 = vmatprep.mubr.f32.mxu0 0.0
          %v4699 = vand.u32 %v4451, 4294901760
          %4700 = vmatmul.mubr.f32.gmra.mrb[0].mxu0 %v4699
          %v4701 = vpop.f32.mrb[0].mxu0
          %v4702 = vadd.f32 %v4555, %v4701
          %v4703 = vpop.f32.mrb[0].mxu0
          %4704 = vmatprep.mubr.f32.mxu0 0.0
          %v4705 = vand.u32 %v4454, 4294901760
          %4706 = vmatmul.mubr.f32.gmra.mrb[0].mxu0 %v4705
          %v4707 = vpop.f32.mrb[0].mxu0
          %v4708 = vadd.f32 %v4565, %v4707
          %v4709 = vpop.f32.mrb[0].mxu0
          %4710 = vmatprep.mubr.f32.mxu0 0.0
          %v4711 = vand.u32 %v4457, 4294901760
          %4712 = vmatmul.mubr.f32.gmra.mrb[0].mxu0 %v4711
          %v4713 = vpop.f32.mrb[0].mxu0
          %v4714 = vadd.f32 %v4575, %v4713
          %v4715 = vpop.f32.mrb[0].mxu0
          %4716 = vmatprep.mubr.f32.mxu0 0.0
          %v4717 = vand.u32 %v4460, 4294901760
          %4718 = vmatmul.mubr.f32.gmra.mrb[0].mxu0 %v4717
          %v4719 = vpop.f32.mrb[0].mxu0
          %v4720 = vadd.f32 %v4585, %v4719
          %v4721 = vpop.f32.mrb[0].mxu0
          %4722 = vmatprep.mubr.f32.mxu0 0.0
          %v4723 = vand.u32 %v4463, 4294901760
          %4724 = vmatmul.mubr.f32.gmra.mrb[0].mxu0 %v4723
          %v4725 = vpop.f32.mrb[0].mxu0
          %v4726 = vadd.f32 %v4595, %v4725
          %v4727 = vpop.f32.mrb[0].mxu0
          %4728 = vmatprep.mubr.f32.mxu0 0.0
          %v4729 = vand.u32 %v4466, 4294901760
          %4730 = vmatmul.mubr.f32.gmra.mrb[0].mxu0 %v4729
          %v4731 = vpop.f32.mrb[0].mxu0
          %v4732 = vadd.f32 %v4605, %v4731
          %v4733 = vpop.f32.mrb[0].mxu0
          %4734 = vmatprep.mubr.f32.mxu0 0.0
          %v4735 = vand.u32 %v4469, 4294901760
          %4736 = vmatmul.mubr.f32.gmra.mrb[0].mxu0 %v4735
          %v4737 = vpop.f32.mrb[0].mxu0
          %v4738 = vadd.f32 %v4615, %v4737
          %v4739 = vpop.f32.mrb[0].mxu0
          %4740 = vdwg.mxu0
          %4741 = vmatprep.subr.mxu0 0.0
          %v4742 = vand.u32 %v4437, 4294901760
          %v4743 = vsub.f32 %v4437, %v4742
          %4744 = vmatpush1.msra.mxu0 %v4743
          %4745 = vmatprep.subr.mxu0 0.0
          %v4746 = vand.u32 %v4438, 4294901760
          %v4747 = vsub.f32 %v4438, %v4746
          %4748 = vmatpush1.msra.mxu0 %v4747
          %4749 = vmatprep.subr.mxu0 0.0
          %4750 = vmatpush1.msra.mxu0 0.0
          %4751 = vmatprep.subr.mxu0 0.0
          %4752 = vmatpush1.msra.mxu0 0.0
          %4753 = vmatprep.subr.mxu0 0.0
          %4754 = vmatpush1.msra.mxu0 0.0
          %4755 = vmatprep.subr.mxu0 0.0
          %4756 = vmatpush1.msra.mxu0 0.0
          %4757 = vmatprep.subr.mxu0 0.0
          %4758 = vmatpush1.msra.mxu0 0.0
          %4759 = vmatprep.subr.mxu0 0.0
          %4760 = vmatpush1.msra.mxu0 0.0
          %4761 = vmatprep.subr.mxu0 0.0
          %4762 = vmatpush1.msra.mxu0 0.0
          %4763 = vmatprep.subr.mxu0 0.0
          %4764 = vmatpush1.msra.mxu0 0.0
          %4765 = vmatprep.subr.mxu0 0.0
          %4766 = vmatpush1.msra.mxu0 0.0
          %4767 = vmatprep.subr.mxu0 0.0
          %4768 = vmatpush1.msra.mxu0 0.0
          %4769 = vmatprep.subr.mxu0 0.0
          %4770 = vmatpush1.msra.mxu0 0.0
          %4771 = vmatprep.subr.mxu0 0.0
          %4772 = vmatpush1.msra.mxu0 0.0
          %4773 = vmatprep.subr.mxu0 0.0
          %4774 = vmatpush1.msra.mxu0 0.0
          %4775 = vmatprep.subr.mxu0 0.0
          %4776 = vmatpush1.msra.mxu0 0.0
          %4777 = vmatprep.subr.mxu0 0.0
          %4778 = vmatpush1.msra.mxu0 0.0
          %4779 = vmatprep.subr.mxu0 0.0
          %4780 = vmatpush1.msra.mxu0 0.0
          %4781 = vmatprep.subr.mxu0 0.0
          %4782 = vmatpush1.msra.mxu0 0.0
          %4783 = vmatprep.subr.mxu0 0.0
          %4784 = vmatpush1.msra.mxu0 0.0
          %4785 = vmatprep.subr.mxu0 0.0
          %4786 = vmatpush1.msra.mxu0 0.0
          %4787 = vmatprep.subr.mxu0 0.0
          %4788 = vmatpush1.msra.mxu0 0.0
          %4789 = vmatprep.subr.mxu0 0.0
          %4790 = vmatpush1.msra.mxu0 0.0
          %4791 = vmatprep.subr.mxu0 0.0
          %4792 = vmatpush1.msra.mxu0 0.0
          %4793 = vmatprep.subr.mxu0 0.0
          %4794 = vmatpush1.msra.mxu0 0.0
          %4795 = vmatprep.subr.mxu0 0.0
          %4796 = vmatpush1.msra.mxu0 0.0
          %4797 = vmatprep.subr.mxu0 0.0
          %4798 = vmatpush1.msra.mxu0 0.0
          %4799 = vmatprep.subr.mxu0 0.0
          %4800 = vmatpush1.msra.mxu0 0.0
          %4801 = vmatprep.subr.mxu0 0.0
          %4802 = vmatpush1.msra.mxu0 0.0
          %4803 = vmatprep.subr.mxu0 0.0
          %4804 = vmatpush1.msra.mxu0 0.0
          %4805 = vmatprep.subr.mxu0 0.0
          %4806 = vmatpush1.msra.mxu0 0.0
          %4807 = vmatprep.subr.mxu0 0.0
          %4808 = vmatpush1.msra.mxu0 0.0
          %4809 = vmatprep.mubr.f32.mxu0 0.0
          %v4810 = vand.u32 %v4448, 4294901760
          %v4811 = vsub.f32 %v4448, %v4810
          %4812 = vmatmul.mubr.f32.gmra.mrb[0].mxu0 %v4811
          %v4813 = vpop.f32.mrb[0].mxu0
          %v4814 = vadd.f32 %v4696, %v4813
          %v4815 = vpop.f32.mrb[0].mxu0
          %4816 = vmatprep.mubr.f32.mxu0 0.0
          %v4817 = vand.u32 %v4451, 4294901760
          %v4818 = vsub.f32 %v4451, %v4817
          %4819 = vmatmul.mubr.f32.gmra.mrb[0].mxu0 %v4818
          %v4820 = vpop.f32.mrb[0].mxu0
          %v4821 = vadd.f32 %v4702, %v4820
          %v4822 = vpop.f32.mrb[0].mxu0
          %4823 = vmatprep.mubr.f32.mxu0 0.0
          %v4824 = vand.u32 %v4454, 4294901760
          %v4825 = vsub.f32 %v4454, %v4824
          %4826 = vmatmul.mubr.f32.gmra.mrb[0].mxu0 %v4825
          %v4827 = vpop.f32.mrb[0].mxu0
          %v4828 = vadd.f32 %v4708, %v4827
          %v4829 = vpop.f32.mrb[0].mxu0
          %4830 = vmatprep.mubr.f32.mxu0 0.0
          %v4831 = vand.u32 %v4457, 4294901760
          %v4832 = vsub.f32 %v4457, %v4831
          %4833 = vmatmul.mubr.f32.gmra.mrb[0].mxu0 %v4832
          %v4834 = vpop.f32.mrb[0].mxu0
          %v4835 = vadd.f32 %v4714, %v4834
          %v4836 = vpop.f32.mrb[0].mxu0
          %4837 = vmatprep.mubr.f32.mxu0 0.0
          %v4838 = vand.u32 %v4460, 4294901760
          %v4839 = vsub.f32 %v4460, %v4838
          %4840 = vmatmul.mubr.f32.gmra.mrb[0].mxu0 %v4839
          %v4841 = vpop.f32.mrb[0].mxu0
          %v4842 = vadd.f32 %v4720, %v4841
          %v4843 = vpop.f32.mrb[0].mxu0
          %4844 = vmatprep.mubr.f32.mxu0 0.0
          %v4845 = vand.u32 %v4463, 4294901760
          %v4846 = vsub.f32 %v4463, %v4845
          %4847 = vmatmul.mubr.f32.gmra.mrb[0].mxu0 %v4846
          %v4848 = vpop.f32.mrb[0].mxu0
          %v4849 = vadd.f32 %v4726, %v4848
          %v4850 = vpop.f32.mrb[0].mxu0
          %4851 = vmatprep.mubr.f32.mxu0 0.0
          %v4852 = vand.u32 %v4466, 4294901760
          %v4853 = vsub.f32 %v4466, %v4852
          %4854 = vmatmul.mubr.f32.gmra.mrb[0].mxu0 %v4853
          %v4855 = vpop.f32.mrb[0].mxu0
          %v4856 = vadd.f32 %v4732, %v4855
          %v4857 = vpop.f32.mrb[0].mxu0
          %4858 = vmatprep.mubr.f32.mxu0 0.0
          %v4859 = vand.u32 %v4469, 4294901760
          %v4860 = vsub.f32 %v4469, %v4859
          %4861 = vmatmul.mubr.f32.gmra.mrb[0].mxu0 %v4860
          %v4862 = vpop.f32.mrb[0].mxu0
          %v4863 = vadd.f32 %v4738, %v4862
          %v4864 = vpop.f32.mrb[0].mxu0
          %4865 = vdwg.mxu0
          %4866 = vmatprep.subr.mxu0 0.0
          %v4867 = vand.u32 %v4437, 4294901760
          %4868 = vmatpush1.msra.mxu0 %v4867
          %4869 = vmatprep.subr.mxu0 0.0
          %v4870 = vand.u32 %v4438, 4294901760
          %4871 = vmatpush1.msra.mxu0 %v4870
          %4872 = vmatprep.subr.mxu0 0.0
          %4873 = vmatpush1.msra.mxu0 0.0
          %4874 = vmatprep.subr.mxu0 0.0
          %4875 = vmatpush1.msra.mxu0 0.0
          %4876 = vmatprep.subr.mxu0 0.0
          %4877 = vmatpush1.msra.mxu0 0.0
          %4878 = vmatprep.subr.mxu0 0.0
          %4879 = vmatpush1.msra.mxu0 0.0
          %4880 = vmatprep.subr.mxu0 0.0
          %4881 = vmatpush1.msra.mxu0 0.0
          %4882 = vmatprep.subr.mxu0 0.0
          %4883 = vmatpush1.msra.mxu0 0.0
          %4884 = vmatprep.subr.mxu0 0.0
          %4885 = vmatpush1.msra.mxu0 0.0
          %4886 = vmatprep.subr.mxu0 0.0
          %4887 = vmatpush1.msra.mxu0 0.0
          %4888 = vmatprep.subr.mxu0 0.0
          %4889 = vmatpush1.msra.mxu0 0.0
          %4890 = vmatprep.subr.mxu0 0.0
          %4891 = vmatpush1.msra.mxu0 0.0
          %4892 = vmatprep.subr.mxu0 0.0
          %4893 = vmatpush1.msra.mxu0 0.0
          %4894 = vmatprep.subr.mxu0 0.0
          %4895 = vmatpush1.msra.mxu0 0.0
          %4896 = vmatprep.subr.mxu0 0.0
          %4897 = vmatpush1.msra.mxu0 0.0
          %4898 = vmatprep.subr.mxu0 0.0
          %4899 = vmatpush1.msra.mxu0 0.0
          %4900 = vmatprep.subr.mxu0 0.0
          %4901 = vmatpush1.msra.mxu0 0.0
          %4902 = vmatprep.subr.mxu0 0.0
          %4903 = vmatpush1.msra.mxu0 0.0
          %4904 = vmatprep.subr.mxu0 0.0
          %4905 = vmatpush1.msra.mxu0 0.0
          %4906 = vmatprep.subr.mxu0 0.0
          %4907 = vmatpush1.msra.mxu0 0.0
          %4908 = vmatprep.subr.mxu0 0.0
          %4909 = vmatpush1.msra.mxu0 0.0
          %4910 = vmatprep.subr.mxu0 0.0
          %4911 = vmatpush1.msra.mxu0 0.0
          %4912 = vmatprep.subr.mxu0 0.0
          %4913 = vmatpush1.msra.mxu0 0.0
          %4914 = vmatprep.subr.mxu0 0.0
          %4915 = vmatpush1.msra.mxu0 0.0
          %4916 = vmatprep.subr.mxu0 0.0
          %4917 = vmatpush1.msra.mxu0 0.0
          %4918 = vmatprep.subr.mxu0 0.0
          %4919 = vmatpush1.msra.mxu0 0.0
          %4920 = vmatprep.subr.mxu0 0.0
          %4921 = vmatpush1.msra.mxu0 0.0
          %4922 = vmatprep.subr.mxu0 0.0
          %4923 = vmatpush1.msra.mxu0 0.0
          %4924 = vmatprep.subr.mxu0 0.0
          %4925 = vmatpush1.msra.mxu0 0.0
          %4926 = vmatprep.subr.mxu0 0.0
          %4927 = vmatpush1.msra.mxu0 0.0
          %4928 = vmatprep.subr.mxu0 0.0
          %4929 = vmatpush1.msra.mxu0 0.0
          %4930 = vmatprep.subr.mxu0 0.0
          %4931 = vmatpush1.msra.mxu0 0.0
          %4932 = vmatprep.mubr.f32.mxu0 0.0
          %v4933 = vand.u32 %v4448, 4294901760
          %v4934 = vsub.f32 %v4448, %v4933
          %v4935 = vand.u32 %v4934, 4294901760
          %4936 = vmatmul.mubr.f32.gmra.mrb[0].mxu0 %v4935
          %v4937 = vpop.f32.mrb[0].mxu0
          %v4938 = vadd.f32 %v4814, %v4937
          %v4939 = vpop.f32.mrb[0].mxu0
          %4940 = vmatprep.mubr.f32.mxu0 0.0
          %v4941 = vand.u32 %v4451, 4294901760
          %v4942 = vsub.f32 %v4451, %v4941
          %v4943 = vand.u32 %v4942, 4294901760
          %4944 = vmatmul.mubr.f32.gmra.mrb[0].mxu0 %v4943
          %v4945 = vpop.f32.mrb[0].mxu0
          %v4946 = vadd.f32 %v4821, %v4945
          %v4947 = vpop.f32.mrb[0].mxu0
          %4948 = vmatprep.mubr.f32.mxu0 0.0
          %v4949 = vand.u32 %v4454, 4294901760
          %v4950 = vsub.f32 %v4454, %v4949
          %v4951 = vand.u32 %v4950, 4294901760
          %4952 = vmatmul.mubr.f32.gmra.mrb[0].mxu0 %v4951
          %v4953 = vpop.f32.mrb[0].mxu0
          %v4954 = vadd.f32 %v4828, %v4953
          %v4955 = vpop.f32.mrb[0].mxu0
          %4956 = vmatprep.mubr.f32.mxu0 0.0
          %v4957 = vand.u32 %v4457, 4294901760
          %v4958 = vsub.f32 %v4457, %v4957
          %v4959 = vand.u32 %v4958, 4294901760
          %4960 = vmatmul.mubr.f32.gmra.mrb[0].mxu0 %v4959
          %v4961 = vpop.f32.mrb[0].mxu0
          %v4962 = vadd.f32 %v4835, %v4961
          %v4963 = vpop.f32.mrb[0].mxu0
          %4964 = vmatprep.mubr.f32.mxu0 0.0
          %v4965 = vand.u32 %v4460, 4294901760
          %v4966 = vsub.f32 %v4460, %v4965
          %v4967 = vand.u32 %v4966, 4294901760
          %4968 = vmatmul.mubr.f32.gmra.mrb[0].mxu0 %v4967
          %v4969 = vpop.f32.mrb[0].mxu0
          %v4970 = vadd.f32 %v4842, %v4969
          %v4971 = vpop.f32.mrb[0].mxu0
          %4972 = vmatprep.mubr.f32.mxu0 0.0
          %v4973 = vand.u32 %v4463, 4294901760
          %v4974 = vsub.f32 %v4463, %v4973
          %v4975 = vand.u32 %v4974, 4294901760
          %4976 = vmatmul.mubr.f32.gmra.mrb[0].mxu0 %v4975
          %v4977 = vpop.f32.mrb[0].mxu0
          %v4978 = vadd.f32 %v4849, %v4977
          %v4979 = vpop.f32.mrb[0].mxu0
          %4980 = vmatprep.mubr.f32.mxu0 0.0
          %v4981 = vand.u32 %v4466, 4294901760
          %v4982 = vsub.f32 %v4466, %v4981
          %v4983 = vand.u32 %v4982, 4294901760
          %4984 = vmatmul.mubr.f32.gmra.mrb[0].mxu0 %v4983
          %v4985 = vpop.f32.mrb[0].mxu0
          %v4986 = vadd.f32 %v4856, %v4985
          %v4987 = vpop.f32.mrb[0].mxu0
          %4988 = vmatprep.mubr.f32.mxu0 0.0
          %v4989 = vand.u32 %v4469, 4294901760
          %v4990 = vsub.f32 %v4469, %v4989
          %v4991 = vand.u32 %v4990, 4294901760
          %4992 = vmatmul.mubr.f32.gmra.mrb[0].mxu0 %v4991
          %v4993 = vpop.f32.mrb[0].mxu0
          %v4994 = vadd.f32 %v4863, %v4993
          %v4995 = vpop.f32.mrb[0].mxu0
          %4996 = vdwg.mxu0
          %4997 = vmatprep.subr.mxu0 0.0
          %v4998 = vand.u32 %v4437, 4294901760
          %v4999 = vsub.f32 %v4437, %v4998
          %v5000 = vand.u32 %v4999, 4294901760
          %5001 = vmatpush1.msra.mxu0 %v5000
          %5002 = vmatprep.subr.mxu0 0.0
          %v5003 = vand.u32 %v4438, 4294901760
          %v5004 = vsub.f32 %v4438, %v5003
          %v5005 = vand.u32 %v5004, 4294901760
          %5006 = vmatpush1.msra.mxu0 %v5005
          %5007 = vmatprep.subr.mxu0 0.0
          %5008 = vmatpush1.msra.mxu0 0.0
          %5009 = vmatprep.subr.mxu0 0.0
          %5010 = vmatpush1.msra.mxu0 0.0
          %5011 = vmatprep.subr.mxu0 0.0
          %5012 = vmatpush1.msra.mxu0 0.0
          %5013 = vmatprep.subr.mxu0 0.0
          %5014 = vmatpush1.msra.mxu0 0.0
          %5015 = vmatprep.subr.mxu0 0.0
          %5016 = vmatpush1.msra.mxu0 0.0
          %5017 = vmatprep.subr.mxu0 0.0
          %5018 = vmatpush1.msra.mxu0 0.0
          %5019 = vmatprep.subr.mxu0 0.0
          %5020 = vmatpush1.msra.mxu0 0.0
          %5021 = vmatprep.subr.mxu0 0.0
          %5022 = vmatpush1.msra.mxu0 0.0
          %5023 = vmatprep.subr.mxu0 0.0
          %5024 = vmatpush1.msra.mxu0 0.0
          %5025 = vmatprep.subr.mxu0 0.0
          %5026 = vmatpush1.msra.mxu0 0.0
          %5027 = vmatprep.subr.mxu0 0.0
          %5028 = vmatpush1.msra.mxu0 0.0
          %5029 = vmatprep.subr.mxu0 0.0
          %5030 = vmatpush1.msra.mxu0 0.0
          %5031 = vmatprep.subr.mxu0 0.0
          %5032 = vmatpush1.msra.mxu0 0.0
          %5033 = vmatprep.subr.mxu0 0.0
          %5034 = vmatpush1.msra.mxu0 0.0
          %5035 = vmatprep.subr.mxu0 0.0
          %5036 = vmatpush1.msra.mxu0 0.0
          %5037 = vmatprep.subr.mxu0 0.0
          %5038 = vmatpush1.msra.mxu0 0.0
          %5039 = vmatprep.subr.mxu0 0.0
          %5040 = vmatpush1.msra.mxu0 0.0
          %5041 = vmatprep.subr.mxu0 0.0
          %5042 = vmatpush1.msra.mxu0 0.0
          %5043 = vmatprep.subr.mxu0 0.0
          %5044 = vmatpush1.msra.mxu0 0.0
          %5045 = vmatprep.subr.mxu0 0.0
          %5046 = vmatpush1.msra.mxu0 0.0
          %5047 = vmatprep.subr.mxu0 0.0
          %5048 = vmatpush1.msra.mxu0 0.0
          %5049 = vmatprep.subr.mxu0 0.0
          %5050 = vmatpush1.msra.mxu0 0.0
          %5051 = vmatprep.subr.mxu0 0.0
          %5052 = vmatpush1.msra.mxu0 0.0
          %5053 = vmatprep.subr.mxu0 0.0
          %5054 = vmatpush1.msra.mxu0 0.0
          %5055 = vmatprep.subr.mxu0 0.0
          %5056 = vmatpush1.msra.mxu0 0.0
          %5057 = vmatprep.subr.mxu0 0.0
          %5058 = vmatpush1.msra.mxu0 0.0
          %5059 = vmatprep.subr.mxu0 0.0
          %5060 = vmatpush1.msra.mxu0 0.0
          %5061 = vmatprep.subr.mxu0 0.0
          %5062 = vmatpush1.msra.mxu0 0.0
          %5063 = vmatprep.subr.mxu0 0.0
          %5064 = vmatpush1.msra.mxu0 0.0
          %5065 = vmatprep.subr.mxu0 0.0
          %5066 = vmatpush1.msra.mxu0 0.0
          %5067 = vmatprep.mubr.f32.mxu0 0.0
          %v5068 = vand.u32 %v4448, 4294901760
          %5069 = vmatmul.mubr.f32.gmra.mrb[0].mxu0 %v5068
          %v5070 = vpop.f32.mrb[0].mxu0
          %v5071 = vadd.f32 %v4938, %v5070
          %v5072 = vpop.f32.mrb[0].mxu0
          %5073 = vmatprep.mubr.f32.mxu0 0.0
          %v5074 = vand.u32 %v4451, 4294901760
          %5075 = vmatmul.mubr.f32.gmra.mrb[0].mxu0 %v5074
          %v5076 = vpop.f32.mrb[0].mxu0
          %v5077 = vadd.f32 %v4946, %v5076
          %v5078 = vpop.f32.mrb[0].mxu0
          %5079 = vmatprep.mubr.f32.mxu0 0.0
          %v5080 = vand.u32 %v4454, 4294901760
          %5081 = vmatmul.mubr.f32.gmra.mrb[0].mxu0 %v5080
          %v5082 = vpop.f32.mrb[0].mxu0
          %v5083 = vadd.f32 %v4954, %v5082
          %v5084 = vpop.f32.mrb[0].mxu0
          %5085 = vmatprep.mubr.f32.mxu0 0.0
          %v5086 = vand.u32 %v4457, 4294901760
          %5087 = vmatmul.mubr.f32.gmra.mrb[0].mxu0 %v5086
          %v5088 = vpop.f32.mrb[0].mxu0
          %v5089 = vadd.f32 %v4962, %v5088
          %v5090 = vpop.f32.mrb[0].mxu0
          %5091 = vmatprep.mubr.f32.mxu0 0.0
          %v5092 = vand.u32 %v4460, 4294901760
          %5093 = vmatmul.mubr.f32.gmra.mrb[0].mxu0 %v5092
          %v5094 = vpop.f32.mrb[0].mxu0
          %v5095 = vadd.f32 %v4970, %v5094
          %v5096 = vpop.f32.mrb[0].mxu0
          %5097 = vmatprep.mubr.f32.mxu0 0.0
          %v5098 = vand.u32 %v4463, 4294901760
          %5099 = vmatmul.mubr.f32.gmra.mrb[0].mxu0 %v5098
          %v5100 = vpop.f32.mrb[0].mxu0
          %v5101 = vadd.f32 %v4978, %v5100
          %v5102 = vpop.f32.mrb[0].mxu0
          %5103 = vmatprep.mubr.f32.mxu0 0.0
          %v5104 = vand.u32 %v4466, 4294901760
          %5105 = vmatmul.mubr.f32.gmra.mrb[0].mxu0 %v5104
          %v5106 = vpop.f32.mrb[0].mxu0
          %v5107 = vadd.f32 %v4986, %v5106
          %v5108 = vpop.f32.mrb[0].mxu0
          %5109 = vmatprep.mubr.f32.mxu0 0.0
          %v5110 = vand.u32 %v4469, 4294901760
          %5111 = vmatmul.mubr.f32.gmra.mrb[0].mxu0 %v5110
          %v5112 = vpop.f32.mrb[0].mxu0
          %v5113 = vadd.f32 %v4994, %v5112
          %v5114 = vpop.f32.mrb[0].mxu0
          %5115 = vdwg.mxu0
          %5116 = vmatprep.subr.mxu0 0.0
          %v5117 = vand.u32 %v4437, 4294901760
          %5118 = vmatpush1.msra.mxu0 %v5117
          %5119 = vmatprep.subr.mxu0 0.0
          %v5120 = vand.u32 %v4438, 4294901760
          %5121 = vmatpush1.msra.mxu0 %v5120
          %5122 = vmatprep.subr.mxu0 0.0
          %5123 = vmatpush1.msra.mxu0 0.0
          %5124 = vmatprep.subr.mxu0 0.0
          %5125 = vmatpush1.msra.mxu0 0.0
          %5126 = vmatprep.subr.mxu0 0.0
          %5127 = vmatpush1.msra.mxu0 0.0
          %5128 = vmatprep.subr.mxu0 0.0
          %5129 = vmatpush1.msra.mxu0 0.0
          %5130 = vmatprep.subr.mxu0 0.0
          %5131 = vmatpush1.msra.mxu0 0.0
          %5132 = vmatprep.subr.mxu0 0.0
          %5133 = vmatpush1.msra.mxu0 0.0
          %5134 = vmatprep.subr.mxu0 0.0
          %5135 = vmatpush1.msra.mxu0 0.0
          %5136 = vmatprep.subr.mxu0 0.0
          %5137 = vmatpush1.msra.mxu0 0.0
          %5138 = vmatprep.subr.mxu0 0.0
          %5139 = vmatpush1.msra.mxu0 0.0
          %5140 = vmatprep.subr.mxu0 0.0
          %5141 = vmatpush1.msra.mxu0 0.0
          %5142 = vmatprep.subr.mxu0 0.0
          %5143 = vmatpush1.msra.mxu0 0.0
          %5144 = vmatprep.subr.mxu0 0.0
          %5145 = vmatpush1.msra.mxu0 0.0
          %5146 = vmatprep.subr.mxu0 0.0
          %5147 = vmatpush1.msra.mxu0 0.0
          %5148 = vmatprep.subr.mxu0 0.0
          %5149 = vmatpush1.msra.mxu0 0.0
          %5150 = vmatprep.subr.mxu0 0.0
          %5151 = vmatpush1.msra.mxu0 0.0
          %5152 = vmatprep.subr.mxu0 0.0
          %5153 = vmatpush1.msra.mxu0 0.0
          %5154 = vmatprep.subr.mxu0 0.0
          %5155 = vmatpush1.msra.mxu0 0.0
          %5156 = vmatprep.subr.mxu0 0.0
          %5157 = vmatpush1.msra.mxu0 0.0
          %5158 = vmatprep.subr.mxu0 0.0
          %5159 = vmatpush1.msra.mxu0 0.0
          %5160 = vmatprep.subr.mxu0 0.0
          %5161 = vmatpush1.msra.mxu0 0.0
          %5162 = vmatprep.subr.mxu0 0.0
          %5163 = vmatpush1.msra.mxu0 0.0
          %5164 = vmatprep.subr.mxu0 0.0
          %5165 = vmatpush1.msra.mxu0 0.0
          %5166 = vmatprep.subr.mxu0 0.0
          %5167 = vmatpush1.msra.mxu0 0.0
          %5168 = vmatprep.subr.mxu0 0.0
          %5169 = vmatpush1.msra.mxu0 0.0
          %5170 = vmatprep.subr.mxu0 0.0
          %5171 = vmatpush1.msra.mxu0 0.0
          %5172 = vmatprep.subr.mxu0 0.0
          %5173 = vmatpush1.msra.mxu0 0.0
          %5174 = vmatprep.subr.mxu0 0.0
          %5175 = vmatpush1.msra.mxu0 0.0
          %5176 = vmatprep.subr.mxu0 0.0
          %5177 = vmatpush1.msra.mxu0 0.0
          %5178 = vmatprep.subr.mxu0 0.0
          %5179 = vmatpush1.msra.mxu0 0.0
          %5180 = vmatprep.subr.mxu0 0.0
          %5181 = vmatpush1.msra.mxu0 0.0
          %5182 = vmatprep.mubr.f32.mxu0 0.0
          %v5183 = vand.u32 %v4448, 4294901760
          %5184 = vmatmul.mubr.f32.gmra.mrb[0].mxu0 %v5183
          %v5185 = vpop.f32.mrb[0].mxu0
          %v5186 = vadd.f32 %v5071, %v5185
          %v5187 = vpop.f32.mrb[0].mxu0
          %5188 = vmatprep.mubr.f32.mxu0 0.0
          %v5189 = vand.u32 %v4451, 4294901760
          %5190 = vmatmul.mubr.f32.gmra.mrb[0].mxu0 %v5189
          %v5191 = vpop.f32.mrb[0].mxu0
          %v5192 = vadd.f32 %v5077, %v5191
          %v5193 = vpop.f32.mrb[0].mxu0
          %5194 = vmatprep.mubr.f32.mxu0 0.0
          %v5195 = vand.u32 %v4454, 4294901760
          %5196 = vmatmul.mubr.f32.gmra.mrb[0].mxu0 %v5195
          %v5197 = vpop.f32.mrb[0].mxu0
          %v5198 = vadd.f32 %v5083, %v5197
          %v5199 = vpop.f32.mrb[0].mxu0
          %5200 = vmatprep.mubr.f32.mxu0 0.0
          %v5201 = vand.u32 %v4457, 4294901760
          %5202 = vmatmul.mubr.f32.gmra.mrb[0].mxu0 %v5201
          %v5203 = vpop.f32.mrb[0].mxu0
          %v5204 = vadd.f32 %v5089, %v5203
          %v5205 = vpop.f32.mrb[0].mxu0
          %5206 = vmatprep.mubr.f32.mxu0 0.0
          %v5207 = vand.u32 %v4460, 4294901760
          %5208 = vmatmul.mubr.f32.gmra.mrb[0].mxu0 %v5207
          %v5209 = vpop.f32.mrb[0].mxu0
          %v5210 = vadd.f32 %v5095, %v5209
          %v5211 = vpop.f32.mrb[0].mxu0
          %5212 = vmatprep.mubr.f32.mxu0 0.0
          %v5213 = vand.u32 %v4463, 4294901760
          %5214 = vmatmul.mubr.f32.gmra.mrb[0].mxu0 %v5213
          %v5215 = vpop.f32.mrb[0].mxu0
          %v5216 = vadd.f32 %v5101, %v5215
          %v5217 = vpop.f32.mrb[0].mxu0
          %5218 = vmatprep.mubr.f32.mxu0 0.0
          %v5219 = vand.u32 %v4466, 4294901760
          %5220 = vmatmul.mubr.f32.gmra.mrb[0].mxu0 %v5219
          %v5221 = vpop.f32.mrb[0].mxu0
          %v5222 = vadd.f32 %v5107, %v5221
          %v5223 = vpop.f32.mrb[0].mxu0
          %5224 = vmatprep.mubr.f32.mxu0 0.0
          %v5225 = vand.u32 %v4469, 4294901760
          %5226 = vmatmul.mubr.f32.gmra.mrb[0].mxu0 %v5225
          %v5227 = vpop.f32.mrb[0].mxu0
          %v5228 = vadd.f32 %v5113, %v5227
          %v5229 = vpop.f32.mrb[0].mxu0
          %5230 = vdwg.mxu0
          %5231 = vst.msk [vmem:[#allocation2] sm:$0xff] %vm3364, %v5186
          %5232 = vst.msk [vmem:[#allocation2 + $0x8] sm:$0xff] %vm3364, %v5192
          %5233 = vst.msk [vmem:[#allocation2 + $0x10] sm:$0xff] %vm3364, %v5198
          %5234 = vst.msk [vmem:[#allocation2 + $0x18] sm:$0xff] %vm3364, %v5204
          %5235 = vst.msk [vmem:[#allocation2 + $0x20] sm:$0xff] %vm3364, %v5210
          %5236 = vst.msk [vmem:[#allocation2 + $0x28] sm:$0xff] %vm3364, %v5216
          %5237 = vst.msk [vmem:[#allocation2 + $0x30] sm:$0xff] %vm3364, %v5222
          %5238 = vst.msk [vmem:[#allocation2 + $0x38] sm:$0xff] %vm3364, %v5228
        $region90: #{tpu_custom_call.1} parent=77 // pred_fallthru
          _
        %v5239 = vld [vmem:[#allocation2] sm:$0xff]
        %v5240 = vld [vmem:[#allocation2 + $0x8] sm:$0xff]
        %v5241 = vld [vmem:[#allocation2 + $0x10] sm:$0xff]
        %v5242 = vld [vmem:[#allocation2 + $0x18] sm:$0xff]
        %v5243 = vld [vmem:[#allocation2 + $0x20] sm:$0xff]
        %v5244 = vld [vmem:[#allocation2 + $0x28] sm:$0xff]
        %v5245 = vld [vmem:[#allocation2 + $0x30] sm:$0xff]
        %v5246 = vld [vmem:[#allocation2 + $0x38] sm:$0xff]
        %v5247 = vld [vmem:[%s276] sm:$0xff]
        %v5248 = vld [vmem:[%s276 + $0x8] sm:$0xff]
        %vm5249 = vcmask 130048
        %v5251 = vsel %vm5249, %v5239, 0
        %v5254 = vsel %vm5249, %v5240, 0
        %v5257 = vsel %vm5249, %v5241, 0
        %v5260 = vsel %vm5249, %v5242, 0
        %v5263 = vsel %vm5249, %v5243, 0
        %v5266 = vsel %vm5249, %v5244, 0
        %v5269 = vsel %vm5249, %v5245, 0
        %v5272 = vsel %vm5249, %v5246, 0
        %5274 = vmatprep.subr.mxu0 0.0
        %v5275 = vand.u32 %v5247, 4294901760
        %5276 = vmatpush1.msra.mxu0 %v5275
        %5277 = vmatprep.subr.mxu0 0.0
        %v5278 = vand.u32 %v5248, 4294901760
        %5279 = vmatpush1.msra.mxu0 %v5278
        %5280 = vmatprep.subr.mxu0 0.0
        %5281 = vmatpush1.msra.mxu0 0.0
        %5282 = vmatprep.subr.mxu0 0.0
        %5283 = vmatpush1.msra.mxu0 0.0
        %5284 = vmatprep.subr.mxu0 0.0
        %5285 = vmatpush1.msra.mxu0 0.0
        %5286 = vmatprep.subr.mxu0 0.0
        %5287 = vmatpush1.msra.mxu0 0.0
        %5288 = vmatprep.subr.mxu0 0.0
        %5289 = vmatpush1.msra.mxu0 0.0
        %5290 = vmatprep.subr.mxu0 0.0
        %5291 = vmatpush1.msra.mxu0 0.0
        %5292 = vmatprep.subr.mxu0 0.0
        %5293 = vmatpush1.msra.mxu0 0.0
        %5294 = vmatprep.subr.mxu0 0.0
        %5295 = vmatpush1.msra.mxu0 0.0
        %5296 = vmatprep.subr.mxu0 0.0
        %5297 = vmatpush1.msra.mxu0 0.0
        %5298 = vmatprep.subr.mxu0 0.0
        %5299 = vmatpush1.msra.mxu0 0.0
        %5300 = vmatprep.subr.mxu0 0.0
        %5301 = vmatpush1.msra.mxu0 0.0
        %5302 = vmatprep.subr.mxu0 0.0
        %5303 = vmatpush1.msra.mxu0 0.0
        %5304 = vmatprep.subr.mxu0 0.0
        %5305 = vmatpush1.msra.mxu0 0.0
        %5306 = vmatprep.subr.mxu0 0.0
        %5307 = vmatpush1.msra.mxu0 0.0
        %5308 = vmatprep.subr.mxu0 0.0
        %5309 = vmatpush1.msra.mxu0 0.0
        %5310 = vmatprep.subr.mxu0 0.0
        %5311 = vmatpush1.msra.mxu0 0.0
        %5312 = vmatprep.subr.mxu0 0.0
        %5313 = vmatpush1.msra.mxu0 0.0
        %5314 = vmatprep.subr.mxu0 0.0
        %5315 = vmatpush1.msra.mxu0 0.0
        %5316 = vmatprep.subr.mxu0 0.0
        %5317 = vmatpush1.msra.mxu0 0.0
        %5318 = vmatprep.subr.mxu0 0.0
        %5319 = vmatpush1.msra.mxu0 0.0
        %5320 = vmatprep.subr.mxu0 0.0
        %5321 = vmatpush1.msra.mxu0 0.0
        %5322 = vmatprep.subr.mxu0 0.0
        %5323 = vmatpush1.msra.mxu0 0.0
        %5324 = vmatprep.subr.mxu0 0.0
        %5325 = vmatpush1.msra.mxu0 0.0
        %5326 = vmatprep.subr.mxu0 0.0
        %5327 = vmatpush1.msra.mxu0 0.0
        %5328 = vmatprep.subr.mxu0 0.0
        %5329 = vmatpush1.msra.mxu0 0.0
        %5330 = vmatprep.subr.mxu0 0.0
        %5331 = vmatpush1.msra.mxu0 0.0
        %5332 = vmatprep.subr.mxu0 0.0
        %5333 = vmatpush1.msra.mxu0 0.0
        %5334 = vmatprep.subr.mxu0 0.0
        %5335 = vmatpush1.msra.mxu0 0.0
        %5336 = vmatprep.subr.mxu0 0.0
        %5337 = vmatpush1.msra.mxu0 0.0
        %5338 = vmatprep.subr.mxu0 0.0
        %5339 = vmatpush1.msra.mxu0 0.0
        %5340 = vmatprep.mubr.f32.mxu0 0.0
        %v5341 = vand.u32 %v5251, 4294901760
        %v5342 = vsub.f32 %v5251, %v5341
        %v5343 = vand.u32 %v5342, 4294901760
        %v5344 = vsub.f32 %v5342, %v5343
        %v5345 = vand.u32 %v5344, 4294901760
        %5346 = vmatmul.mubr.f32.gmra.mrb[0].mxu0 %v5345
        %v5347 = vpop.f32.mrb[0].mxu0
        %v5348 = vadd.f32 0.0, %v5347
        %v5349 = vpop.f32.mrb[0].mxu0
        %5350 = vmatprep.mubr.f32.mxu0 0.0
        %v5351 = vand.u32 %v5254, 4294901760
        %v5352 = vsub.f32 %v5254, %v5351
        %v5353 = vand.u32 %v5352, 4294901760
        %v5354 = vsub.f32 %v5352, %v5353
        %v5355 = vand.u32 %v5354, 4294901760
        %5356 = vmatmul.mubr.f32.gmra.mrb[0].mxu0 %v5355
        %v5357 = vpop.f32.mrb[0].mxu0
        %v5358 = vadd.f32 0.0, %v5357
        %v5359 = vpop.f32.mrb[0].mxu0
        %5360 = vmatprep.mubr.f32.mxu0 0.0
        %v5361 = vand.u32 %v5257, 4294901760
        %v5362 = vsub.f32 %v5257, %v5361
        %v5363 = vand.u32 %v5362, 4294901760
        %v5364 = vsub.f32 %v5362, %v5363
        %v5365 = vand.u32 %v5364, 4294901760
        %5366 = vmatmul.mubr.f32.gmra.mrb[0].mxu0 %v5365
        %v5367 = vpop.f32.mrb[0].mxu0
        %v5368 = vadd.f32 0.0, %v5367
        %v5369 = vpop.f32.mrb[0].mxu0
        %5370 = vmatprep.mubr.f32.mxu0 0.0
        %v5371 = vand.u32 %v5260, 4294901760
        %v5372 = vsub.f32 %v5260, %v5371
        %v5373 = vand.u32 %v5372, 4294901760
        %v5374 = vsub.f32 %v5372, %v5373
        %v5375 = vand.u32 %v5374, 4294901760
        %5376 = vmatmul.mubr.f32.gmra.mrb[0].mxu0 %v5375
        %v5377 = vpop.f32.mrb[0].mxu0
        %v5378 = vadd.f32 0.0, %v5377
        %v5379 = vpop.f32.mrb[0].mxu0
        %5380 = vmatprep.mubr.f32.mxu0 0.0
        %v5381 = vand.u32 %v5263, 4294901760
        %v5382 = vsub.f32 %v5263, %v5381
        %v5383 = vand.u32 %v5382, 4294901760
        %v5384 = vsub.f32 %v5382, %v5383
        %v5385 = vand.u32 %v5384, 4294901760
        %5386 = vmatmul.mubr.f32.gmra.mrb[0].mxu0 %v5385
        %v5387 = vpop.f32.mrb[0].mxu0
        %v5388 = vadd.f32 0.0, %v5387
        %v5389 = vpop.f32.mrb[0].mxu0
        %5390 = vmatprep.mubr.f32.mxu0 0.0
        %v5391 = vand.u32 %v5266, 4294901760
        %v5392 = vsub.f32 %v5266, %v5391
        %v5393 = vand.u32 %v5392, 4294901760
        %v5394 = vsub.f32 %v5392, %v5393
        %v5395 = vand.u32 %v5394, 4294901760
        %5396 = vmatmul.mubr.f32.gmra.mrb[0].mxu0 %v5395
        %v5397 = vpop.f32.mrb[0].mxu0
        %v5398 = vadd.f32 0.0, %v5397
        %v5399 = vpop.f32.mrb[0].mxu0
        %5400 = vmatprep.mubr.f32.mxu0 0.0
        %v5401 = vand.u32 %v5269, 4294901760
        %v5402 = vsub.f32 %v5269, %v5401
        %v5403 = vand.u32 %v5402, 4294901760
        %v5404 = vsub.f32 %v5402, %v5403
        %v5405 = vand.u32 %v5404, 4294901760
        %5406 = vmatmul.mubr.f32.gmra.mrb[0].mxu0 %v5405
        %v5407 = vpop.f32.mrb[0].mxu0
        %v5408 = vadd.f32 0.0, %v5407
        %v5409 = vpop.f32.mrb[0].mxu0
        %5410 = vmatprep.mubr.f32.mxu0 0.0
        %v5411 = vand.u32 %v5272, 4294901760
        %v5412 = vsub.f32 %v5272, %v5411
        %v5413 = vand.u32 %v5412, 4294901760
        %v5414 = vsub.f32 %v5412, %v5413
        %v5415 = vand.u32 %v5414, 4294901760
        %5416 = vmatmul.mubr.f32.gmra.mrb[0].mxu0 %v5415
        %v5417 = vpop.f32.mrb[0].mxu0
        %v5418 = vadd.f32 0.0, %v5417
        %v5419 = vpop.f32.mrb[0].mxu0
        %5420 = vdwg.mxu0
        %5421 = vmatprep.subr.mxu0 0.0
        %v5422 = vand.u32 %v5247, 4294901760
        %v5423 = vsub.f32 %v5247, %v5422
        %v5424 = vand.u32 %v5423, 4294901760
        %v5425 = vsub.f32 %v5423, %v5424
        %v5426 = vand.u32 %v5425, 4294901760
        %5427 = vmatpush1.msra.mxu0 %v5426
        %5428 = vmatprep.subr.mxu0 0.0
        %v5429 = vand.u32 %v5248, 4294901760
        %v5430 = vsub.f32 %v5248, %v5429
        %v5431 = vand.u32 %v5430, 4294901760
        %v5432 = vsub.f32 %v5430, %v5431
        %v5433 = vand.u32 %v5432, 4294901760
        %5434 = vmatpush1.msra.mxu0 %v5433
        %5435 = vmatprep.subr.mxu0 0.0
        %5436 = vmatpush1.msra.mxu0 0.0
        %5437 = vmatprep.subr.mxu0 0.0
        %5438 = vmatpush1.msra.mxu0 0.0
        %5439 = vmatprep.subr.mxu0 0.0
        %5440 = vmatpush1.msra.mxu0 0.0
        %5441 = vmatprep.subr.mxu0 0.0
        %5442 = vmatpush1.msra.mxu0 0.0
        %5443 = vmatprep.subr.mxu0 0.0
        %5444 = vmatpush1.msra.mxu0 0.0
        %5445 = vmatprep.subr.mxu0 0.0
        %5446 = vmatpush1.msra.mxu0 0.0
        %5447 = vmatprep.subr.mxu0 0.0
        %5448 = vmatpush1.msra.mxu0 0.0
        %5449 = vmatprep.subr.mxu0 0.0
        %5450 = vmatpush1.msra.mxu0 0.0
        %5451 = vmatprep.subr.mxu0 0.0
        %5452 = vmatpush1.msra.mxu0 0.0
        %5453 = vmatprep.subr.mxu0 0.0
        %5454 = vmatpush1.msra.mxu0 0.0
        %5455 = vmatprep.subr.mxu0 0.0
        %5456 = vmatpush1.msra.mxu0 0.0
        %5457 = vmatprep.subr.mxu0 0.0
        %5458 = vmatpush1.msra.mxu0 0.0
        %5459 = vmatprep.subr.mxu0 0.0
        %5460 = vmatpush1.msra.mxu0 0.0
        %5461 = vmatprep.subr.mxu0 0.0
        %5462 = vmatpush1.msra.mxu0 0.0
        %5463 = vmatprep.subr.mxu0 0.0
        %5464 = vmatpush1.msra.mxu0 0.0
        %5465 = vmatprep.subr.mxu0 0.0
        %5466 = vmatpush1.msra.mxu0 0.0
        %5467 = vmatprep.subr.mxu0 0.0
        %5468 = vmatpush1.msra.mxu0 0.0
        %5469 = vmatprep.subr.mxu0 0.0
        %5470 = vmatpush1.msra.mxu0 0.0
        %5471 = vmatprep.subr.mxu0 0.0
        %5472 = vmatpush1.msra.mxu0 0.0
        %5473 = vmatprep.subr.mxu0 0.0
        %5474 = vmatpush1.msra.mxu0 0.0
        %5475 = vmatprep.subr.mxu0 0.0
        %5476 = vmatpush1.msra.mxu0 0.0
        %5477 = vmatprep.subr.mxu0 0.0
        %5478 = vmatpush1.msra.mxu0 0.0
        %5479 = vmatprep.subr.mxu0 0.0
        %5480 = vmatpush1.msra.mxu0 0.0
        %5481 = vmatprep.subr.mxu0 0.0
        %5482 = vmatpush1.msra.mxu0 0.0
        %5483 = vmatprep.subr.mxu0 0.0
        %5484 = vmatpush1.msra.mxu0 0.0
        %5485 = vmatprep.subr.mxu0 0.0
        %5486 = vmatpush1.msra.mxu0 0.0
        %5487 = vmatprep.subr.mxu0 0.0
        %5488 = vmatpush1.msra.mxu0 0.0
        %5489 = vmatprep.subr.mxu0 0.0
        %5490 = vmatpush1.msra.mxu0 0.0
        %5491 = vmatprep.subr.mxu0 0.0
        %5492 = vmatpush1.msra.mxu0 0.0
        %5493 = vmatprep.subr.mxu0 0.0
        %5494 = vmatpush1.msra.mxu0 0.0
        %5495 = vmatprep.mubr.f32.mxu0 0.0
        %v5496 = vand.u32 %v5251, 4294901760
        %5497 = vmatmul.mubr.f32.gmra.mrb[0].mxu0 %v5496
        %v5498 = vpop.f32.mrb[0].mxu0
        %v5499 = vadd.f32 %v5348, %v5498
        %v5500 = vpop.f32.mrb[0].mxu0
        %5501 = vmatprep.mubr.f32.mxu0 0.0
        %v5502 = vand.u32 %v5254, 4294901760
        %5503 = vmatmul.mubr.f32.gmra.mrb[0].mxu0 %v5502
        %v5504 = vpop.f32.mrb[0].mxu0
        %v5505 = vadd.f32 %v5358, %v5504
        %v5506 = vpop.f32.mrb[0].mxu0
        %5507 = vmatprep.mubr.f32.mxu0 0.0
        %v5508 = vand.u32 %v5257, 4294901760
        %5509 = vmatmul.mubr.f32.gmra.mrb[0].mxu0 %v5508
        %v5510 = vpop.f32.mrb[0].mxu0
        %v5511 = vadd.f32 %v5368, %v5510
        %v5512 = vpop.f32.mrb[0].mxu0
        %5513 = vmatprep.mubr.f32.mxu0 0.0
        %v5514 = vand.u32 %v5260, 4294901760
        %5515 = vmatmul.mubr.f32.gmra.mrb[0].mxu0 %v5514
        %v5516 = vpop.f32.mrb[0].mxu0
        %v5517 = vadd.f32 %v5378, %v5516
        %v5518 = vpop.f32.mrb[0].mxu0
        %5519 = vmatprep.mubr.f32.mxu0 0.0
        %v5520 = vand.u32 %v5263, 4294901760
        %5521 = vmatmul.mubr.f32.gmra.mrb[0].mxu0 %v5520
        %v5522 = vpop.f32.mrb[0].mxu0
        %v5523 = vadd.f32 %v5388, %v5522
        %v5524 = vpop.f32.mrb[0].mxu0
        %5525 = vmatprep.mubr.f32.mxu0 0.0
        %v5526 = vand.u32 %v5266, 4294901760
        %5527 = vmatmul.mubr.f32.gmra.mrb[0].mxu0 %v5526
        %v5528 = vpop.f32.mrb[0].mxu0
        %v5529 = vadd.f32 %v5398, %v5528
        %v5530 = vpop.f32.mrb[0].mxu0
        %5531 = vmatprep.mubr.f32.mxu0 0.0
        %v5532 = vand.u32 %v5269, 4294901760
        %5533 = vmatmul.mubr.f32.gmra.mrb[0].mxu0 %v5532
        %v5534 = vpop.f32.mrb[0].mxu0
        %v5535 = vadd.f32 %v5408, %v5534
        %v5536 = vpop.f32.mrb[0].mxu0
        %5537 = vmatprep.mubr.f32.mxu0 0.0
        %v5538 = vand.u32 %v5272, 4294901760
        %5539 = vmatmul.mubr.f32.gmra.mrb[0].mxu0 %v5538
        %v5540 = vpop.f32.mrb[0].mxu0
        %v5541 = vadd.f32 %v5418, %v5540
        %v5542 = vpop.f32.mrb[0].mxu0
        %5543 = vdwg.mxu0
        %5544 = vmatprep.subr.mxu0 0.0
        %v5545 = vand.u32 %v5247, 4294901760
        %v5546 = vsub.f32 %v5247, %v5545
        %5547 = vmatpush1.msra.mxu0 %v5546
        %5548 = vmatprep.subr.mxu0 0.0
        %v5549 = vand.u32 %v5248, 4294901760
        %v5550 = vsub.f32 %v5248, %v5549
        %5551 = vmatpush1.msra.mxu0 %v5550
        %5552 = vmatprep.subr.mxu0 0.0
        %5553 = vmatpush1.msra.mxu0 0.0
        %5554 = vmatprep.subr.mxu0 0.0
        %5555 = vmatpush1.msra.mxu0 0.0
        %5556 = vmatprep.subr.mxu0 0.0
        %5557 = vmatpush1.msra.mxu0 0.0
        %5558 = vmatprep.subr.mxu0 0.0
        %5559 = vmatpush1.msra.mxu0 0.0
        %5560 = vmatprep.subr.mxu0 0.0
        %5561 = vmatpush1.msra.mxu0 0.0
        %5562 = vmatprep.subr.mxu0 0.0
        %5563 = vmatpush1.msra.mxu0 0.0
        %5564 = vmatprep.subr.mxu0 0.0
        %5565 = vmatpush1.msra.mxu0 0.0
        %5566 = vmatprep.subr.mxu0 0.0
        %5567 = vmatpush1.msra.mxu0 0.0
        %5568 = vmatprep.subr.mxu0 0.0
        %5569 = vmatpush1.msra.mxu0 0.0
        %5570 = vmatprep.subr.mxu0 0.0
        %5571 = vmatpush1.msra.mxu0 0.0
        %5572 = vmatprep.subr.mxu0 0.0
        %5573 = vmatpush1.msra.mxu0 0.0
        %5574 = vmatprep.subr.mxu0 0.0
        %5575 = vmatpush1.msra.mxu0 0.0
        %5576 = vmatprep.subr.mxu0 0.0
        %5577 = vmatpush1.msra.mxu0 0.0
        %5578 = vmatprep.subr.mxu0 0.0
        %5579 = vmatpush1.msra.mxu0 0.0
        %5580 = vmatprep.subr.mxu0 0.0
        %5581 = vmatpush1.msra.mxu0 0.0
        %5582 = vmatprep.subr.mxu0 0.0
        %5583 = vmatpush1.msra.mxu0 0.0
        %5584 = vmatprep.subr.mxu0 0.0
        %5585 = vmatpush1.msra.mxu0 0.0
        %5586 = vmatprep.subr.mxu0 0.0
        %5587 = vmatpush1.msra.mxu0 0.0
        %5588 = vmatprep.subr.mxu0 0.0
        %5589 = vmatpush1.msra.mxu0 0.0
        %5590 = vmatprep.subr.mxu0 0.0
        %5591 = vmatpush1.msra.mxu0 0.0
        %5592 = vmatprep.subr.mxu0 0.0
        %5593 = vmatpush1.msra.mxu0 0.0
        %5594 = vmatprep.subr.mxu0 0.0
        %5595 = vmatpush1.msra.mxu0 0.0
        %5596 = vmatprep.subr.mxu0 0.0
        %5597 = vmatpush1.msra.mxu0 0.0
        %5598 = vmatprep.subr.mxu0 0.0
        %5599 = vmatpush1.msra.mxu0 0.0
        %5600 = vmatprep.subr.mxu0 0.0
        %5601 = vmatpush1.msra.mxu0 0.0
        %5602 = vmatprep.subr.mxu0 0.0
        %5603 = vmatpush1.msra.mxu0 0.0
        %5604 = vmatprep.subr.mxu0 0.0
        %5605 = vmatpush1.msra.mxu0 0.0
        %5606 = vmatprep.subr.mxu0 0.0
        %5607 = vmatpush1.msra.mxu0 0.0
        %5608 = vmatprep.subr.mxu0 0.0
        %5609 = vmatpush1.msra.mxu0 0.0
        %5610 = vmatprep.subr.mxu0 0.0
        %5611 = vmatpush1.msra.mxu0 0.0
        %5612 = vmatprep.mubr.f32.mxu0 0.0
        %v5613 = vand.u32 %v5251, 4294901760
        %v5614 = vsub.f32 %v5251, %v5613
        %5615 = vmatmul.mubr.f32.gmra.mrb[0].mxu0 %v5614
        %v5616 = vpop.f32.mrb[0].mxu0
        %v5617 = vadd.f32 %v5499, %v5616
        %v5618 = vpop.f32.mrb[0].mxu0
        %5619 = vmatprep.mubr.f32.mxu0 0.0
        %v5620 = vand.u32 %v5254, 4294901760
        %v5621 = vsub.f32 %v5254, %v5620
        %5622 = vmatmul.mubr.f32.gmra.mrb[0].mxu0 %v5621
        %v5623 = vpop.f32.mrb[0].mxu0
        %v5624 = vadd.f32 %v5505, %v5623
        %v5625 = vpop.f32.mrb[0].mxu0
        %5626 = vmatprep.mubr.f32.mxu0 0.0
        %v5627 = vand.u32 %v5257, 4294901760
        %v5628 = vsub.f32 %v5257, %v5627
        %5629 = vmatmul.mubr.f32.gmra.mrb[0].mxu0 %v5628
        %v5630 = vpop.f32.mrb[0].mxu0
        %v5631 = vadd.f32 %v5511, %v5630
        %v5632 = vpop.f32.mrb[0].mxu0
        %5633 = vmatprep.mubr.f32.mxu0 0.0
        %v5634 = vand.u32 %v5260, 4294901760
        %v5635 = vsub.f32 %v5260, %v5634
        %5636 = vmatmul.mubr.f32.gmra.mrb[0].mxu0 %v5635
        %v5637 = vpop.f32.mrb[0].mxu0
        %v5638 = vadd.f32 %v5517, %v5637
        %v5639 = vpop.f32.mrb[0].mxu0
        %5640 = vmatprep.mubr.f32.mxu0 0.0
        %v5641 = vand.u32 %v5263, 4294901760
        %v5642 = vsub.f32 %v5263, %v5641
        %5643 = vmatmul.mubr.f32.gmra.mrb[0].mxu0 %v5642
        %v5644 = vpop.f32.mrb[0].mxu0
        %v5645 = vadd.f32 %v5523, %v5644
        %v5646 = vpop.f32.mrb[0].mxu0
        %5647 = vmatprep.mubr.f32.mxu0 0.0
        %v5648 = vand.u32 %v5266, 4294901760
        %v5649 = vsub.f32 %v5266, %v5648
        %5650 = vmatmul.mubr.f32.gmra.mrb[0].mxu0 %v5649
        %v5651 = vpop.f32.mrb[0].mxu0
        %v5652 = vadd.f32 %v5529, %v5651
        %v5653 = vpop.f32.mrb[0].mxu0
        %5654 = vmatprep.mubr.f32.mxu0 0.0
        %v5655 = vand.u32 %v5269, 4294901760
        %v5656 = vsub.f32 %v5269, %v5655
        %5657 = vmatmul.mubr.f32.gmra.mrb[0].mxu0 %v5656
        %v5658 = vpop.f32.mrb[0].mxu0
        %v5659 = vadd.f32 %v5535, %v5658
        %v5660 = vpop.f32.mrb[0].mxu0
        %5661 = vmatprep.mubr.f32.mxu0 0.0
        %v5662 = vand.u32 %v5272, 4294901760
        %v5663 = vsub.f32 %v5272, %v5662
        %5664 = vmatmul.mubr.f32.gmra.mrb[0].mxu0 %v5663
        %v5665 = vpop.f32.mrb[0].mxu0
        %v5666 = vadd.f32 %v5541, %v5665
        %v5667 = vpop.f32.mrb[0].mxu0
        %5668 = vdwg.mxu0
        %5669 = vmatprep.subr.mxu0 0.0
        %v5670 = vand.u32 %v5247, 4294901760
        %5671 = vmatpush1.msra.mxu0 %v5670
        %5672 = vmatprep.subr.mxu0 0.0
        %v5673 = vand.u32 %v5248, 4294901760
        %5674 = vmatpush1.msra.mxu0 %v5673
        %5675 = vmatprep.subr.mxu0 0.0
        %5676 = vmatpush1.msra.mxu0 0.0
        %5677 = vmatprep.subr.mxu0 0.0
        %5678 = vmatpush1.msra.mxu0 0.0
        %5679 = vmatprep.subr.mxu0 0.0
        %5680 = vmatpush1.msra.mxu0 0.0
        %5681 = vmatprep.subr.mxu0 0.0
        %5682 = vmatpush1.msra.mxu0 0.0
        %5683 = vmatprep.subr.mxu0 0.0
        %5684 = vmatpush1.msra.mxu0 0.0
        %5685 = vmatprep.subr.mxu0 0.0
        %5686 = vmatpush1.msra.mxu0 0.0
        %5687 = vmatprep.subr.mxu0 0.0
        %5688 = vmatpush1.msra.mxu0 0.0
        %5689 = vmatprep.subr.mxu0 0.0
        %5690 = vmatpush1.msra.mxu0 0.0
        %5691 = vmatprep.subr.mxu0 0.0
        %5692 = vmatpush1.msra.mxu0 0.0
        %5693 = vmatprep.subr.mxu0 0.0
        %5694 = vmatpush1.msra.mxu0 0.0
        %5695 = vmatprep.subr.mxu0 0.0
        %5696 = vmatpush1.msra.mxu0 0.0
        %5697 = vmatprep.subr.mxu0 0.0
        %5698 = vmatpush1.msra.mxu0 0.0
        %5699 = vmatprep.subr.mxu0 0.0
        %5700 = vmatpush1.msra.mxu0 0.0
        %5701 = vmatprep.subr.mxu0 0.0
        %5702 = vmatpush1.msra.mxu0 0.0
        %5703 = vmatprep.subr.mxu0 0.0
        %5704 = vmatpush1.msra.mxu0 0.0
        %5705 = vmatprep.subr.mxu0 0.0
        %5706 = vmatpush1.msra.mxu0 0.0
        %5707 = vmatprep.subr.mxu0 0.0
        %5708 = vmatpush1.msra.mxu0 0.0
        %5709 = vmatprep.subr.mxu0 0.0
        %5710 = vmatpush1.msra.mxu0 0.0
        %5711 = vmatprep.subr.mxu0 0.0
        %5712 = vmatpush1.msra.mxu0 0.0
        %5713 = vmatprep.subr.mxu0 0.0
        %5714 = vmatpush1.msra.mxu0 0.0
        %5715 = vmatprep.subr.mxu0 0.0
        %5716 = vmatpush1.msra.mxu0 0.0
        %5717 = vmatprep.subr.mxu0 0.0
        %5718 = vmatpush1.msra.mxu0 0.0
        %5719 = vmatprep.subr.mxu0 0.0
        %5720 = vmatpush1.msra.mxu0 0.0
        %5721 = vmatprep.subr.mxu0 0.0
        %5722 = vmatpush1.msra.mxu0 0.0
        %5723 = vmatprep.subr.mxu0 0.0
        %5724 = vmatpush1.msra.mxu0 0.0
        %5725 = vmatprep.subr.mxu0 0.0
        %5726 = vmatpush1.msra.mxu0 0.0
        %5727 = vmatprep.subr.mxu0 0.0
        %5728 = vmatpush1.msra.mxu0 0.0
        %5729 = vmatprep.subr.mxu0 0.0
        %5730 = vmatpush1.msra.mxu0 0.0
        %5731 = vmatprep.subr.mxu0 0.0
        %5732 = vmatpush1.msra.mxu0 0.0
        %5733 = vmatprep.subr.mxu0 0.0
        %5734 = vmatpush1.msra.mxu0 0.0
        %5735 = vmatprep.mubr.f32.mxu0 0.0
        %v5736 = vand.u32 %v5251, 4294901760
        %v5737 = vsub.f32 %v5251, %v5736
        %v5738 = vand.u32 %v5737, 4294901760
        %5739 = vmatmul.mubr.f32.gmra.mrb[0].mxu0 %v5738
        %v5740 = vpop.f32.mrb[0].mxu0
        %v5741 = vadd.f32 %v5617, %v5740
        %v5742 = vpop.f32.mrb[0].mxu0
        %5743 = vmatprep.mubr.f32.mxu0 0.0
        %v5744 = vand.u32 %v5254, 4294901760
        %v5745 = vsub.f32 %v5254, %v5744
        %v5746 = vand.u32 %v5745, 4294901760
        %5747 = vmatmul.mubr.f32.gmra.mrb[0].mxu0 %v5746
        %v5748 = vpop.f32.mrb[0].mxu0
        %v5749 = vadd.f32 %v5624, %v5748
        %v5750 = vpop.f32.mrb[0].mxu0
        %5751 = vmatprep.mubr.f32.mxu0 0.0
        %v5752 = vand.u32 %v5257, 4294901760
        %v5753 = vsub.f32 %v5257, %v5752
        %v5754 = vand.u32 %v5753, 4294901760
        %5755 = vmatmul.mubr.f32.gmra.mrb[0].mxu0 %v5754
        %v5756 = vpop.f32.mrb[0].mxu0
        %v5757 = vadd.f32 %v5631, %v5756
        %v5758 = vpop.f32.mrb[0].mxu0
        %5759 = vmatprep.mubr.f32.mxu0 0.0
        %v5760 = vand.u32 %v5260, 4294901760
        %v5761 = vsub.f32 %v5260, %v5760
        %v5762 = vand.u32 %v5761, 4294901760
        %5763 = vmatmul.mubr.f32.gmra.mrb[0].mxu0 %v5762
        %v5764 = vpop.f32.mrb[0].mxu0
        %v5765 = vadd.f32 %v5638, %v5764
        %v5766 = vpop.f32.mrb[0].mxu0
        %5767 = vmatprep.mubr.f32.mxu0 0.0
        %v5768 = vand.u32 %v5263, 4294901760
        %v5769 = vsub.f32 %v5263, %v5768
        %v5770 = vand.u32 %v5769, 4294901760
        %5771 = vmatmul.mubr.f32.gmra.mrb[0].mxu0 %v5770
        %v5772 = vpop.f32.mrb[0].mxu0
        %v5773 = vadd.f32 %v5645, %v5772
        %v5774 = vpop.f32.mrb[0].mxu0
        %5775 = vmatprep.mubr.f32.mxu0 0.0
        %v5776 = vand.u32 %v5266, 4294901760
        %v5777 = vsub.f32 %v5266, %v5776
        %v5778 = vand.u32 %v5777, 4294901760
        %5779 = vmatmul.mubr.f32.gmra.mrb[0].mxu0 %v5778
        %v5780 = vpop.f32.mrb[0].mxu0
        %v5781 = vadd.f32 %v5652, %v5780
        %v5782 = vpop.f32.mrb[0].mxu0
        %5783 = vmatprep.mubr.f32.mxu0 0.0
        %v5784 = vand.u32 %v5269, 4294901760
        %v5785 = vsub.f32 %v5269, %v5784
        %v5786 = vand.u32 %v5785, 4294901760
        %5787 = vmatmul.mubr.f32.gmra.mrb[0].mxu0 %v5786
        %v5788 = vpop.f32.mrb[0].mxu0
        %v5789 = vadd.f32 %v5659, %v5788
        %v5790 = vpop.f32.mrb[0].mxu0
        %5791 = vmatprep.mubr.f32.mxu0 0.0
        %v5792 = vand.u32 %v5272, 4294901760
        %v5793 = vsub.f32 %v5272, %v5792
        %v5794 = vand.u32 %v5793, 4294901760
        %5795 = vmatmul.mubr.f32.gmra.mrb[0].mxu0 %v5794
        %v5796 = vpop.f32.mrb[0].mxu0
        %v5797 = vadd.f32 %v5666, %v5796
        %v5798 = vpop.f32.mrb[0].mxu0
        %5799 = vdwg.mxu0
        %5800 = vmatprep.subr.mxu0 0.0
        %v5801 = vand.u32 %v5247, 4294901760
        %v5802 = vsub.f32 %v5247, %v5801
        %v5803 = vand.u32 %v5802, 4294901760
        %5804 = vmatpush1.msra.mxu0 %v5803
        %5805 = vmatprep.subr.mxu0 0.0
        %v5806 = vand.u32 %v5248, 4294901760
        %v5807 = vsub.f32 %v5248, %v5806
        %v5808 = vand.u32 %v5807, 4294901760
        %5809 = vmatpush1.msra.mxu0 %v5808
        %5810 = vmatprep.subr.mxu0 0.0
        %5811 = vmatpush1.msra.mxu0 0.0
        %5812 = vmatprep.subr.mxu0 0.0
        %5813 = vmatpush1.msra.mxu0 0.0
        %5814 = vmatprep.subr.mxu0 0.0
        %5815 = vmatpush1.msra.mxu0 0.0
        %5816 = vmatprep.subr.mxu0 0.0
        %5817 = vmatpush1.msra.mxu0 0.0
        %5818 = vmatprep.subr.mxu0 0.0
        %5819 = vmatpush1.msra.mxu0 0.0
        %5820 = vmatprep.subr.mxu0 0.0
        %5821 = vmatpush1.msra.mxu0 0.0
        %5822 = vmatprep.subr.mxu0 0.0
        %5823 = vmatpush1.msra.mxu0 0.0
        %5824 = vmatprep.subr.mxu0 0.0
        %5825 = vmatpush1.msra.mxu0 0.0
        %5826 = vmatprep.subr.mxu0 0.0
        %5827 = vmatpush1.msra.mxu0 0.0
        %5828 = vmatprep.subr.mxu0 0.0
        %5829 = vmatpush1.msra.mxu0 0.0
        %5830 = vmatprep.subr.mxu0 0.0
        %5831 = vmatpush1.msra.mxu0 0.0
        %5832 = vmatprep.subr.mxu0 0.0
        %5833 = vmatpush1.msra.mxu0 0.0
        %5834 = vmatprep.subr.mxu0 0.0
        %5835 = vmatpush1.msra.mxu0 0.0
        %5836 = vmatprep.subr.mxu0 0.0
        %5837 = vmatpush1.msra.mxu0 0.0
        %5838 = vmatprep.subr.mxu0 0.0
        %5839 = vmatpush1.msra.mxu0 0.0
        %5840 = vmatprep.subr.mxu0 0.0
        %5841 = vmatpush1.msra.mxu0 0.0
        %5842 = vmatprep.subr.mxu0 0.0
        %5843 = vmatpush1.msra.mxu0 0.0
        %5844 = vmatprep.subr.mxu0 0.0
        %5845 = vmatpush1.msra.mxu0 0.0
        %5846 = vmatprep.subr.mxu0 0.0
        %5847 = vmatpush1.msra.mxu0 0.0
        %5848 = vmatprep.subr.mxu0 0.0
        %5849 = vmatpush1.msra.mxu0 0.0
        %5850 = vmatprep.subr.mxu0 0.0
        %5851 = vmatpush1.msra.mxu0 0.0
        %5852 = vmatprep.subr.mxu0 0.0
        %5853 = vmatpush1.msra.mxu0 0.0
        %5854 = vmatprep.subr.mxu0 0.0
        %5855 = vmatpush1.msra.mxu0 0.0
        %5856 = vmatprep.subr.mxu0 0.0
        %5857 = vmatpush1.msra.mxu0 0.0
        %5858 = vmatprep.subr.mxu0 0.0
        %5859 = vmatpush1.msra.mxu0 0.0
        %5860 = vmatprep.subr.mxu0 0.0
        %5861 = vmatpush1.msra.mxu0 0.0
        %5862 = vmatprep.subr.mxu0 0.0
        %5863 = vmatpush1.msra.mxu0 0.0
        %5864 = vmatprep.subr.mxu0 0.0
        %5865 = vmatpush1.msra.mxu0 0.0
        %5866 = vmatprep.subr.mxu0 0.0
        %5867 = vmatpush1.msra.mxu0 0.0
        %5868 = vmatprep.subr.mxu0 0.0
        %5869 = vmatpush1.msra.mxu0 0.0
        %5870 = vmatprep.mubr.f32.mxu0 0.0
        %v5871 = vand.u32 %v5251, 4294901760
        %5872 = vmatmul.mubr.f32.gmra.mrb[0].mxu0 %v5871
        %v5873 = vpop.f32.mrb[0].mxu0
        %v5874 = vadd.f32 %v5741, %v5873
        %v5875 = vpop.f32.mrb[0].mxu0
        %5876 = vmatprep.mubr.f32.mxu0 0.0
        %v5877 = vand.u32 %v5254, 4294901760
        %5878 = vmatmul.mubr.f32.gmra.mrb[0].mxu0 %v5877
        %v5879 = vpop.f32.mrb[0].mxu0
        %v5880 = vadd.f32 %v5749, %v5879
        %v5881 = vpop.f32.mrb[0].mxu0
        %5882 = vmatprep.mubr.f32.mxu0 0.0
        %v5883 = vand.u32 %v5257, 4294901760
        %5884 = vmatmul.mubr.f32.gmra.mrb[0].mxu0 %v5883
        %v5885 = vpop.f32.mrb[0].mxu0
        %v5886 = vadd.f32 %v5757, %v5885
        %v5887 = vpop.f32.mrb[0].mxu0
        %5888 = vmatprep.mubr.f32.mxu0 0.0
        %v5889 = vand.u32 %v5260, 4294901760
        %5890 = vmatmul.mubr.f32.gmra.mrb[0].mxu0 %v5889
        %v5891 = vpop.f32.mrb[0].mxu0
        %v5892 = vadd.f32 %v5765, %v5891
        %v5893 = vpop.f32.mrb[0].mxu0
        %5894 = vmatprep.mubr.f32.mxu0 0.0
        %v5895 = vand.u32 %v5263, 4294901760
        %5896 = vmatmul.mubr.f32.gmra.mrb[0].mxu0 %v5895
        %v5897 = vpop.f32.mrb[0].mxu0
        %v5898 = vadd.f32 %v5773, %v5897
        %v5899 = vpop.f32.mrb[0].mxu0
        %5900 = vmatprep.mubr.f32.mxu0 0.0
        %v5901 = vand.u32 %v5266, 4294901760
        %5902 = vmatmul.mubr.f32.gmra.mrb[0].mxu0 %v5901
        %v5903 = vpop.f32.mrb[0].mxu0
        %v5904 = vadd.f32 %v5781, %v5903
        %v5905 = vpop.f32.mrb[0].mxu0
        %5906 = vmatprep.mubr.f32.mxu0 0.0
        %v5907 = vand.u32 %v5269, 4294901760
        %5908 = vmatmul.mubr.f32.gmra.mrb[0].mxu0 %v5907
        %v5909 = vpop.f32.mrb[0].mxu0
        %v5910 = vadd.f32 %v5789, %v5909
        %v5911 = vpop.f32.mrb[0].mxu0
        %5912 = vmatprep.mubr.f32.mxu0 0.0
        %v5913 = vand.u32 %v5272, 4294901760
        %5914 = vmatmul.mubr.f32.gmra.mrb[0].mxu0 %v5913
        %v5915 = vpop.f32.mrb[0].mxu0
        %v5916 = vadd.f32 %v5797, %v5915
        %v5917 = vpop.f32.mrb[0].mxu0
        %5918 = vdwg.mxu0
        %5919 = vmatprep.subr.mxu0 0.0
        %v5920 = vand.u32 %v5247, 4294901760
        %5921 = vmatpush1.msra.mxu0 %v5920
        %5922 = vmatprep.subr.mxu0 0.0
        %v5923 = vand.u32 %v5248, 4294901760
        %5924 = vmatpush1.msra.mxu0 %v5923
        %5925 = vmatprep.subr.mxu0 0.0
        %5926 = vmatpush1.msra.mxu0 0.0
        %5927 = vmatprep.subr.mxu0 0.0
        %5928 = vmatpush1.msra.mxu0 0.0
        %5929 = vmatprep.subr.mxu0 0.0
        %5930 = vmatpush1.msra.mxu0 0.0
        %5931 = vmatprep.subr.mxu0 0.0
        %5932 = vmatpush1.msra.mxu0 0.0
        %5933 = vmatprep.subr.mxu0 0.0
        %5934 = vmatpush1.msra.mxu0 0.0
        %5935 = vmatprep.subr.mxu0 0.0
        %5936 = vmatpush1.msra.mxu0 0.0
        %5937 = vmatprep.subr.mxu0 0.0
        %5938 = vmatpush1.msra.mxu0 0.0
        %5939 = vmatprep.subr.mxu0 0.0
        %5940 = vmatpush1.msra.mxu0 0.0
        %5941 = vmatprep.subr.mxu0 0.0
        %5942 = vmatpush1.msra.mxu0 0.0
        %5943 = vmatprep.subr.mxu0 0.0
        %5944 = vmatpush1.msra.mxu0 0.0
        %5945 = vmatprep.subr.mxu0 0.0
        %5946 = vmatpush1.msra.mxu0 0.0
        %5947 = vmatprep.subr.mxu0 0.0
        %5948 = vmatpush1.msra.mxu0 0.0
        %5949 = vmatprep.subr.mxu0 0.0
        %5950 = vmatpush1.msra.mxu0 0.0
        %5951 = vmatprep.subr.mxu0 0.0
        %5952 = vmatpush1.msra.mxu0 0.0
        %5953 = vmatprep.subr.mxu0 0.0
        %5954 = vmatpush1.msra.mxu0 0.0
        %5955 = vmatprep.subr.mxu0 0.0
        %5956 = vmatpush1.msra.mxu0 0.0
        %5957 = vmatprep.subr.mxu0 0.0
        %5958 = vmatpush1.msra.mxu0 0.0
        %5959 = vmatprep.subr.mxu0 0.0
        %5960 = vmatpush1.msra.mxu0 0.0
        %5961 = vmatprep.subr.mxu0 0.0
        %5962 = vmatpush1.msra.mxu0 0.0
        %5963 = vmatprep.subr.mxu0 0.0
        %5964 = vmatpush1.msra.mxu0 0.0
        %5965 = vmatprep.subr.mxu0 0.0
        %5966 = vmatpush1.msra.mxu0 0.0
        %5967 = vmatprep.subr.mxu0 0.0
        %5968 = vmatpush1.msra.mxu0 0.0
        %5969 = vmatprep.subr.mxu0 0.0
        %5970 = vmatpush1.msra.mxu0 0.0
        %5971 = vmatprep.subr.mxu0 0.0
        %5972 = vmatpush1.msra.mxu0 0.0
        %5973 = vmatprep.subr.mxu0 0.0
        %5974 = vmatpush1.msra.mxu0 0.0
        %5975 = vmatprep.subr.mxu0 0.0
        %5976 = vmatpush1.msra.mxu0 0.0
        %5977 = vmatprep.subr.mxu0 0.0
        %5978 = vmatpush1.msra.mxu0 0.0
        %5979 = vmatprep.subr.mxu0 0.0
        %5980 = vmatpush1.msra.mxu0 0.0
        %5981 = vmatprep.subr.mxu0 0.0
        %5982 = vmatpush1.msra.mxu0 0.0
        %5983 = vmatprep.subr.mxu0 0.0
        %5984 = vmatpush1.msra.mxu0 0.0
        %5985 = vmatprep.mubr.f32.mxu0 0.0
        %v5986 = vand.u32 %v5251, 4294901760
        %5987 = vmatmul.mubr.f32.gmra.mrb[0].mxu0 %v5986
        %v5988 = vpop.f32.mrb[0].mxu0
        %v5989 = vadd.f32 %v5874, %v5988
        %v5990 = vpop.f32.mrb[0].mxu0
        %5991 = vmatprep.mubr.f32.mxu0 0.0
        %v5992 = vand.u32 %v5254, 4294901760
        %5993 = vmatmul.mubr.f32.gmra.mrb[0].mxu0 %v5992
        %v5994 = vpop.f32.mrb[0].mxu0
        %v5995 = vadd.f32 %v5880, %v5994
        %v5996 = vpop.f32.mrb[0].mxu0
        %5997 = vmatprep.mubr.f32.mxu0 0.0
        %v5998 = vand.u32 %v5257, 4294901760
        %5999 = vmatmul.mubr.f32.gmra.mrb[0].mxu0 %v5998
        %v6000 = vpop.f32.mrb[0].mxu0
        %v6001 = vadd.f32 %v5886, %v6000
        %v6002 = vpop.f32.mrb[0].mxu0
        %6003 = vmatprep.mubr.f32.mxu0 0.0
        %v6004 = vand.u32 %v5260, 4294901760
        %6005 = vmatmul.mubr.f32.gmra.mrb[0].mxu0 %v6004
        %v6006 = vpop.f32.mrb[0].mxu0
        %v6007 = vadd.f32 %v5892, %v6006
        %v6008 = vpop.f32.mrb[0].mxu0
        %6009 = vmatprep.mubr.f32.mxu0 0.0
        %v6010 = vand.u32 %v5263, 4294901760
        %6011 = vmatmul.mubr.f32.gmra.mrb[0].mxu0 %v6010
        %v6012 = vpop.f32.mrb[0].mxu0
        %v6013 = vadd.f32 %v5898, %v6012
        %v6014 = vpop.f32.mrb[0].mxu0
        %6015 = vmatprep.mubr.f32.mxu0 0.0
        %v6016 = vand.u32 %v5266, 4294901760
        %6017 = vmatmul.mubr.f32.gmra.mrb[0].mxu0 %v6016
        %v6018 = vpop.f32.mrb[0].mxu0
        %v6019 = vadd.f32 %v5904, %v6018
        %v6020 = vpop.f32.mrb[0].mxu0
        %6021 = vmatprep.mubr.f32.mxu0 0.0
        %v6022 = vand.u32 %v5269, 4294901760
        %6023 = vmatmul.mubr.f32.gmra.mrb[0].mxu0 %v6022
        %v6024 = vpop.f32.mrb[0].mxu0
        %v6025 = vadd.f32 %v5910, %v6024
        %v6026 = vpop.f32.mrb[0].mxu0
        %6027 = vmatprep.mubr.f32.mxu0 0.0
        %v6028 = vand.u32 %v5272, 4294901760
        %6029 = vmatmul.mubr.f32.gmra.mrb[0].mxu0 %v6028
        %v6030 = vpop.f32.mrb[0].mxu0
        %v6031 = vadd.f32 %v5916, %v6030
        %v6032 = vpop.f32.mrb[0].mxu0
        %6033 = vdwg.mxu0
        %6034 = vst [vmem:[%s302] sm:$0xff] %v5989
        %6035 = vst [vmem:[%s302 + $0x8] sm:$0xff] %v5995
        %6036 = vst [vmem:[%s302 + $0x10] sm:$0xff] %v6001
        %6037 = vst [vmem:[%s302 + $0x18] sm:$0xff] %v6007
        %6038 = vst [vmem:[%s302 + $0x20] sm:$0xff] %v6013
        %6039 = vst [vmem:[%s302 + $0x28] sm:$0xff] %v6019
        %6040 = vst [vmem:[%s302 + $0x30] sm:$0xff] %v6025
        %6041 = vst [vmem:[%s302 + $0x38] sm:$0xff] %v6031
        %s6042 = sand.u32 %s160, 1
        %s6043 = scalar_lea.sflag [#allocation5], %s6042
        %s6044 = sand.u32 %s160, 1
        %s6045 = smul.addr %s6044, 64
        %s6046 = scalar_lea.vmem [#allocation7], %s6045
        // Predicated region
        $region91: #{tpu_custom_call.1} parent=77 // pred_check
          %p6047 = pneg %p170
        $region92: #{tpu_custom_call.1} parent=77 // pred_check_branch
          %6049 = sbr.rel (%p6047) target = $region94
        $region93: #{tpu_custom_call.1} parent=77 // pred_region
          %s6051 = ssub.s32 1024, 1024
          %6052 = vsyncadd %s6043, %s6051
          %s6053 = smul.addr %s21, 128
          %s6054 = scalar_lea.hbm %s6, %s6053
          %s6055 = sshll.u32 %s6046, 4
          %s6056 = int_to_ptr.vmem [resolvable:$true] %s6055
          %6061 = dma.vmem_to_hbm [thread:$0]  %s6056, 1024, %s6054, %s6043, 128, 256, 8
        $region94: #{tpu_custom_call.1} parent=77 // pred_fallthru
          _
      $region78: #{tpu_custom_call.1} parent=5 // pred_fallthru
        _
      %p6062 = scmp.le.s32.totalorder 2, %s16
      // Predicated region
      $region95: #{tpu_custom_call.1} parent=5 // pred_check
        %p6063 = pneg %p6062
      $region96: #{tpu_custom_call.1} parent=5 // pred_check_branch
        %6065 = sbr.rel (%p6063) target = $region98
      $region97: #{tpu_custom_call.1} parent=5 // pred_region
        %s6066 = ssub.s32 %s16, 2
        // Predicated region
        $region99: #{tpu_custom_call.1} parent=97 // pred_check
          %p6067 = pneg %p176
        $region100: #{tpu_custom_call.1} parent=97 // pred_check_branch
          %6069 = sbr.rel (%p6067) target = $region102
        $region101: #{tpu_custom_call.1} parent=97 // pred_region
          %s6070 = sand.u32 %s161, 1
          %s6071 = scalar_lea.sflag [#allocation5], %s6070
          %s6072 = sand.u32 %s161, 1
          %s6073 = smul.addr %s6072, 64
          %s6074 = scalar_lea.vmem [#allocation7], %s6073
          %6075 = dma.done %s6071, 1024
        $region102: #{tpu_custom_call.1} parent=97 // pred_fallthru
          _
      $region98: #{tpu_custom_call.1} parent=5 // pred_fallthru
        _
    $region6: #{tpu_custom_call.1} parent=1 // loop_footer
      %s20 = sadd.s32 1, %s16
    $region7: #{tpu_custom_call.1} parent=1 // loop_footer_branch
      %15 = sbr.rel target = $region3
    $region8: #{tpu_custom_call.1} parent=1 // loop_exit
      _
    %6076 = vsyncpa [#allocation4], 1
    %s6077 = scalar_lea.sflag [#allocation4], 1
    %6078 = vsyncpa %s6077, 1
    %6079 = vsyncpa [#allocation5], 1
    %s6080 = scalar_lea.sflag [#allocation5], 1
    %6081 = vsyncpa %s6080, 1

</llo_original>
